<compile_context>
chip_gen: v5e
topology: v5e:2x2
jax: 0.10.0
libtpu: 0.0.40
codegen_flags: <defaults>
</compile_context>

<pallas_src>
import functools

import jax
import jax.numpy as jnp
from jax import lax
from jax.experimental import pallas as pl
from jax.experimental.pallas import tpu as pltpu


def _round_up(x, m):
    return ((x + m - 1) // m) * m


# ----------------------------------------------------------------------------
# Pallas kernel: one (batch n, group g, q-tile t) per grid step.
#   mask_smem : SMEM, flat (N*G*P,)  per-point modulation (constant over Q)
#   sx_ref    : (1, 1, P, TQ)        pixel x coords (grid_sample, align_corners=False)
#   sy_ref    : (1, 1, P, TQ)        pixel y coords
#   img_ref   : (1, 1, gc*H_pad, W_pad)  this group's channels, row-major per channel
#   out_ref   : (1, 1, gc, TQ)
# ----------------------------------------------------------------------------
def _d2conv_kernel(mask_smem, sx_ref, sy_ref, img_ref, out_ref, *,
                   H_in, W_in, H_pad, W_pad, gc, P, group):
    n = pl.program_id(0)
    g = pl.program_id(1)
    TQ = sx_ref.shape[-1]

    img = img_ref[0, 0]                                     # (gc*H_pad, W_pad)

    # Column / row iotas, hoisted out of the P loop.
    wx_iota = lax.broadcasted_iota(jnp.int32, (W_pad, 1), 0)
    wy_iota = lax.broadcasted_iota(jnp.int32, (H_pad, 1), 0)

    mask_base = (n * group + g) * P

    def body(p, acc):
        sxp = sx_ref[0, 0, pl.ds(p, 1), :]                  # (1, TQ)
        syp = sy_ref[0, 0, pl.ds(p, 1), :]
        mp = mask_smem[mask_base + p]                       # scalar modulation (SMEM)

        x0f = jnp.floor(sxp)
        y0f = jnp.floor(syp)
        lxp = sxp - x0f
        lyp = syp - y0f
        x0p = x0f.astype(jnp.int32)
        y0p = y0f.astype(jnp.int32)

        # padding_mode='zeros': out-of-bounds corners get zero weight.
        vx0 = (x0p >= 0) & (x0p < W_in)
        vx1 = (x0p >= -1) & (x0p < W_in - 1)
        vy0 = (y0p >= 0) & (y0p < H_in)
        vy1 = (y0p >= -1) & (y0p < H_in - 1)

        # Mask modulation folded into the x corner weights.
        ax0 = jnp.where(vx0, (1.0 - lxp) * mp, 0.0)         # (1, TQ)
        ax1 = jnp.where(vx1, lxp * mp, 0.0)
        ay0 = jnp.where(vy0, 1.0 - lyp, 0.0)
        ay1 = jnp.where(vy1, lyp, 0.0)

        # One-hot over width: single d = iota - x0 compared to the constants {0, 1}.
        dx = wx_iota - x0p                                  # (W_pad, TQ)
        sx_oh = jnp.where(dx == 0, ax0, 0.0) + jnp.where(dx == 1, ax1, 0.0)

        # x-interpolate every image row with one MXU matmul.
        t = jnp.dot(img, sx_oh, preferred_element_type=jnp.float32)  # (gc*H_pad, TQ)
        t = t.reshape(gc, H_pad, TQ)                        # tile-aligned split (H_pad % 8 == 0)

        # One-hot over height, then combine the two y rows per query (VPU).
        dy = wy_iota - y0p                                  # (H_pad, TQ)
        sy_oh = jnp.where(dy == 0, ay0, 0.0) + jnp.where(dy == 1, ay1, 0.0)
        return acc + jnp.sum(t * sy_oh[None, :, :], axis=1)  # (gc, TQ)

    acc = lax.fori_loop(0, P, body, jnp.zeros((gc, TQ), jnp.float32), unroll=True)
    out_ref[0, 0] = acc.astype(out_ref.dtype)


# ----------------------------------------------------------------------------
# Sampling coordinates, exactly as dcnv3_core_pytorch computes them.
# Returned lane-dense: (N, G, P, Q) with Q = H_out*W_out (row-major).
# ----------------------------------------------------------------------------
def _sampling_coords(offset, *, H_in, W_in, K, stride, dilation, group,
                     offset_scale):
    N, H_out, W_out, _ = offset.shape
    P = K * K
    Q = H_out * W_out

    ref_y = (dilation * (K - 1) // 2 + 0.5
             + jnp.arange(H_out, dtype=jnp.float32) * stride) / H_in
    ref_x = (dilation * (K - 1) // 2 + 0.5
             + jnp.arange(W_out, dtype=jnp.float32) * stride) / W_in

    # dilation grid: point p = i*K + j has (x, y) = (ks[i], ks[j])
    ks = (-(dilation * (K - 1) // 2)
          + dilation * jnp.arange(K, dtype=jnp.float32))
    grid_x = jnp.repeat(ks, K) / W_in
    grid_y = jnp.tile(ks, K) / H_in

    off = offset.astype(jnp.float32).reshape(N, H_out, W_out, group, P, 2)
    off = jnp.transpose(off, (0, 3, 4, 1, 2, 5))            # (N, G, P, H_out, W_out, 2)

    loc_x = (ref_x[None, None, None, None, :]
             + (grid_x * offset_scale)[None, None, :, None, None]
             + off[..., 0] * (offset_scale / W_in))
    loc_y = (ref_y[None, None, None, :, None]
             + (grid_y * offset_scale)[None, None, :, None, None]
             + off[..., 1] * (offset_scale / H_in))

    # grid_sample pixel coords, align_corners=False:  ix = loc * size - 0.5
    sx = (loc_x * W_in - 0.5).reshape(N, group, P, Q)
    sy = (loc_y * H_in - 0.5).reshape(N, group, P, Q)
    return sx, sy, H_out, W_out


# ----------------------------------------------------------------------------
# Forward wrapper (Pallas).
# ----------------------------------------------------------------------------
def d2conv_forward(x_nchw, mask, offset, *, kernel_size=3, stride=1, pad=1,
                   dilation=1, group=4, offset_scale=1.0, remove_center=False):
    # TODO(synk): remove_center sampling-point filtering not implemented (module default False).
    assert not remove_center
    N, C, H, W = x_nchw.shape
    assert C % group == 0
    gc = C // group
    K = kernel_size
    P = K * K

    H_in, W_in = H + 2 * pad, W + 2 * pad
    H_padded = _round_up(H_in, 8)       # alignment pad (zero rows, never sampled)
    W_padded = _round_up(W_in, 8)

    # Spatial zero-pad directly in NCHW (conv pad + alignment pad): no NHWC round trip.
    xp = jnp.pad(x_nchw.astype(jnp.float32),
                 ((0, 0), (0, 0),
                  (pad, pad + (H_padded - H_in)),
                  (pad, pad + (W_padded - W_in))))
    # Pure reshape: channel = g*gc + c, row index inside a group = c*H_pad + y.
    imgF = xp.reshape(N, group, gc * H_padded, W_padded)

    sx, sy, H_out, W_out = _sampling_coords(
        offset, H_in=H_in, W_in=W_in, K=K, stride=stride, dilation=dilation,
        group=group, offset_scale=offset_scale)
    Q = H_out * W_out

    # Lane-dense, 128-aligned query tiling; TQ capped at 256 (v7x VMEM / megacore).
    Q_pad = _round_up(Q, 128)
    TQ = 256 if (Q_pad % 256 == 0 and Q_pad // 256 >= 2) else 128
    n_qt = Q_pad // TQ
    if Q_pad != Q:
        padq = ((0, 0), (0, 0), (0, 0), (0, Q_pad - Q))
        sx = jnp.pad(sx, padq)
        sy = jnp.pad(sy, padq)

    # Per-point modulation: flat f32 scalars via scalar prefetch (SMEM).
    mask_flat = mask.astype(jnp.float32).reshape(N * group * P)

    kernel = functools.partial(
        _d2conv_kernel, H_in=H_in, W_in=W_in, H_pad=H_padded, W_pad=W_padded,
        gc=gc, P=P, group=group)

    out = pl.pallas_call(
        kernel,
        out_shape=jax.ShapeDtypeStruct((N, group, gc, Q_pad), jnp.float32),
        grid_spec=pltpu.PrefetchScalarGridSpec(
            num_scalar_prefetch=1,
            grid=(N, group, n_qt),
            in_specs=[
                pl.BlockSpec((1, 1, P, TQ), lambda n, g, t, m: (n, g, 0, t)),
                pl.BlockSpec((1, 1, P, TQ), lambda n, g, t, m: (n, g, 0, t)),
                pl.BlockSpec((1, 1, gc * H_padded, W_padded),
                             lambda n, g, t, m: (n, g, 0, 0)),
            ],
            out_specs=pl.BlockSpec((1, 1, gc, TQ), lambda n, g, t, m: (n, g, 0, t)),
        ),
        compiler_params=pltpu.CompilerParams(
            dimension_semantics=("parallel", "parallel", "parallel"),
            vmem_limit_bytes=32 * 1024 * 1024),
    )(mask_flat, sx, sy, imgF)                               # (N, G, gc, Q_pad)

    # channel = g*gc + c and q = h*W_out + w  ->  plain reshape, no transposes.
    return out[..., :Q].reshape(N, C, H_out, W_out)


# ----------------------------------------------------------------------------
# Pure-JAX reference (explicit gather) for correctness checking.
# ----------------------------------------------------------------------------
def d2conv_reference(x_nchw, mask, offset, *, kernel_size=3, stride=1, pad=1,
                     dilation=1, group=4, offset_scale=1.0):
    N, C, H, W = x_nchw.shape
    gc = C // group
    K = kernel_size
    P = K * K

    x = jnp.transpose(x_nchw, (0, 2, 3, 1)).astype(jnp.float32)
    xp = jnp.pad(x, ((0, 0), (pad, pad), (pad, pad), (0, 0)))
    H_in, W_in = H + 2 * pad, W + 2 * pad

    sx, sy, H_out, W_out = _sampling_coords(
        offset, H_in=H_in, W_in=W_in, K=K, stride=stride, dilation=dilation,
        group=group, offset_scale=offset_scale)
    sx = jnp.transpose(sx, (0, 1, 3, 2))                     # (N, G, Q, P)
    sy = jnp.transpose(sy, (0, 1, 3, 2))
    Q = H_out * W_out

    inp = xp.reshape(N, H_in * W_in, group, gc).transpose(0, 2, 1, 3)  # (N,G,HW,gc)
    m = mask.astype(jnp.float32).reshape(N, group, 1, P)               # (N,G,1,P)

    x0 = jnp.floor(sx)
    y0 = jnp.floor(sy)
    lx = sx - x0
    ly = sy - y0
    x0i = x0.astype(jnp.int32)
    y0i = y0.astype(jnp.int32)
    x1i = x0i + 1
    y1i = y0i + 1

    gather = jax.vmap(jax.vmap(lambda img, idx: img[idx]))  # (HW,gc),(Q,P)->(Q,P,gc)

    corners = (
        (y0i, x0i, (1.0 - ly) * (1.0 - lx)),
        (y0i, x1i, (1.0 - ly) * lx),
        (y1i, x0i, ly * (1.0 - lx)),
        (y1i, x1i, ly * lx),
    )
    out = jnp.zeros((N, group, Q, gc), jnp.float32)
    for yi, xi, w in corners:
        valid = ((xi >= 0) & (xi < W_in) & (yi >= 0) & (yi < H_in)).astype(jnp.float32)
        idx = jnp.clip(yi * W_in + xi, 0, H_in * W_in - 1)
        vals = gather(inp, idx)                              # (N,G,Q,P,gc)
        out = out + ((w * m * valid)[..., None] * vals).sum(axis=3)

    out = out.transpose(0, 2, 1, 3).reshape(N, H_out, W_out, C)
    return out.transpose(0, 3, 1, 2)


if __name__ == "__main__":
    # Module config: channels=16, kernel_size=3, stride=1, pad=1, dilation=1,
    # group=4, offset_scale=1.0, remove_center=False  (no learnable parameters).
    N, C, H, W = 2, 16, 16, 16
    group, K = 4, 3
    P = K * K

    key = jax.random.PRNGKey(0)
    k1, k2, k3 = jax.random.split(key, 3)
    x = jax.random.normal(k1, (N, C, H, W), dtype=jnp.float32)          # NCHW input
    mask = jax.random.normal(k2, (N, group, P), dtype=jnp.float32)      # per-point mask
    offset = jax.random.normal(k3, (N, H, W, group * P * 2), dtype=jnp.float32)

    out = d2conv_forward(x, mask, offset, kernel_size=K, stride=1, pad=1,
                         dilation=1, group=group, offset_scale=1.0)
    out = jax.block_until_ready(out)
    assert out.shape == (N, C, H, W), out.shape

    ref = d2conv_reference(x, mask, offset, kernel_size=K, stride=1, pad=1,
                           dilation=1, group=group, offset_scale=1.0)
    ref = jax.block_until_ready(ref)
    err = float(jnp.max(jnp.abs(out - ref)))
    assert err < 1e-3, err

    print("KERNEL_OK")
</pallas_src>

<mosaic_0001>
module attributes {stable_mosaic.version = 11 : i64} {
  func.func @_d2conv_kernel(%arg0: i32, %arg1: i32, %arg2: i32, %arg3: memref<72xf32, #tpu.memory_space<smem>>, %arg4: memref<1x1x9x128xf32, #tpu.memory_space<vmem>>, %arg5: memref<1x1x9x128xf32, #tpu.memory_space<vmem>>, %arg6: memref<1x1x96x24xf32, #tpu.memory_space<vmem>>, %arg7: memref<1x1x4x128xf32, #tpu.memory_space<vmem>>) attributes {dimension_semantics = [#tpu.dimension_semantics<parallel>, #tpu.dimension_semantics<parallel>, #tpu.dimension_semantics<parallel>], iteration_bounds = array<i64: 2, 4, 2>, scalar_prefetch = 1 : i64, scratch_operands = 0 : i64, tpu.core_type = #tpu.core_type<tc>, window_params = [{transform_indices = @transform_0, window_bounds = array<i64: 1, 1, 9, 128>}, {transform_indices = @transform_1, window_bounds = array<i64: 1, 1, 9, 128>}, {transform_indices = @transform_2, window_bounds = array<i64: 1, 1, 96, 24>}, {transform_indices = @transform_3, window_bounds = array<i64: 1, 1, 4, 128>}]} {
    %c0 = arith.constant 0 : index
    %c0_0 = arith.constant 0 : index
    %c0_1 = arith.constant 0 : index
    %c0_2 = arith.constant 0 : index
    %0 = vector.load %arg6[%c0, %c0_0, %c0_1, %c0_2] : memref<1x1x96x24xf32, #tpu.memory_space<vmem>>, vector<1x1x96x24xf32>
    %1 = vector.shape_cast %0 : vector<1x1x96x24xf32> to vector<96x24xf32>
    %2 = tpu.iota {dimensions = array<i32: 0>} : vector<24x1xi32>
    %3 = tpu.iota {dimensions = array<i32: 0>} : vector<24x1xi32>
    %c4_i32 = arith.constant 4 : i32
    %4 = arith.muli %arg0, %c4_i32 : i32
    %5 = arith.addi %4, %arg1 : i32
    %c9_i32 = arith.constant 9 : i32
    %6 = arith.muli %5, %c9_i32 : i32
    %cst = arith.constant 0.000000e+00 : f32
    %7 = vector.broadcast %cst : f32 to vector<4x128xf32>
    %c0_i32 = arith.constant 0 : i32
    %c0_3 = arith.constant 0 : index
    %c0_4 = arith.constant 0 : index
    %8 = arith.index_cast %c0_i32 : i32 to index
    %c0_5 = arith.constant 0 : index
    %9 = vector.load %arg4[%c0_3, %c0_4, %8, %c0_5] : memref<1x1x9x128xf32, #tpu.memory_space<vmem>>, vector<1x1x1x128xf32>
    %10 = vector.shape_cast %9 : vector<1x1x1x128xf32> to vector<1x128xf32>
    %c0_6 = arith.constant 0 : index
    %c0_7 = arith.constant 0 : index
    %11 = arith.index_cast %c0_i32 : i32 to index
    %c0_8 = arith.constant 0 : index
    %12 = vector.load %arg5[%c0_6, %c0_7, %11, %c0_8] : memref<1x1x9x128xf32, #tpu.memory_space<vmem>>, vector<1x1x1x128xf32>
    %13 = vector.shape_cast %12 : vector<1x1x1x128xf32> to vector<1x128xf32>
    %14 = arith.addi %6, %c0_i32 : i32
    %15 = arith.index_cast %14 : i32 to index
    %16 = memref.load %arg3[%15] : memref<72xf32, #tpu.memory_space<smem>>
    %17 = math.floor %10 : vector<1x128xf32>
    %18 = math.floor %13 : vector<1x128xf32>
    %19 = arith.subf %10, %17 : vector<1x128xf32>
    %20 = arith.subf %13, %18 : vector<1x128xf32>
    %21 = arith.fptosi %17 : vector<1x128xf32> to vector<1x128xi32>
    %22 = arith.fptosi %18 : vector<1x128xf32> to vector<1x128xi32>
    %c0_i32_9 = arith.constant 0 : i32
    %23 = vector.broadcast %c0_i32_9 : i32 to vector<1x128xi32>
    %24 = arith.cmpi sge, %21, %23 : vector<1x128xi32>
    %c18_i32 = arith.constant 18 : i32
    %25 = vector.broadcast %c18_i32 : i32 to vector<1x128xi32>
    %26 = arith.cmpi slt, %21, %25 : vector<1x128xi32>
    %27 = arith.andi %24, %26 : vector<1x128xi1>
    %c-1_i32 = arith.constant -1 : i32
    %28 = vector.broadcast %c-1_i32 : i32 to vector<1x128xi32>
    %29 = arith.cmpi sge, %21, %28 : vector<1x128xi32>
    %c17_i32 = arith.constant 17 : i32
    %30 = vector.broadcast %c17_i32 : i32 to vector<1x128xi32>
    %31 = arith.cmpi slt, %21, %30 : vector<1x128xi32>
    %32 = arith.andi %29, %31 : vector<1x128xi1>
    %c0_i32_10 = arith.constant 0 : i32
    %33 = vector.broadcast %c0_i32_10 : i32 to vector<1x128xi32>
    %34 = arith.cmpi sge, %22, %33 : vector<1x128xi32>
    %c18_i32_11 = arith.constant 18 : i32
    %35 = vector.broadcast %c18_i32_11 : i32 to vector<1x128xi32>
    %36 = arith.cmpi slt, %22, %35 : vector<1x128xi32>
    %37 = arith.andi %34, %36 : vector<1x128xi1>
    %c-1_i32_12 = arith.constant -1 : i32
    %38 = vector.broadcast %c-1_i32_12 : i32 to vector<1x128xi32>
    %39 = arith.cmpi sge, %22, %38 : vector<1x128xi32>
    %c17_i32_13 = arith.constant 17 : i32
    %40 = vector.broadcast %c17_i32_13 : i32 to vector<1x128xi32>
    %41 = arith.cmpi slt, %22, %40 : vector<1x128xi32>
    %42 = arith.andi %39, %41 : vector<1x128xi1>
    %cst_14 = arith.constant 1.000000e+00 : f32
    %43 = vector.broadcast %cst_14 : f32 to vector<1x128xf32>
    %44 = arith.subf %43, %19 : vector<1x128xf32>
    %45 = vector.broadcast %16 : f32 to vector<1x128xf32>
    %46 = arith.mulf %44, %45 : vector<1x128xf32>
    %cst_15 = arith.constant 0.000000e+00 : f32
    %47 = vector.broadcast %cst_15 : f32 to vector<1x128xf32>
    %48 = arith.select %27, %46, %47 : vector<1x128xi1>, vector<1x128xf32>
    %49 = vector.broadcast %16 : f32 to vector<1x128xf32>
    %50 = arith.mulf %19, %49 : vector<1x128xf32>
    %cst_16 = arith.constant 0.000000e+00 : f32
    %51 = vector.broadcast %cst_16 : f32 to vector<1x128xf32>
    %52 = arith.select %32, %50, %51 : vector<1x128xi1>, vector<1x128xf32>
    %cst_17 = arith.constant 1.000000e+00 : f32
    %53 = vector.broadcast %cst_17 : f32 to vector<1x128xf32>
    %54 = arith.subf %53, %20 : vector<1x128xf32>
    %cst_18 = arith.constant 0.000000e+00 : f32
    %55 = vector.broadcast %cst_18 : f32 to vector<1x128xf32>
    %56 = arith.select %37, %54, %55 : vector<1x128xi1>, vector<1x128xf32>
    %cst_19 = arith.constant 0.000000e+00 : f32
    %57 = vector.broadcast %cst_19 : f32 to vector<1x128xf32>
    %58 = arith.select %42, %20, %57 : vector<1x128xi1>, vector<1x128xf32>
    %59 = vector.broadcast %2 : vector<24x1xi32> to vector<24x128xi32>
    %60 = vector.broadcast %21 : vector<1x128xi32> to vector<24x128xi32>
    %61 = arith.subi %59, %60 : vector<24x128xi32>
    %c0_i32_20 = arith.constant 0 : i32
    %62 = vector.broadcast %c0_i32_20 : i32 to vector<24x128xi32>
    %63 = arith.cmpi eq, %61, %62 : vector<24x128xi32>
    %cst_21 = arith.constant 0.000000e+00 : f32
    %64 = vector.shape_cast %48 : vector<1x128xf32> to vector<1x128xf32>
    %65 = vector.broadcast %64 : vector<1x128xf32> to vector<24x128xf32>
    %66 = vector.broadcast %cst_21 : f32 to vector<24x128xf32>
    %67 = arith.select %63, %65, %66 : vector<24x128xi1>, vector<24x128xf32>
    %c1_i32 = arith.constant 1 : i32
    %68 = vector.broadcast %c1_i32 : i32 to vector<24x128xi32>
    %69 = arith.cmpi eq, %61, %68 : vector<24x128xi32>
    %cst_22 = arith.constant 0.000000e+00 : f32
    %70 = vector.shape_cast %52 : vector<1x128xf32> to vector<1x128xf32>
    %71 = vector.broadcast %70 : vector<1x128xf32> to vector<24x128xf32>
    %72 = vector.broadcast %cst_22 : f32 to vector<24x128xf32>
    %73 = arith.select %69, %71, %72 : vector<24x128xi1>, vector<24x128xf32>
    %74 = arith.addf %67, %73 : vector<24x128xf32>
    %cst_23 = arith.constant dense<0.000000e+00> : vector<96x128xf32>
    %75 = tpu.matmul %1, %74, %cst_23 {dimension_numbers = #tpu.dot_dimension_numbers<[1], [0], [0], [1], [0, 0, 1, 1], [], []>} : vector<96x24xf32>, vector<24x128xf32>, vector<96x128xf32> -> vector<96x128xf32>
    %76 = vector.shape_cast %75 : vector<96x128xf32> to vector<4x24x128xf32>
    %77 = vector.broadcast %3 : vector<24x1xi32> to vector<24x128xi32>
    %78 = vector.broadcast %22 : vector<1x128xi32> to vector<24x128xi32>
    %79 = arith.subi %77, %78 : vector<24x128xi32>
    %c0_i32_24 = arith.constant 0 : i32
    %80 = vector.broadcast %c0_i32_24 : i32 to vector<24x128xi32>
    %81 = arith.cmpi eq, %79, %80 : vector<24x128xi32>
    %cst_25 = arith.constant 0.000000e+00 : f32
    %82 = vector.shape_cast %56 : vector<1x128xf32> to vector<1x128xf32>
    %83 = vector.broadcast %82 : vector<1x128xf32> to vector<24x128xf32>
    %84 = vector.broadcast %cst_25 : f32 to vector<24x128xf32>
    %85 = arith.select %81, %83, %84 : vector<24x128xi1>, vector<24x128xf32>
    %c1_i32_26 = arith.constant 1 : i32
    %86 = vector.broadcast %c1_i32_26 : i32 to vector<24x128xi32>
    %87 = arith.cmpi eq, %79, %86 : vector<24x128xi32>
    %cst_27 = arith.constant 0.000000e+00 : f32
    %88 = vector.shape_cast %58 : vector<1x128xf32> to vector<1x128xf32>
    %89 = vector.broadcast %88 : vector<1x128xf32> to vector<24x128xf32>
    %90 = vector.broadcast %cst_27 : f32 to vector<24x128xf32>
    %91 = arith.select %87, %89, %90 : vector<24x128xi1>, vector<24x128xf32>
    %92 = arith.addf %85, %91 : vector<24x128xf32>
    %93 = vector.shape_cast %92 : vector<24x128xf32> to vector<1x24x128xf32>
    %94 = vector.broadcast %93 : vector<1x24x128xf32> to vector<4x24x128xf32>
    %95 = arith.mulf %76, %94 : vector<4x24x128xf32>
    %cst_28 = arith.constant dense<0.000000e+00> : vector<4x128xf32>
    %96 = vector.multi_reduction <add>, %95, %cst_28 [1] : vector<4x24x128xf32> to vector<4x128xf32>
    %97 = arith.addf %7, %96 : vector<4x128xf32>
    %c1_i32_29 = arith.constant 1 : i32
    %c0_30 = arith.constant 0 : index
    %c0_31 = arith.constant 0 : index
    %98 = arith.index_cast %c1_i32_29 : i32 to index
    %c0_32 = arith.constant 0 : index
    %99 = vector.load %arg4[%c0_30, %c0_31, %98, %c0_32] : memref<1x1x9x128xf32, #tpu.memory_space<vmem>>, vector<1x1x1x128xf32>
    %100 = vector.shape_cast %99 : vector<1x1x1x128xf32> to vector<1x128xf32>
    %c0_33 = arith.constant 0 : index
    %c0_34 = arith.constant 0 : index
    %101 = arith.index_cast %c1_i32_29 : i32 to index
    %c0_35 = arith.constant 0 : index
    %102 = vector.load %arg5[%c0_33, %c0_34, %101, %c0_35] : memref<1x1x9x128xf32, #tpu.memory_space<vmem>>, vector<1x1x1x128xf32>
    %103 = vector.shape_cast %102 : vector<1x1x1x128xf32> to vector<1x128xf32>
    %104 = arith.addi %6, %c1_i32_29 : i32
    %105 = arith.index_cast %104 : i32 to index
    %106 = memref.load %arg3[%105] : memref<72xf32, #tpu.memory_space<smem>>
    %107 = math.floor %100 : vector<1x128xf32>
    %108 = math.floor %103 : vector<1x128xf32>
    %109 = arith.subf %100, %107 : vector<1x128xf32>
    %110 = arith.subf %103, %108 : vector<1x128xf32>
    %111 = arith.fptosi %107 : vector<1x128xf32> to vector<1x128xi32>
    %112 = arith.fptosi %108 : vector<1x128xf32> to vector<1x128xi32>
    %c0_i32_36 = arith.constant 0 : i32
    %113 = vector.broadcast %c0_i32_36 : i32 to vector<1x128xi32>
    %114 = arith.cmpi sge, %111, %113 : vector<1x128xi32>
    %c18_i32_37 = arith.constant 18 : i32
    %115 = vector.broadcast %c18_i32_37 : i32 to vector<1x128xi32>
    %116 = arith.cmpi slt, %111, %115 : vector<1x128xi32>
    %117 = arith.andi %114, %116 : vector<1x128xi1>
    %c-1_i32_38 = arith.constant -1 : i32
    %118 = vector.broadcast %c-1_i32_38 : i32 to vector<1x128xi32>
    %119 = arith.cmpi sge, %111, %118 : vector<1x128xi32>
    %c17_i32_39 = arith.constant 17 : i32
    %120 = vector.broadcast %c17_i32_39 : i32 to vector<1x128xi32>
    %121 = arith.cmpi slt, %111, %120 : vector<1x128xi32>
    %122 = arith.andi %119, %121 : vector<1x128xi1>
    %c0_i32_40 = arith.constant 0 : i32
    %123 = vector.broadcast %c0_i32_40 : i32 to vector<1x128xi32>
    %124 = arith.cmpi sge, %112, %123 : vector<1x128xi32>
    %c18_i32_41 = arith.constant 18 : i32
    %125 = vector.broadcast %c18_i32_41 : i32 to vector<1x128xi32>
    %126 = arith.cmpi slt, %112, %125 : vector<1x128xi32>
    %127 = arith.andi %124, %126 : vector<1x128xi1>
    %c-1_i32_42 = arith.constant -1 : i32
    %128 = vector.broadcast %c-1_i32_42 : i32 to vector<1x128xi32>
    %129 = arith.cmpi sge, %112, %128 : vector<1x128xi32>
    %c17_i32_43 = arith.constant 17 : i32
    %130 = vector.broadcast %c17_i32_43 : i32 to vector<1x128xi32>
    %131 = arith.cmpi slt, %112, %130 : vector<1x128xi32>
    %132 = arith.andi %129, %131 : vector<1x128xi1>
    %cst_44 = arith.constant 1.000000e+00 : f32
    %133 = vector.broadcast %cst_44 : f32 to vector<1x128xf32>
    %134 = arith.subf %133, %109 : vector<1x128xf32>
    %135 = vector.broadcast %106 : f32 to vector<1x128xf32>
    %136 = arith.mulf %134, %135 : vector<1x128xf32>
    %cst_45 = arith.constant 0.000000e+00 : f32
    %137 = vector.broadcast %cst_45 : f32 to vector<1x128xf32>
    %138 = arith.select %117, %136, %137 : vector<1x128xi1>, vector<1x128xf32>
    %139 = vector.broadcast %106 : f32 to vector<1x128xf32>
    %140 = arith.mulf %109, %139 : vector<1x128xf32>
    %cst_46 = arith.constant 0.000000e+00 : f32
    %141 = vector.broadcast %cst_46 : f32 to vector<1x128xf32>
    %142 = arith.select %122, %140, %141 : vector<1x128xi1>, vector<1x128xf32>
    %cst_47 = arith.constant 1.000000e+00 : f32
    %143 = vector.broadcast %cst_47 : f32 to vector<1x128xf32>
    %144 = arith.subf %143, %110 : vector<1x128xf32>
    %cst_48 = arith.constant 0.000000e+00 : f32
    %145 = vector.broadcast %cst_48 : f32 to vector<1x128xf32>
    %146 = arith.select %127, %144, %145 : vector<1x128xi1>, vector<1x128xf32>
    %cst_49 = arith.constant 0.000000e+00 : f32
    %147 = vector.broadcast %cst_49 : f32 to vector<1x128xf32>
    %148 = arith.select %132, %110, %147 : vector<1x128xi1>, vector<1x128xf32>
    %149 = vector.broadcast %2 : vector<24x1xi32> to vector<24x128xi32>
    %150 = vector.broadcast %111 : vector<1x128xi32> to vector<24x128xi32>
    %151 = arith.subi %149, %150 : vector<24x128xi32>
    %c0_i32_50 = arith.constant 0 : i32
    %152 = vector.broadcast %c0_i32_50 : i32 to vector<24x128xi32>
    %153 = arith.cmpi eq, %151, %152 : vector<24x128xi32>
    %cst_51 = arith.constant 0.000000e+00 : f32
    %154 = vector.shape_cast %138 : vector<1x128xf32> to vector<1x128xf32>
    %155 = vector.broadcast %154 : vector<1x128xf32> to vector<24x128xf32>
    %156 = vector.broadcast %cst_51 : f32 to vector<24x128xf32>
    %157 = arith.select %153, %155, %156 : vector<24x128xi1>, vector<24x128xf32>
    %c1_i32_52 = arith.constant 1 : i32
    %158 = vector.broadcast %c1_i32_52 : i32 to vector<24x128xi32>
    %159 = arith.cmpi eq, %151, %158 : vector<24x128xi32>
    %cst_53 = arith.constant 0.000000e+00 : f32
    %160 = vector.shape_cast %142 : vector<1x128xf32> to vector<1x128xf32>
    %161 = vector.broadcast %160 : vector<1x128xf32> to vector<24x128xf32>
    %162 = vector.broadcast %cst_53 : f32 to vector<24x128xf32>
    %163 = arith.select %159, %161, %162 : vector<24x128xi1>, vector<24x128xf32>
    %164 = arith.addf %157, %163 : vector<24x128xf32>
    %cst_54 = arith.constant dense<0.000000e+00> : vector<96x128xf32>
    %165 = tpu.matmul %1, %164, %cst_54 {dimension_numbers = #tpu.dot_dimension_numbers<[1], [0], [0], [1], [0, 0, 1, 1], [], []>} : vector<96x24xf32>, vector<24x128xf32>, vector<96x128xf32> -> vector<96x128xf32>
    %166 = vector.shape_cast %165 : vector<96x128xf32> to vector<4x24x128xf32>
    %167 = vector.broadcast %3 : vector<24x1xi32> to vector<24x128xi32>
    %168 = vector.broadcast %112 : vector<1x128xi32> to vector<24x128xi32>
    %169 = arith.subi %167, %168 : vector<24x128xi32>
    %c0_i32_55 = arith.constant 0 : i32
    %170 = vector.broadcast %c0_i32_55 : i32 to vector<24x128xi32>
    %171 = arith.cmpi eq, %169, %170 : vector<24x128xi32>
    %cst_56 = arith.constant 0.000000e+00 : f32
    %172 = vector.shape_cast %146 : vector<1x128xf32> to vector<1x128xf32>
    %173 = vector.broadcast %172 : vector<1x128xf32> to vector<24x128xf32>
    %174 = vector.broadcast %cst_56 : f32 to vector<24x128xf32>
    %175 = arith.select %171, %173, %174 : vector<24x128xi1>, vector<24x128xf32>
    %c1_i32_57 = arith.constant 1 : i32
    %176 = vector.broadcast %c1_i32_57 : i32 to vector<24x128xi32>
    %177 = arith.cmpi eq, %169, %176 : vector<24x128xi32>
    %cst_58 = arith.constant 0.000000e+00 : f32
    %178 = vector.shape_cast %148 : vector<1x128xf32> to vector<1x128xf32>
    %179 = vector.broadcast %178 : vector<1x128xf32> to vector<24x128xf32>
    %180 = vector.broadcast %cst_58 : f32 to vector<24x128xf32>
    %181 = arith.select %177, %179, %180 : vector<24x128xi1>, vector<24x128xf32>
    %182 = arith.addf %175, %181 : vector<24x128xf32>
    %183 = vector.shape_cast %182 : vector<24x128xf32> to vector<1x24x128xf32>
    %184 = vector.broadcast %183 : vector<1x24x128xf32> to vector<4x24x128xf32>
    %185 = arith.mulf %166, %184 : vector<4x24x128xf32>
    %cst_59 = arith.constant dense<0.000000e+00> : vector<4x128xf32>
    %186 = vector.multi_reduction <add>, %185, %cst_59 [1] : vector<4x24x128xf32> to vector<4x128xf32>
    %187 = arith.addf %97, %186 : vector<4x128xf32>
    %c2_i32 = arith.constant 2 : i32
    %c0_60 = arith.constant 0 : index
    %c0_61 = arith.constant 0 : index
    %188 = arith.index_cast %c2_i32 : i32 to index
    %c0_62 = arith.constant 0 : index
    %189 = vector.load %arg4[%c0_60, %c0_61, %188, %c0_62] : memref<1x1x9x128xf32, #tpu.memory_space<vmem>>, vector<1x1x1x128xf32>
    %190 = vector.shape_cast %189 : vector<1x1x1x128xf32> to vector<1x128xf32>
    %c0_63 = arith.constant 0 : index
    %c0_64 = arith.constant 0 : index
    %191 = arith.index_cast %c2_i32 : i32 to index
    %c0_65 = arith.constant 0 : index
    %192 = vector.load %arg5[%c0_63, %c0_64, %191, %c0_65] : memref<1x1x9x128xf32, #tpu.memory_space<vmem>>, vector<1x1x1x128xf32>
    %193 = vector.shape_cast %192 : vector<1x1x1x128xf32> to vector<1x128xf32>
    %194 = arith.addi %6, %c2_i32 : i32
    %195 = arith.index_cast %194 : i32 to index
    %196 = memref.load %arg3[%195] : memref<72xf32, #tpu.memory_space<smem>>
    %197 = math.floor %190 : vector<1x128xf32>
    %198 = math.floor %193 : vector<1x128xf32>
    %199 = arith.subf %190, %197 : vector<1x128xf32>
    %200 = arith.subf %193, %198 : vector<1x128xf32>
    %201 = arith.fptosi %197 : vector<1x128xf32> to vector<1x128xi32>
    %202 = arith.fptosi %198 : vector<1x128xf32> to vector<1x128xi32>
    %c0_i32_66 = arith.constant 0 : i32
    %203 = vector.broadcast %c0_i32_66 : i32 to vector<1x128xi32>
    %204 = arith.cmpi sge, %201, %203 : vector<1x128xi32>
    %c18_i32_67 = arith.constant 18 : i32
    %205 = vector.broadcast %c18_i32_67 : i32 to vector<1x128xi32>
    %206 = arith.cmpi slt, %201, %205 : vector<1x128xi32>
    %207 = arith.andi %204, %206 : vector<1x128xi1>
    %c-1_i32_68 = arith.constant -1 : i32
    %208 = vector.broadcast %c-1_i32_68 : i32 to vector<1x128xi32>
    %209 = arith.cmpi sge, %201, %208 : vector<1x128xi32>
    %c17_i32_69 = arith.constant 17 : i32
    %210 = vector.broadcast %c17_i32_69 : i32 to vector<1x128xi32>
    %211 = arith.cmpi slt, %201, %210 : vector<1x128xi32>
    %212 = arith.andi %209, %211 : vector<1x128xi1>
    %c0_i32_70 = arith.constant 0 : i32
    %213 = vector.broadcast %c0_i32_70 : i32 to vector<1x128xi32>
    %214 = arith.cmpi sge, %202, %213 : vector<1x128xi32>
    %c18_i32_71 = arith.constant 18 : i32
    %215 = vector.broadcast %c18_i32_71 : i32 to vector<1x128xi32>
    %216 = arith.cmpi slt, %202, %215 : vector<1x128xi32>
    %217 = arith.andi %214, %216 : vector<1x128xi1>
    %c-1_i32_72 = arith.constant -1 : i32
    %218 = vector.broadcast %c-1_i32_72 : i32 to vector<1x128xi32>
    %219 = arith.cmpi sge, %202, %218 : vector<1x128xi32>
    %c17_i32_73 = arith.constant 17 : i32
    %220 = vector.broadcast %c17_i32_73 : i32 to vector<1x128xi32>
    %221 = arith.cmpi slt, %202, %220 : vector<1x128xi32>
    %222 = arith.andi %219, %221 : vector<1x128xi1>
    %cst_74 = arith.constant 1.000000e+00 : f32
    %223 = vector.broadcast %cst_74 : f32 to vector<1x128xf32>
    %224 = arith.subf %223, %199 : vector<1x128xf32>
    %225 = vector.broadcast %196 : f32 to vector<1x128xf32>
    %226 = arith.mulf %224, %225 : vector<1x128xf32>
    %cst_75 = arith.constant 0.000000e+00 : f32
    %227 = vector.broadcast %cst_75 : f32 to vector<1x128xf32>
    %228 = arith.select %207, %226, %227 : vector<1x128xi1>, vector<1x128xf32>
    %229 = vector.broadcast %196 : f32 to vector<1x128xf32>
    %230 = arith.mulf %199, %229 : vector<1x128xf32>
    %cst_76 = arith.constant 0.000000e+00 : f32
    %231 = vector.broadcast %cst_76 : f32 to vector<1x128xf32>
    %232 = arith.select %212, %230, %231 : vector<1x128xi1>, vector<1x128xf32>
    %cst_77 = arith.constant 1.000000e+00 : f32
    %233 = vector.broadcast %cst_77 : f32 to vector<1x128xf32>
    %234 = arith.subf %233, %200 : vector<1x128xf32>
    %cst_78 = arith.constant 0.000000e+00 : f32
    %235 = vector.broadcast %cst_78 : f32 to vector<1x128xf32>
    %236 = arith.select %217, %234, %235 : vector<1x128xi1>, vector<1x128xf32>
    %cst_79 = arith.constant 0.000000e+00 : f32
    %237 = vector.broadcast %cst_79 : f32 to vector<1x128xf32>
    %238 = arith.select %222, %200, %237 : vector<1x128xi1>, vector<1x128xf32>
    %239 = vector.broadcast %2 : vector<24x1xi32> to vector<24x128xi32>
    %240 = vector.broadcast %201 : vector<1x128xi32> to vector<24x128xi32>
    %241 = arith.subi %239, %240 : vector<24x128xi32>
    %c0_i32_80 = arith.constant 0 : i32
    %242 = vector.broadcast %c0_i32_80 : i32 to vector<24x128xi32>
    %243 = arith.cmpi eq, %241, %242 : vector<24x128xi32>
    %cst_81 = arith.constant 0.000000e+00 : f32
    %244 = vector.shape_cast %228 : vector<1x128xf32> to vector<1x128xf32>
    %245 = vector.broadcast %244 : vector<1x128xf32> to vector<24x128xf32>
    %246 = vector.broadcast %cst_81 : f32 to vector<24x128xf32>
    %247 = arith.select %243, %245, %246 : vector<24x128xi1>, vector<24x128xf32>
    %c1_i32_82 = arith.constant 1 : i32
    %248 = vector.broadcast %c1_i32_82 : i32 to vector<24x128xi32>
    %249 = arith.cmpi eq, %241, %248 : vector<24x128xi32>
    %cst_83 = arith.constant 0.000000e+00 : f32
    %250 = vector.shape_cast %232 : vector<1x128xf32> to vector<1x128xf32>
    %251 = vector.broadcast %250 : vector<1x128xf32> to vector<24x128xf32>
    %252 = vector.broadcast %cst_83 : f32 to vector<24x128xf32>
    %253 = arith.select %249, %251, %252 : vector<24x128xi1>, vector<24x128xf32>
    %254 = arith.addf %247, %253 : vector<24x128xf32>
    %cst_84 = arith.constant dense<0.000000e+00> : vector<96x128xf32>
    %255 = tpu.matmul %1, %254, %cst_84 {dimension_numbers = #tpu.dot_dimension_numbers<[1], [0], [0], [1], [0, 0, 1, 1], [], []>} : vector<96x24xf32>, vector<24x128xf32>, vector<96x128xf32> -> vector<96x128xf32>
    %256 = vector.shape_cast %255 : vector<96x128xf32> to vector<4x24x128xf32>
    %257 = vector.broadcast %3 : vector<24x1xi32> to vector<24x128xi32>
    %258 = vector.broadcast %202 : vector<1x128xi32> to vector<24x128xi32>
    %259 = arith.subi %257, %258 : vector<24x128xi32>
    %c0_i32_85 = arith.constant 0 : i32
    %260 = vector.broadcast %c0_i32_85 : i32 to vector<24x128xi32>
    %261 = arith.cmpi eq, %259, %260 : vector<24x128xi32>
    %cst_86 = arith.constant 0.000000e+00 : f32
    %262 = vector.shape_cast %236 : vector<1x128xf32> to vector<1x128xf32>
    %263 = vector.broadcast %262 : vector<1x128xf32> to vector<24x128xf32>
    %264 = vector.broadcast %cst_86 : f32 to vector<24x128xf32>
    %265 = arith.select %261, %263, %264 : vector<24x128xi1>, vector<24x128xf32>
    %c1_i32_87 = arith.constant 1 : i32
    %266 = vector.broadcast %c1_i32_87 : i32 to vector<24x128xi32>
    %267 = arith.cmpi eq, %259, %266 : vector<24x128xi32>
    %cst_88 = arith.constant 0.000000e+00 : f32
    %268 = vector.shape_cast %238 : vector<1x128xf32> to vector<1x128xf32>
    %269 = vector.broadcast %268 : vector<1x128xf32> to vector<24x128xf32>
    %270 = vector.broadcast %cst_88 : f32 to vector<24x128xf32>
    %271 = arith.select %267, %269, %270 : vector<24x128xi1>, vector<24x128xf32>
    %272 = arith.addf %265, %271 : vector<24x128xf32>
    %273 = vector.shape_cast %272 : vector<24x128xf32> to vector<1x24x128xf32>
    %274 = vector.broadcast %273 : vector<1x24x128xf32> to vector<4x24x128xf32>
    %275 = arith.mulf %256, %274 : vector<4x24x128xf32>
    %cst_89 = arith.constant dense<0.000000e+00> : vector<4x128xf32>
    %276 = vector.multi_reduction <add>, %275, %cst_89 [1] : vector<4x24x128xf32> to vector<4x128xf32>
    %277 = arith.addf %187, %276 : vector<4x128xf32>
    %c3_i32 = arith.constant 3 : i32
    %c0_90 = arith.constant 0 : index
    %c0_91 = arith.constant 0 : index
    %278 = arith.index_cast %c3_i32 : i32 to index
    %c0_92 = arith.constant 0 : index
    %279 = vector.load %arg4[%c0_90, %c0_91, %278, %c0_92] : memref<1x1x9x128xf32, #tpu.memory_space<vmem>>, vector<1x1x1x128xf32>
    %280 = vector.shape_cast %279 : vector<1x1x1x128xf32> to vector<1x128xf32>
    %c0_93 = arith.constant 0 : index
    %c0_94 = arith.constant 0 : index
    %281 = arith.index_cast %c3_i32 : i32 to index
    %c0_95 = arith.constant 0 : index
    %282 = vector.load %arg5[%c0_93, %c0_94, %281, %c0_95] : memref<1x1x9x128xf32, #tpu.memory_space<vmem>>, vector<1x1x1x128xf32>
    %283 = vector.shape_cast %282 : vector<1x1x1x128xf32> to vector<1x128xf32>
    %284 = arith.addi %6, %c3_i32 : i32
    %285 = arith.index_cast %284 : i32 to index
    %286 = memref.load %arg3[%285] : memref<72xf32, #tpu.memory_space<smem>>
    %287 = math.floor %280 : vector<1x128xf32>
    %288 = math.floor %283 : vector<1x128xf32>
    %289 = arith.subf %280, %287 : vector<1x128xf32>
    %290 = arith.subf %283, %288 : vector<1x128xf32>
    %291 = arith.fptosi %287 : vector<1x128xf32> to vector<1x128xi32>
    %292 = arith.fptosi %288 : vector<1x128xf32> to vector<1x128xi32>
    %c0_i32_96 = arith.constant 0 : i32
    %293 = vector.broadcast %c0_i32_96 : i32 to vector<1x128xi32>
    %294 = arith.cmpi sge, %291, %293 : vector<1x128xi32>
    %c18_i32_97 = arith.constant 18 : i32
    %295 = vector.broadcast %c18_i32_97 : i32 to vector<1x128xi32>
    %296 = arith.cmpi slt, %291, %295 : vector<1x128xi32>
    %297 = arith.andi %294, %296 : vector<1x128xi1>
    %c-1_i32_98 = arith.constant -1 : i32
    %298 = vector.broadcast %c-1_i32_98 : i32 to vector<1x128xi32>
    %299 = arith.cmpi sge, %291, %298 : vector<1x128xi32>
    %c17_i32_99 = arith.constant 17 : i32
    %300 = vector.broadcast %c17_i32_99 : i32 to vector<1x128xi32>
    %301 = arith.cmpi slt, %291, %300 : vector<1x128xi32>
    %302 = arith.andi %299, %301 : vector<1x128xi1>
    %c0_i32_100 = arith.constant 0 : i32
    %303 = vector.broadcast %c0_i32_100 : i32 to vector<1x128xi32>
    %304 = arith.cmpi sge, %292, %303 : vector<1x128xi32>
    %c18_i32_101 = arith.constant 18 : i32
    %305 = vector.broadcast %c18_i32_101 : i32 to vector<1x128xi32>
    %306 = arith.cmpi slt, %292, %305 : vector<1x128xi32>
    %307 = arith.andi %304, %306 : vector<1x128xi1>
    %c-1_i32_102 = arith.constant -1 : i32
    %308 = vector.broadcast %c-1_i32_102 : i32 to vector<1x128xi32>
    %309 = arith.cmpi sge, %292, %308 : vector<1x128xi32>
    %c17_i32_103 = arith.constant 17 : i32
    %310 = vector.broadcast %c17_i32_103 : i32 to vector<1x128xi32>
    %311 = arith.cmpi slt, %292, %310 : vector<1x128xi32>
    %312 = arith.andi %309, %311 : vector<1x128xi1>
    %cst_104 = arith.constant 1.000000e+00 : f32
    %313 = vector.broadcast %cst_104 : f32 to vector<1x128xf32>
    %314 = arith.subf %313, %289 : vector<1x128xf32>
    %315 = vector.broadcast %286 : f32 to vector<1x128xf32>
    %316 = arith.mulf %314, %315 : vector<1x128xf32>
    %cst_105 = arith.constant 0.000000e+00 : f32
    %317 = vector.broadcast %cst_105 : f32 to vector<1x128xf32>
    %318 = arith.select %297, %316, %317 : vector<1x128xi1>, vector<1x128xf32>
    %319 = vector.broadcast %286 : f32 to vector<1x128xf32>
    %320 = arith.mulf %289, %319 : vector<1x128xf32>
    %cst_106 = arith.constant 0.000000e+00 : f32
    %321 = vector.broadcast %cst_106 : f32 to vector<1x128xf32>
    %322 = arith.select %302, %320, %321 : vector<1x128xi1>, vector<1x128xf32>
    %cst_107 = arith.constant 1.000000e+00 : f32
    %323 = vector.broadcast %cst_107 : f32 to vector<1x128xf32>
    %324 = arith.subf %323, %290 : vector<1x128xf32>
    %cst_108 = arith.constant 0.000000e+00 : f32
    %325 = vector.broadcast %cst_108 : f32 to vector<1x128xf32>
    %326 = arith.select %307, %324, %325 : vector<1x128xi1>, vector<1x128xf32>
    %cst_109 = arith.constant 0.000000e+00 : f32
    %327 = vector.broadcast %cst_109 : f32 to vector<1x128xf32>
    %328 = arith.select %312, %290, %327 : vector<1x128xi1>, vector<1x128xf32>
    %329 = vector.broadcast %2 : vector<24x1xi32> to vector<24x128xi32>
    %330 = vector.broadcast %291 : vector<1x128xi32> to vector<24x128xi32>
    %331 = arith.subi %329, %330 : vector<24x128xi32>
    %c0_i32_110 = arith.constant 0 : i32
    %332 = vector.broadcast %c0_i32_110 : i32 to vector<24x128xi32>
    %333 = arith.cmpi eq, %331, %332 : vector<24x128xi32>
    %cst_111 = arith.constant 0.000000e+00 : f32
    %334 = vector.shape_cast %318 : vector<1x128xf32> to vector<1x128xf32>
    %335 = vector.broadcast %334 : vector<1x128xf32> to vector<24x128xf32>
    %336 = vector.broadcast %cst_111 : f32 to vector<24x128xf32>
    %337 = arith.select %333, %335, %336 : vector<24x128xi1>, vector<24x128xf32>
    %c1_i32_112 = arith.constant 1 : i32
    %338 = vector.broadcast %c1_i32_112 : i32 to vector<24x128xi32>
    %339 = arith.cmpi eq, %331, %338 : vector<24x128xi32>
    %cst_113 = arith.constant 0.000000e+00 : f32
    %340 = vector.shape_cast %322 : vector<1x128xf32> to vector<1x128xf32>
    %341 = vector.broadcast %340 : vector<1x128xf32> to vector<24x128xf32>
    %342 = vector.broadcast %cst_113 : f32 to vector<24x128xf32>
    %343 = arith.select %339, %341, %342 : vector<24x128xi1>, vector<24x128xf32>
    %344 = arith.addf %337, %343 : vector<24x128xf32>
    %cst_114 = arith.constant dense<0.000000e+00> : vector<96x128xf32>
    %345 = tpu.matmul %1, %344, %cst_114 {dimension_numbers = #tpu.dot_dimension_numbers<[1], [0], [0], [1], [0, 0, 1, 1], [], []>} : vector<96x24xf32>, vector<24x128xf32>, vector<96x128xf32> -> vector<96x128xf32>
    %346 = vector.shape_cast %345 : vector<96x128xf32> to vector<4x24x128xf32>
    %347 = vector.broadcast %3 : vector<24x1xi32> to vector<24x128xi32>
    %348 = vector.broadcast %292 : vector<1x128xi32> to vector<24x128xi32>
    %349 = arith.subi %347, %348 : vector<24x128xi32>
    %c0_i32_115 = arith.constant 0 : i32
    %350 = vector.broadcast %c0_i32_115 : i32 to vector<24x128xi32>
    %351 = arith.cmpi eq, %349, %350 : vector<24x128xi32>
    %cst_116 = arith.constant 0.000000e+00 : f32
    %352 = vector.shape_cast %326 : vector<1x128xf32> to vector<1x128xf32>
    %353 = vector.broadcast %352 : vector<1x128xf32> to vector<24x128xf32>
    %354 = vector.broadcast %cst_116 : f32 to vector<24x128xf32>
    %355 = arith.select %351, %353, %354 : vector<24x128xi1>, vector<24x128xf32>
    %c1_i32_117 = arith.constant 1 : i32
    %356 = vector.broadcast %c1_i32_117 : i32 to vector<24x128xi32>
    %357 = arith.cmpi eq, %349, %356 : vector<24x128xi32>
    %cst_118 = arith.constant 0.000000e+00 : f32
    %358 = vector.shape_cast %328 : vector<1x128xf32> to vector<1x128xf32>
    %359 = vector.broadcast %358 : vector<1x128xf32> to vector<24x128xf32>
    %360 = vector.broadcast %cst_118 : f32 to vector<24x128xf32>
    %361 = arith.select %357, %359, %360 : vector<24x128xi1>, vector<24x128xf32>
    %362 = arith.addf %355, %361 : vector<24x128xf32>
    %363 = vector.shape_cast %362 : vector<24x128xf32> to vector<1x24x128xf32>
    %364 = vector.broadcast %363 : vector<1x24x128xf32> to vector<4x24x128xf32>
    %365 = arith.mulf %346, %364 : vector<4x24x128xf32>
    %cst_119 = arith.constant dense<0.000000e+00> : vector<4x128xf32>
    %366 = vector.multi_reduction <add>, %365, %cst_119 [1] : vector<4x24x128xf32> to vector<4x128xf32>
    %367 = arith.addf %277, %366 : vector<4x128xf32>
    %c4_i32_120 = arith.constant 4 : i32
    %c0_121 = arith.constant 0 : index
    %c0_122 = arith.constant 0 : index
    %368 = arith.index_cast %c4_i32_120 : i32 to index
    %c0_123 = arith.constant 0 : index
    %369 = vector.load %arg4[%c0_121, %c0_122, %368, %c0_123] : memref<1x1x9x128xf32, #tpu.memory_space<vmem>>, vector<1x1x1x128xf32>
    %370 = vector.shape_cast %369 : vector<1x1x1x128xf32> to vector<1x128xf32>
    %c0_124 = arith.constant 0 : index
    %c0_125 = arith.constant 0 : index
    %371 = arith.index_cast %c4_i32_120 : i32 to index
    %c0_126 = arith.constant 0 : index
    %372 = vector.load %arg5[%c0_124, %c0_125, %371, %c0_126] : memref<1x1x9x128xf32, #tpu.memory_space<vmem>>, vector<1x1x1x128xf32>
    %373 = vector.shape_cast %372 : vector<1x1x1x128xf32> to vector<1x128xf32>
    %374 = arith.addi %6, %c4_i32_120 : i32
    %375 = arith.index_cast %374 : i32 to index
    %376 = memref.load %arg3[%375] : memref<72xf32, #tpu.memory_space<smem>>
    %377 = math.floor %370 : vector<1x128xf32>
    %378 = math.floor %373 : vector<1x128xf32>
    %379 = arith.subf %370, %377 : vector<1x128xf32>
    %380 = arith.subf %373, %378 : vector<1x128xf32>
    %381 = arith.fptosi %377 : vector<1x128xf32> to vector<1x128xi32>
    %382 = arith.fptosi %378 : vector<1x128xf32> to vector<1x128xi32>
    %c0_i32_127 = arith.constant 0 : i32
    %383 = vector.broadcast %c0_i32_127 : i32 to vector<1x128xi32>
    %384 = arith.cmpi sge, %381, %383 : vector<1x128xi32>
    %c18_i32_128 = arith.constant 18 : i32
    %385 = vector.broadcast %c18_i32_128 : i32 to vector<1x128xi32>
    %386 = arith.cmpi slt, %381, %385 : vector<1x128xi32>
    %387 = arith.andi %384, %386 : vector<1x128xi1>
    %c-1_i32_129 = arith.constant -1 : i32
    %388 = vector.broadcast %c-1_i32_129 : i32 to vector<1x128xi32>
    %389 = arith.cmpi sge, %381, %388 : vector<1x128xi32>
    %c17_i32_130 = arith.constant 17 : i32
    %390 = vector.broadcast %c17_i32_130 : i32 to vector<1x128xi32>
    %391 = arith.cmpi slt, %381, %390 : vector<1x128xi32>
    %392 = arith.andi %389, %391 : vector<1x128xi1>
    %c0_i32_131 = arith.constant 0 : i32
    %393 = vector.broadcast %c0_i32_131 : i32 to vector<1x128xi32>
    %394 = arith.cmpi sge, %382, %393 : vector<1x128xi32>
    %c18_i32_132 = arith.constant 18 : i32
    %395 = vector.broadcast %c18_i32_132 : i32 to vector<1x128xi32>
    %396 = arith.cmpi slt, %382, %395 : vector<1x128xi32>
    %397 = arith.andi %394, %396 : vector<1x128xi1>
    %c-1_i32_133 = arith.constant -1 : i32
    %398 = vector.broadcast %c-1_i32_133 : i32 to vector<1x128xi32>
    %399 = arith.cmpi sge, %382, %398 : vector<1x128xi32>
    %c17_i32_134 = arith.constant 17 : i32
    %400 = vector.broadcast %c17_i32_134 : i32 to vector<1x128xi32>
    %401 = arith.cmpi slt, %382, %400 : vector<1x128xi32>
    %402 = arith.andi %399, %401 : vector<1x128xi1>
    %cst_135 = arith.constant 1.000000e+00 : f32
    %403 = vector.broadcast %cst_135 : f32 to vector<1x128xf32>
    %404 = arith.subf %403, %379 : vector<1x128xf32>
    %405 = vector.broadcast %376 : f32 to vector<1x128xf32>
    %406 = arith.mulf %404, %405 : vector<1x128xf32>
    %cst_136 = arith.constant 0.000000e+00 : f32
    %407 = vector.broadcast %cst_136 : f32 to vector<1x128xf32>
    %408 = arith.select %387, %406, %407 : vector<1x128xi1>, vector<1x128xf32>
    %409 = vector.broadcast %376 : f32 to vector<1x128xf32>
    %410 = arith.mulf %379, %409 : vector<1x128xf32>
    %cst_137 = arith.constant 0.000000e+00 : f32
    %411 = vector.broadcast %cst_137 : f32 to vector<1x128xf32>
    %412 = arith.select %392, %410, %411 : vector<1x128xi1>, vector<1x128xf32>
    %cst_138 = arith.constant 1.000000e+00 : f32
    %413 = vector.broadcast %cst_138 : f32 to vector<1x128xf32>
    %414 = arith.subf %413, %380 : vector<1x128xf32>
    %cst_139 = arith.constant 0.000000e+00 : f32
    %415 = vector.broadcast %cst_139 : f32 to vector<1x128xf32>
    %416 = arith.select %397, %414, %415 : vector<1x128xi1>, vector<1x128xf32>
    %cst_140 = arith.constant 0.000000e+00 : f32
    %417 = vector.broadcast %cst_140 : f32 to vector<1x128xf32>
    %418 = arith.select %402, %380, %417 : vector<1x128xi1>, vector<1x128xf32>
    %419 = vector.broadcast %2 : vector<24x1xi32> to vector<24x128xi32>
    %420 = vector.broadcast %381 : vector<1x128xi32> to vector<24x128xi32>
    %421 = arith.subi %419, %420 : vector<24x128xi32>
    %c0_i32_141 = arith.constant 0 : i32
    %422 = vector.broadcast %c0_i32_141 : i32 to vector<24x128xi32>
    %423 = arith.cmpi eq, %421, %422 : vector<24x128xi32>
    %cst_142 = arith.constant 0.000000e+00 : f32
    %424 = vector.shape_cast %408 : vector<1x128xf32> to vector<1x128xf32>
    %425 = vector.broadcast %424 : vector<1x128xf32> to vector<24x128xf32>
    %426 = vector.broadcast %cst_142 : f32 to vector<24x128xf32>
    %427 = arith.select %423, %425, %426 : vector<24x128xi1>, vector<24x128xf32>
    %c1_i32_143 = arith.constant 1 : i32
    %428 = vector.broadcast %c1_i32_143 : i32 to vector<24x128xi32>
    %429 = arith.cmpi eq, %421, %428 : vector<24x128xi32>
    %cst_144 = arith.constant 0.000000e+00 : f32
    %430 = vector.shape_cast %412 : vector<1x128xf32> to vector<1x128xf32>
    %431 = vector.broadcast %430 : vector<1x128xf32> to vector<24x128xf32>
    %432 = vector.broadcast %cst_144 : f32 to vector<24x128xf32>
    %433 = arith.select %429, %431, %432 : vector<24x128xi1>, vector<24x128xf32>
    %434 = arith.addf %427, %433 : vector<24x128xf32>
    %cst_145 = arith.constant dense<0.000000e+00> : vector<96x128xf32>
    %435 = tpu.matmul %1, %434, %cst_145 {dimension_numbers = #tpu.dot_dimension_numbers<[1], [0], [0], [1], [0, 0, 1, 1], [], []>} : vector<96x24xf32>, vector<24x128xf32>, vector<96x128xf32> -> vector<96x128xf32>
    %436 = vector.shape_cast %435 : vector<96x128xf32> to vector<4x24x128xf32>
    %437 = vector.broadcast %3 : vector<24x1xi32> to vector<24x128xi32>
    %438 = vector.broadcast %382 : vector<1x128xi32> to vector<24x128xi32>
    %439 = arith.subi %437, %438 : vector<24x128xi32>
    %c0_i32_146 = arith.constant 0 : i32
    %440 = vector.broadcast %c0_i32_146 : i32 to vector<24x128xi32>
    %441 = arith.cmpi eq, %439, %440 : vector<24x128xi32>
    %cst_147 = arith.constant 0.000000e+00 : f32
    %442 = vector.shape_cast %416 : vector<1x128xf32> to vector<1x128xf32>
    %443 = vector.broadcast %442 : vector<1x128xf32> to vector<24x128xf32>
    %444 = vector.broadcast %cst_147 : f32 to vector<24x128xf32>
    %445 = arith.select %441, %443, %444 : vector<24x128xi1>, vector<24x128xf32>
    %c1_i32_148 = arith.constant 1 : i32
    %446 = vector.broadcast %c1_i32_148 : i32 to vector<24x128xi32>
    %447 = arith.cmpi eq, %439, %446 : vector<24x128xi32>
    %cst_149 = arith.constant 0.000000e+00 : f32
    %448 = vector.shape_cast %418 : vector<1x128xf32> to vector<1x128xf32>
    %449 = vector.broadcast %448 : vector<1x128xf32> to vector<24x128xf32>
    %450 = vector.broadcast %cst_149 : f32 to vector<24x128xf32>
    %451 = arith.select %447, %449, %450 : vector<24x128xi1>, vector<24x128xf32>
    %452 = arith.addf %445, %451 : vector<24x128xf32>
    %453 = vector.shape_cast %452 : vector<24x128xf32> to vector<1x24x128xf32>
    %454 = vector.broadcast %453 : vector<1x24x128xf32> to vector<4x24x128xf32>
    %455 = arith.mulf %436, %454 : vector<4x24x128xf32>
    %cst_150 = arith.constant dense<0.000000e+00> : vector<4x128xf32>
    %456 = vector.multi_reduction <add>, %455, %cst_150 [1] : vector<4x24x128xf32> to vector<4x128xf32>
    %457 = arith.addf %367, %456 : vector<4x128xf32>
    %c5_i32 = arith.constant 5 : i32
    %c0_151 = arith.constant 0 : index
    %c0_152 = arith.constant 0 : index
    %458 = arith.index_cast %c5_i32 : i32 to index
    %c0_153 = arith.constant 0 : index
    %459 = vector.load %arg4[%c0_151, %c0_152, %458, %c0_153] : memref<1x1x9x128xf32, #tpu.memory_space<vmem>>, vector<1x1x1x128xf32>
    %460 = vector.shape_cast %459 : vector<1x1x1x128xf32> to vector<1x128xf32>
    %c0_154 = arith.constant 0 : index
    %c0_155 = arith.constant 0 : index
    %461 = arith.index_cast %c5_i32 : i32 to index
    %c0_156 = arith.constant 0 : index
    %462 = vector.load %arg5[%c0_154, %c0_155, %461, %c0_156] : memref<1x1x9x128xf32, #tpu.memory_space<vmem>>, vector<1x1x1x128xf32>
    %463 = vector.shape_cast %462 : vector<1x1x1x128xf32> to vector<1x128xf32>
    %464 = arith.addi %6, %c5_i32 : i32
    %465 = arith.index_cast %464 : i32 to index
    %466 = memref.load %arg3[%465] : memref<72xf32, #tpu.memory_space<smem>>
    %467 = math.floor %460 : vector<1x128xf32>
    %468 = math.floor %463 : vector<1x128xf32>
    %469 = arith.subf %460, %467 : vector<1x128xf32>
    %470 = arith.subf %463, %468 : vector<1x128xf32>
    %471 = arith.fptosi %467 : vector<1x128xf32> to vector<1x128xi32>
    %472 = arith.fptosi %468 : vector<1x128xf32> to vector<1x128xi32>
    %c0_i32_157 = arith.constant 0 : i32
    %473 = vector.broadcast %c0_i32_157 : i32 to vector<1x128xi32>
    %474 = arith.cmpi sge, %471, %473 : vector<1x128xi32>
    %c18_i32_158 = arith.constant 18 : i32
    %475 = vector.broadcast %c18_i32_158 : i32 to vector<1x128xi32>
    %476 = arith.cmpi slt, %471, %475 : vector<1x128xi32>
    %477 = arith.andi %474, %476 : vector<1x128xi1>
    %c-1_i32_159 = arith.constant -1 : i32
    %478 = vector.broadcast %c-1_i32_159 : i32 to vector<1x128xi32>
    %479 = arith.cmpi sge, %471, %478 : vector<1x128xi32>
    %c17_i32_160 = arith.constant 17 : i32
    %480 = vector.broadcast %c17_i32_160 : i32 to vector<1x128xi32>
    %481 = arith.cmpi slt, %471, %480 : vector<1x128xi32>
    %482 = arith.andi %479, %481 : vector<1x128xi1>
    %c0_i32_161 = arith.constant 0 : i32
    %483 = vector.broadcast %c0_i32_161 : i32 to vector<1x128xi32>
    %484 = arith.cmpi sge, %472, %483 : vector<1x128xi32>
    %c18_i32_162 = arith.constant 18 : i32
    %485 = vector.broadcast %c18_i32_162 : i32 to vector<1x128xi32>
    %486 = arith.cmpi slt, %472, %485 : vector<1x128xi32>
    %487 = arith.andi %484, %486 : vector<1x128xi1>
    %c-1_i32_163 = arith.constant -1 : i32
    %488 = vector.broadcast %c-1_i32_163 : i32 to vector<1x128xi32>
    %489 = arith.cmpi sge, %472, %488 : vector<1x128xi32>
    %c17_i32_164 = arith.constant 17 : i32
    %490 = vector.broadcast %c17_i32_164 : i32 to vector<1x128xi32>
    %491 = arith.cmpi slt, %472, %490 : vector<1x128xi32>
    %492 = arith.andi %489, %491 : vector<1x128xi1>
    %cst_165 = arith.constant 1.000000e+00 : f32
    %493 = vector.broadcast %cst_165 : f32 to vector<1x128xf32>
    %494 = arith.subf %493, %469 : vector<1x128xf32>
    %495 = vector.broadcast %466 : f32 to vector<1x128xf32>
    %496 = arith.mulf %494, %495 : vector<1x128xf32>
    %cst_166 = arith.constant 0.000000e+00 : f32
    %497 = vector.broadcast %cst_166 : f32 to vector<1x128xf32>
    %498 = arith.select %477, %496, %497 : vector<1x128xi1>, vector<1x128xf32>
    %499 = vector.broadcast %466 : f32 to vector<1x128xf32>
    %500 = arith.mulf %469, %499 : vector<1x128xf32>
    %cst_167 = arith.constant 0.000000e+00 : f32
    %501 = vector.broadcast %cst_167 : f32 to vector<1x128xf32>
    %502 = arith.select %482, %500, %501 : vector<1x128xi1>, vector<1x128xf32>
    %cst_168 = arith.constant 1.000000e+00 : f32
    %503 = vector.broadcast %cst_168 : f32 to vector<1x128xf32>
    %504 = arith.subf %503, %470 : vector<1x128xf32>
    %cst_169 = arith.constant 0.000000e+00 : f32
    %505 = vector.broadcast %cst_169 : f32 to vector<1x128xf32>
    %506 = arith.select %487, %504, %505 : vector<1x128xi1>, vector<1x128xf32>
    %cst_170 = arith.constant 0.000000e+00 : f32
    %507 = vector.broadcast %cst_170 : f32 to vector<1x128xf32>
    %508 = arith.select %492, %470, %507 : vector<1x128xi1>, vector<1x128xf32>
    %509 = vector.broadcast %2 : vector<24x1xi32> to vector<24x128xi32>
    %510 = vector.broadcast %471 : vector<1x128xi32> to vector<24x128xi32>
    %511 = arith.subi %509, %510 : vector<24x128xi32>
    %c0_i32_171 = arith.constant 0 : i32
    %512 = vector.broadcast %c0_i32_171 : i32 to vector<24x128xi32>
    %513 = arith.cmpi eq, %511, %512 : vector<24x128xi32>
    %cst_172 = arith.constant 0.000000e+00 : f32
    %514 = vector.shape_cast %498 : vector<1x128xf32> to vector<1x128xf32>
    %515 = vector.broadcast %514 : vector<1x128xf32> to vector<24x128xf32>
    %516 = vector.broadcast %cst_172 : f32 to vector<24x128xf32>
    %517 = arith.select %513, %515, %516 : vector<24x128xi1>, vector<24x128xf32>
    %c1_i32_173 = arith.constant 1 : i32
    %518 = vector.broadcast %c1_i32_173 : i32 to vector<24x128xi32>
    %519 = arith.cmpi eq, %511, %518 : vector<24x128xi32>
    %cst_174 = arith.constant 0.000000e+00 : f32
    %520 = vector.shape_cast %502 : vector<1x128xf32> to vector<1x128xf32>
    %521 = vector.broadcast %520 : vector<1x128xf32> to vector<24x128xf32>
    %522 = vector.broadcast %cst_174 : f32 to vector<24x128xf32>
    %523 = arith.select %519, %521, %522 : vector<24x128xi1>, vector<24x128xf32>
    %524 = arith.addf %517, %523 : vector<24x128xf32>
    %cst_175 = arith.constant dense<0.000000e+00> : vector<96x128xf32>
    %525 = tpu.matmul %1, %524, %cst_175 {dimension_numbers = #tpu.dot_dimension_numbers<[1], [0], [0], [1], [0, 0, 1, 1], [], []>} : vector<96x24xf32>, vector<24x128xf32>, vector<96x128xf32> -> vector<96x128xf32>
    %526 = vector.shape_cast %525 : vector<96x128xf32> to vector<4x24x128xf32>
    %527 = vector.broadcast %3 : vector<24x1xi32> to vector<24x128xi32>
    %528 = vector.broadcast %472 : vector<1x128xi32> to vector<24x128xi32>
    %529 = arith.subi %527, %528 : vector<24x128xi32>
    %c0_i32_176 = arith.constant 0 : i32
    %530 = vector.broadcast %c0_i32_176 : i32 to vector<24x128xi32>
    %531 = arith.cmpi eq, %529, %530 : vector<24x128xi32>
    %cst_177 = arith.constant 0.000000e+00 : f32
    %532 = vector.shape_cast %506 : vector<1x128xf32> to vector<1x128xf32>
    %533 = vector.broadcast %532 : vector<1x128xf32> to vector<24x128xf32>
    %534 = vector.broadcast %cst_177 : f32 to vector<24x128xf32>
    %535 = arith.select %531, %533, %534 : vector<24x128xi1>, vector<24x128xf32>
    %c1_i32_178 = arith.constant 1 : i32
    %536 = vector.broadcast %c1_i32_178 : i32 to vector<24x128xi32>
    %537 = arith.cmpi eq, %529, %536 : vector<24x128xi32>
    %cst_179 = arith.constant 0.000000e+00 : f32
    %538 = vector.shape_cast %508 : vector<1x128xf32> to vector<1x128xf32>
    %539 = vector.broadcast %538 : vector<1x128xf32> to vector<24x128xf32>
    %540 = vector.broadcast %cst_179 : f32 to vector<24x128xf32>
    %541 = arith.select %537, %539, %540 : vector<24x128xi1>, vector<24x128xf32>
    %542 = arith.addf %535, %541 : vector<24x128xf32>
    %543 = vector.shape_cast %542 : vector<24x128xf32> to vector<1x24x128xf32>
    %544 = vector.broadcast %543 : vector<1x24x128xf32> to vector<4x24x128xf32>
    %545 = arith.mulf %526, %544 : vector<4x24x128xf32>
    %cst_180 = arith.constant dense<0.000000e+00> : vector<4x128xf32>
    %546 = vector.multi_reduction <add>, %545, %cst_180 [1] : vector<4x24x128xf32> to vector<4x128xf32>
    %547 = arith.addf %457, %546 : vector<4x128xf32>
    %c6_i32 = arith.constant 6 : i32
    %c0_181 = arith.constant 0 : index
    %c0_182 = arith.constant 0 : index
    %548 = arith.index_cast %c6_i32 : i32 to index
    %c0_183 = arith.constant 0 : index
    %549 = vector.load %arg4[%c0_181, %c0_182, %548, %c0_183] : memref<1x1x9x128xf32, #tpu.memory_space<vmem>>, vector<1x1x1x128xf32>
    %550 = vector.shape_cast %549 : vector<1x1x1x128xf32> to vector<1x128xf32>
    %c0_184 = arith.constant 0 : index
    %c0_185 = arith.constant 0 : index
    %551 = arith.index_cast %c6_i32 : i32 to index
    %c0_186 = arith.constant 0 : index
    %552 = vector.load %arg5[%c0_184, %c0_185, %551, %c0_186] : memref<1x1x9x128xf32, #tpu.memory_space<vmem>>, vector<1x1x1x128xf32>
    %553 = vector.shape_cast %552 : vector<1x1x1x128xf32> to vector<1x128xf32>
    %554 = arith.addi %6, %c6_i32 : i32
    %555 = arith.index_cast %554 : i32 to index
    %556 = memref.load %arg3[%555] : memref<72xf32, #tpu.memory_space<smem>>
    %557 = math.floor %550 : vector<1x128xf32>
    %558 = math.floor %553 : vector<1x128xf32>
    %559 = arith.subf %550, %557 : vector<1x128xf32>
    %560 = arith.subf %553, %558 : vector<1x128xf32>
    %561 = arith.fptosi %557 : vector<1x128xf32> to vector<1x128xi32>
    %562 = arith.fptosi %558 : vector<1x128xf32> to vector<1x128xi32>
    %c0_i32_187 = arith.constant 0 : i32
    %563 = vector.broadcast %c0_i32_187 : i32 to vector<1x128xi32>
    %564 = arith.cmpi sge, %561, %563 : vector<1x128xi32>
    %c18_i32_188 = arith.constant 18 : i32
    %565 = vector.broadcast %c18_i32_188 : i32 to vector<1x128xi32>
    %566 = arith.cmpi slt, %561, %565 : vector<1x128xi32>
    %567 = arith.andi %564, %566 : vector<1x128xi1>
    %c-1_i32_189 = arith.constant -1 : i32
    %568 = vector.broadcast %c-1_i32_189 : i32 to vector<1x128xi32>
    %569 = arith.cmpi sge, %561, %568 : vector<1x128xi32>
    %c17_i32_190 = arith.constant 17 : i32
    %570 = vector.broadcast %c17_i32_190 : i32 to vector<1x128xi32>
    %571 = arith.cmpi slt, %561, %570 : vector<1x128xi32>
    %572 = arith.andi %569, %571 : vector<1x128xi1>
    %c0_i32_191 = arith.constant 0 : i32
    %573 = vector.broadcast %c0_i32_191 : i32 to vector<1x128xi32>
    %574 = arith.cmpi sge, %562, %573 : vector<1x128xi32>
    %c18_i32_192 = arith.constant 18 : i32
    %575 = vector.broadcast %c18_i32_192 : i32 to vector<1x128xi32>
    %576 = arith.cmpi slt, %562, %575 : vector<1x128xi32>
    %577 = arith.andi %574, %576 : vector<1x128xi1>
    %c-1_i32_193 = arith.constant -1 : i32
    %578 = vector.broadcast %c-1_i32_193 : i32 to vector<1x128xi32>
    %579 = arith.cmpi sge, %562, %578 : vector<1x128xi32>
    %c17_i32_194 = arith.constant 17 : i32
    %580 = vector.broadcast %c17_i32_194 : i32 to vector<1x128xi32>
    %581 = arith.cmpi slt, %562, %580 : vector<1x128xi32>
    %582 = arith.andi %579, %581 : vector<1x128xi1>
    %cst_195 = arith.constant 1.000000e+00 : f32
    %583 = vector.broadcast %cst_195 : f32 to vector<1x128xf32>
    %584 = arith.subf %583, %559 : vector<1x128xf32>
    %585 = vector.broadcast %556 : f32 to vector<1x128xf32>
    %586 = arith.mulf %584, %585 : vector<1x128xf32>
    %cst_196 = arith.constant 0.000000e+00 : f32
    %587 = vector.broadcast %cst_196 : f32 to vector<1x128xf32>
    %588 = arith.select %567, %586, %587 : vector<1x128xi1>, vector<1x128xf32>
    %589 = vector.broadcast %556 : f32 to vector<1x128xf32>
    %590 = arith.mulf %559, %589 : vector<1x128xf32>
    %cst_197 = arith.constant 0.000000e+00 : f32
    %591 = vector.broadcast %cst_197 : f32 to vector<1x128xf32>
    %592 = arith.select %572, %590, %591 : vector<1x128xi1>, vector<1x128xf32>
    %cst_198 = arith.constant 1.000000e+00 : f32
    %593 = vector.broadcast %cst_198 : f32 to vector<1x128xf32>
    %594 = arith.subf %593, %560 : vector<1x128xf32>
    %cst_199 = arith.constant 0.000000e+00 : f32
    %595 = vector.broadcast %cst_199 : f32 to vector<1x128xf32>
    %596 = arith.select %577, %594, %595 : vector<1x128xi1>, vector<1x128xf32>
    %cst_200 = arith.constant 0.000000e+00 : f32
    %597 = vector.broadcast %cst_200 : f32 to vector<1x128xf32>
    %598 = arith.select %582, %560, %597 : vector<1x128xi1>, vector<1x128xf32>
    %599 = vector.broadcast %2 : vector<24x1xi32> to vector<24x128xi32>
    %600 = vector.broadcast %561 : vector<1x128xi32> to vector<24x128xi32>
    %601 = arith.subi %599, %600 : vector<24x128xi32>
    %c0_i32_201 = arith.constant 0 : i32
    %602 = vector.broadcast %c0_i32_201 : i32 to vector<24x128xi32>
    %603 = arith.cmpi eq, %601, %602 : vector<24x128xi32>
    %cst_202 = arith.constant 0.000000e+00 : f32
    %604 = vector.shape_cast %588 : vector<1x128xf32> to vector<1x128xf32>
    %605 = vector.broadcast %604 : vector<1x128xf32> to vector<24x128xf32>
    %606 = vector.broadcast %cst_202 : f32 to vector<24x128xf32>
    %607 = arith.select %603, %605, %606 : vector<24x128xi1>, vector<24x128xf32>
    %c1_i32_203 = arith.constant 1 : i32
    %608 = vector.broadcast %c1_i32_203 : i32 to vector<24x128xi32>
    %609 = arith.cmpi eq, %601, %608 : vector<24x128xi32>
    %cst_204 = arith.constant 0.000000e+00 : f32
    %610 = vector.shape_cast %592 : vector<1x128xf32> to vector<1x128xf32>
    %611 = vector.broadcast %610 : vector<1x128xf32> to vector<24x128xf32>
    %612 = vector.broadcast %cst_204 : f32 to vector<24x128xf32>
    %613 = arith.select %609, %611, %612 : vector<24x128xi1>, vector<24x128xf32>
    %614 = arith.addf %607, %613 : vector<24x128xf32>
    %cst_205 = arith.constant dense<0.000000e+00> : vector<96x128xf32>
    %615 = tpu.matmul %1, %614, %cst_205 {dimension_numbers = #tpu.dot_dimension_numbers<[1], [0], [0], [1], [0, 0, 1, 1], [], []>} : vector<96x24xf32>, vector<24x128xf32>, vector<96x128xf32> -> vector<96x128xf32>
    %616 = vector.shape_cast %615 : vector<96x128xf32> to vector<4x24x128xf32>
    %617 = vector.broadcast %3 : vector<24x1xi32> to vector<24x128xi32>
    %618 = vector.broadcast %562 : vector<1x128xi32> to vector<24x128xi32>
    %619 = arith.subi %617, %618 : vector<24x128xi32>
    %c0_i32_206 = arith.constant 0 : i32
    %620 = vector.broadcast %c0_i32_206 : i32 to vector<24x128xi32>
    %621 = arith.cmpi eq, %619, %620 : vector<24x128xi32>
    %cst_207 = arith.constant 0.000000e+00 : f32
    %622 = vector.shape_cast %596 : vector<1x128xf32> to vector<1x128xf32>
    %623 = vector.broadcast %622 : vector<1x128xf32> to vector<24x128xf32>
    %624 = vector.broadcast %cst_207 : f32 to vector<24x128xf32>
    %625 = arith.select %621, %623, %624 : vector<24x128xi1>, vector<24x128xf32>
    %c1_i32_208 = arith.constant 1 : i32
    %626 = vector.broadcast %c1_i32_208 : i32 to vector<24x128xi32>
    %627 = arith.cmpi eq, %619, %626 : vector<24x128xi32>
    %cst_209 = arith.constant 0.000000e+00 : f32
    %628 = vector.shape_cast %598 : vector<1x128xf32> to vector<1x128xf32>
    %629 = vector.broadcast %628 : vector<1x128xf32> to vector<24x128xf32>
    %630 = vector.broadcast %cst_209 : f32 to vector<24x128xf32>
    %631 = arith.select %627, %629, %630 : vector<24x128xi1>, vector<24x128xf32>
    %632 = arith.addf %625, %631 : vector<24x128xf32>
    %633 = vector.shape_cast %632 : vector<24x128xf32> to vector<1x24x128xf32>
    %634 = vector.broadcast %633 : vector<1x24x128xf32> to vector<4x24x128xf32>
    %635 = arith.mulf %616, %634 : vector<4x24x128xf32>
    %cst_210 = arith.constant dense<0.000000e+00> : vector<4x128xf32>
    %636 = vector.multi_reduction <add>, %635, %cst_210 [1] : vector<4x24x128xf32> to vector<4x128xf32>
    %637 = arith.addf %547, %636 : vector<4x128xf32>
    %c7_i32 = arith.constant 7 : i32
    %c0_211 = arith.constant 0 : index
    %c0_212 = arith.constant 0 : index
    %638 = arith.index_cast %c7_i32 : i32 to index
    %c0_213 = arith.constant 0 : index
    %639 = vector.load %arg4[%c0_211, %c0_212, %638, %c0_213] : memref<1x1x9x128xf32, #tpu.memory_space<vmem>>, vector<1x1x1x128xf32>
    %640 = vector.shape_cast %639 : vector<1x1x1x128xf32> to vector<1x128xf32>
    %c0_214 = arith.constant 0 : index
    %c0_215 = arith.constant 0 : index
    %641 = arith.index_cast %c7_i32 : i32 to index
    %c0_216 = arith.constant 0 : index
    %642 = vector.load %arg5[%c0_214, %c0_215, %641, %c0_216] : memref<1x1x9x128xf32, #tpu.memory_space<vmem>>, vector<1x1x1x128xf32>
    %643 = vector.shape_cast %642 : vector<1x1x1x128xf32> to vector<1x128xf32>
    %644 = arith.addi %6, %c7_i32 : i32
    %645 = arith.index_cast %644 : i32 to index
    %646 = memref.load %arg3[%645] : memref<72xf32, #tpu.memory_space<smem>>
    %647 = math.floor %640 : vector<1x128xf32>
    %648 = math.floor %643 : vector<1x128xf32>
    %649 = arith.subf %640, %647 : vector<1x128xf32>
    %650 = arith.subf %643, %648 : vector<1x128xf32>
    %651 = arith.fptosi %647 : vector<1x128xf32> to vector<1x128xi32>
    %652 = arith.fptosi %648 : vector<1x128xf32> to vector<1x128xi32>
    %c0_i32_217 = arith.constant 0 : i32
    %653 = vector.broadcast %c0_i32_217 : i32 to vector<1x128xi32>
    %654 = arith.cmpi sge, %651, %653 : vector<1x128xi32>
    %c18_i32_218 = arith.constant 18 : i32
    %655 = vector.broadcast %c18_i32_218 : i32 to vector<1x128xi32>
    %656 = arith.cmpi slt, %651, %655 : vector<1x128xi32>
    %657 = arith.andi %654, %656 : vector<1x128xi1>
    %c-1_i32_219 = arith.constant -1 : i32
    %658 = vector.broadcast %c-1_i32_219 : i32 to vector<1x128xi32>
    %659 = arith.cmpi sge, %651, %658 : vector<1x128xi32>
    %c17_i32_220 = arith.constant 17 : i32
    %660 = vector.broadcast %c17_i32_220 : i32 to vector<1x128xi32>
    %661 = arith.cmpi slt, %651, %660 : vector<1x128xi32>
    %662 = arith.andi %659, %661 : vector<1x128xi1>
    %c0_i32_221 = arith.constant 0 : i32
    %663 = vector.broadcast %c0_i32_221 : i32 to vector<1x128xi32>
    %664 = arith.cmpi sge, %652, %663 : vector<1x128xi32>
    %c18_i32_222 = arith.constant 18 : i32
    %665 = vector.broadcast %c18_i32_222 : i32 to vector<1x128xi32>
    %666 = arith.cmpi slt, %652, %665 : vector<1x128xi32>
    %667 = arith.andi %664, %666 : vector<1x128xi1>
    %c-1_i32_223 = arith.constant -1 : i32
    %668 = vector.broadcast %c-1_i32_223 : i32 to vector<1x128xi32>
    %669 = arith.cmpi sge, %652, %668 : vector<1x128xi32>
    %c17_i32_224 = arith.constant 17 : i32
    %670 = vector.broadcast %c17_i32_224 : i32 to vector<1x128xi32>
    %671 = arith.cmpi slt, %652, %670 : vector<1x128xi32>
    %672 = arith.andi %669, %671 : vector<1x128xi1>
    %cst_225 = arith.constant 1.000000e+00 : f32
    %673 = vector.broadcast %cst_225 : f32 to vector<1x128xf32>
    %674 = arith.subf %673, %649 : vector<1x128xf32>
    %675 = vector.broadcast %646 : f32 to vector<1x128xf32>
    %676 = arith.mulf %674, %675 : vector<1x128xf32>
    %cst_226 = arith.constant 0.000000e+00 : f32
    %677 = vector.broadcast %cst_226 : f32 to vector<1x128xf32>
    %678 = arith.select %657, %676, %677 : vector<1x128xi1>, vector<1x128xf32>
    %679 = vector.broadcast %646 : f32 to vector<1x128xf32>
    %680 = arith.mulf %649, %679 : vector<1x128xf32>
    %cst_227 = arith.constant 0.000000e+00 : f32
    %681 = vector.broadcast %cst_227 : f32 to vector<1x128xf32>
    %682 = arith.select %662, %680, %681 : vector<1x128xi1>, vector<1x128xf32>
    %cst_228 = arith.constant 1.000000e+00 : f32
    %683 = vector.broadcast %cst_228 : f32 to vector<1x128xf32>
    %684 = arith.subf %683, %650 : vector<1x128xf32>
    %cst_229 = arith.constant 0.000000e+00 : f32
    %685 = vector.broadcast %cst_229 : f32 to vector<1x128xf32>
    %686 = arith.select %667, %684, %685 : vector<1x128xi1>, vector<1x128xf32>
    %cst_230 = arith.constant 0.000000e+00 : f32
    %687 = vector.broadcast %cst_230 : f32 to vector<1x128xf32>
    %688 = arith.select %672, %650, %687 : vector<1x128xi1>, vector<1x128xf32>
    %689 = vector.broadcast %2 : vector<24x1xi32> to vector<24x128xi32>
    %690 = vector.broadcast %651 : vector<1x128xi32> to vector<24x128xi32>
    %691 = arith.subi %689, %690 : vector<24x128xi32>
    %c0_i32_231 = arith.constant 0 : i32
    %692 = vector.broadcast %c0_i32_231 : i32 to vector<24x128xi32>
    %693 = arith.cmpi eq, %691, %692 : vector<24x128xi32>
    %cst_232 = arith.constant 0.000000e+00 : f32
    %694 = vector.shape_cast %678 : vector<1x128xf32> to vector<1x128xf32>
    %695 = vector.broadcast %694 : vector<1x128xf32> to vector<24x128xf32>
    %696 = vector.broadcast %cst_232 : f32 to vector<24x128xf32>
    %697 = arith.select %693, %695, %696 : vector<24x128xi1>, vector<24x128xf32>
    %c1_i32_233 = arith.constant 1 : i32
    %698 = vector.broadcast %c1_i32_233 : i32 to vector<24x128xi32>
    %699 = arith.cmpi eq, %691, %698 : vector<24x128xi32>
    %cst_234 = arith.constant 0.000000e+00 : f32
    %700 = vector.shape_cast %682 : vector<1x128xf32> to vector<1x128xf32>
    %701 = vector.broadcast %700 : vector<1x128xf32> to vector<24x128xf32>
    %702 = vector.broadcast %cst_234 : f32 to vector<24x128xf32>
    %703 = arith.select %699, %701, %702 : vector<24x128xi1>, vector<24x128xf32>
    %704 = arith.addf %697, %703 : vector<24x128xf32>
    %cst_235 = arith.constant dense<0.000000e+00> : vector<96x128xf32>
    %705 = tpu.matmul %1, %704, %cst_235 {dimension_numbers = #tpu.dot_dimension_numbers<[1], [0], [0], [1], [0, 0, 1, 1], [], []>} : vector<96x24xf32>, vector<24x128xf32>, vector<96x128xf32> -> vector<96x128xf32>
    %706 = vector.shape_cast %705 : vector<96x128xf32> to vector<4x24x128xf32>
    %707 = vector.broadcast %3 : vector<24x1xi32> to vector<24x128xi32>
    %708 = vector.broadcast %652 : vector<1x128xi32> to vector<24x128xi32>
    %709 = arith.subi %707, %708 : vector<24x128xi32>
    %c0_i32_236 = arith.constant 0 : i32
    %710 = vector.broadcast %c0_i32_236 : i32 to vector<24x128xi32>
    %711 = arith.cmpi eq, %709, %710 : vector<24x128xi32>
    %cst_237 = arith.constant 0.000000e+00 : f32
    %712 = vector.shape_cast %686 : vector<1x128xf32> to vector<1x128xf32>
    %713 = vector.broadcast %712 : vector<1x128xf32> to vector<24x128xf32>
    %714 = vector.broadcast %cst_237 : f32 to vector<24x128xf32>
    %715 = arith.select %711, %713, %714 : vector<24x128xi1>, vector<24x128xf32>
    %c1_i32_238 = arith.constant 1 : i32
    %716 = vector.broadcast %c1_i32_238 : i32 to vector<24x128xi32>
    %717 = arith.cmpi eq, %709, %716 : vector<24x128xi32>
    %cst_239 = arith.constant 0.000000e+00 : f32
    %718 = vector.shape_cast %688 : vector<1x128xf32> to vector<1x128xf32>
    %719 = vector.broadcast %718 : vector<1x128xf32> to vector<24x128xf32>
    %720 = vector.broadcast %cst_239 : f32 to vector<24x128xf32>
    %721 = arith.select %717, %719, %720 : vector<24x128xi1>, vector<24x128xf32>
    %722 = arith.addf %715, %721 : vector<24x128xf32>
    %723 = vector.shape_cast %722 : vector<24x128xf32> to vector<1x24x128xf32>
    %724 = vector.broadcast %723 : vector<1x24x128xf32> to vector<4x24x128xf32>
    %725 = arith.mulf %706, %724 : vector<4x24x128xf32>
    %cst_240 = arith.constant dense<0.000000e+00> : vector<4x128xf32>
    %726 = vector.multi_reduction <add>, %725, %cst_240 [1] : vector<4x24x128xf32> to vector<4x128xf32>
    %727 = arith.addf %637, %726 : vector<4x128xf32>
    %c8_i32 = arith.constant 8 : i32
    %c0_241 = arith.constant 0 : index
    %c0_242 = arith.constant 0 : index
    %728 = arith.index_cast %c8_i32 : i32 to index
    %c0_243 = arith.constant 0 : index
    %729 = vector.load %arg4[%c0_241, %c0_242, %728, %c0_243] : memref<1x1x9x128xf32, #tpu.memory_space<vmem>>, vector<1x1x1x128xf32>
    %730 = vector.shape_cast %729 : vector<1x1x1x128xf32> to vector<1x128xf32>
    %c0_244 = arith.constant 0 : index
    %c0_245 = arith.constant 0 : index
    %731 = arith.index_cast %c8_i32 : i32 to index
    %c0_246 = arith.constant 0 : index
    %732 = vector.load %arg5[%c0_244, %c0_245, %731, %c0_246] : memref<1x1x9x128xf32, #tpu.memory_space<vmem>>, vector<1x1x1x128xf32>
    %733 = vector.shape_cast %732 : vector<1x1x1x128xf32> to vector<1x128xf32>
    %734 = arith.addi %6, %c8_i32 : i32
    %735 = arith.index_cast %734 : i32 to index
    %736 = memref.load %arg3[%735] : memref<72xf32, #tpu.memory_space<smem>>
    %737 = math.floor %730 : vector<1x128xf32>
    %738 = math.floor %733 : vector<1x128xf32>
    %739 = arith.subf %730, %737 : vector<1x128xf32>
    %740 = arith.subf %733, %738 : vector<1x128xf32>
    %741 = arith.fptosi %737 : vector<1x128xf32> to vector<1x128xi32>
    %742 = arith.fptosi %738 : vector<1x128xf32> to vector<1x128xi32>
    %c0_i32_247 = arith.constant 0 : i32
    %743 = vector.broadcast %c0_i32_247 : i32 to vector<1x128xi32>
    %744 = arith.cmpi sge, %741, %743 : vector<1x128xi32>
    %c18_i32_248 = arith.constant 18 : i32
    %745 = vector.broadcast %c18_i32_248 : i32 to vector<1x128xi32>
    %746 = arith.cmpi slt, %741, %745 : vector<1x128xi32>
    %747 = arith.andi %744, %746 : vector<1x128xi1>
    %c-1_i32_249 = arith.constant -1 : i32
    %748 = vector.broadcast %c-1_i32_249 : i32 to vector<1x128xi32>
    %749 = arith.cmpi sge, %741, %748 : vector<1x128xi32>
    %c17_i32_250 = arith.constant 17 : i32
    %750 = vector.broadcast %c17_i32_250 : i32 to vector<1x128xi32>
    %751 = arith.cmpi slt, %741, %750 : vector<1x128xi32>
    %752 = arith.andi %749, %751 : vector<1x128xi1>
    %c0_i32_251 = arith.constant 0 : i32
    %753 = vector.broadcast %c0_i32_251 : i32 to vector<1x128xi32>
    %754 = arith.cmpi sge, %742, %753 : vector<1x128xi32>
    %c18_i32_252 = arith.constant 18 : i32
    %755 = vector.broadcast %c18_i32_252 : i32 to vector<1x128xi32>
    %756 = arith.cmpi slt, %742, %755 : vector<1x128xi32>
    %757 = arith.andi %754, %756 : vector<1x128xi1>
    %c-1_i32_253 = arith.constant -1 : i32
    %758 = vector.broadcast %c-1_i32_253 : i32 to vector<1x128xi32>
    %759 = arith.cmpi sge, %742, %758 : vector<1x128xi32>
    %c17_i32_254 = arith.constant 17 : i32
    %760 = vector.broadcast %c17_i32_254 : i32 to vector<1x128xi32>
    %761 = arith.cmpi slt, %742, %760 : vector<1x128xi32>
    %762 = arith.andi %759, %761 : vector<1x128xi1>
    %cst_255 = arith.constant 1.000000e+00 : f32
    %763 = vector.broadcast %cst_255 : f32 to vector<1x128xf32>
    %764 = arith.subf %763, %739 : vector<1x128xf32>
    %765 = vector.broadcast %736 : f32 to vector<1x128xf32>
    %766 = arith.mulf %764, %765 : vector<1x128xf32>
    %cst_256 = arith.constant 0.000000e+00 : f32
    %767 = vector.broadcast %cst_256 : f32 to vector<1x128xf32>
    %768 = arith.select %747, %766, %767 : vector<1x128xi1>, vector<1x128xf32>
    %769 = vector.broadcast %736 : f32 to vector<1x128xf32>
    %770 = arith.mulf %739, %769 : vector<1x128xf32>
    %cst_257 = arith.constant 0.000000e+00 : f32
    %771 = vector.broadcast %cst_257 : f32 to vector<1x128xf32>
    %772 = arith.select %752, %770, %771 : vector<1x128xi1>, vector<1x128xf32>
    %cst_258 = arith.constant 1.000000e+00 : f32
    %773 = vector.broadcast %cst_258 : f32 to vector<1x128xf32>
    %774 = arith.subf %773, %740 : vector<1x128xf32>
    %cst_259 = arith.constant 0.000000e+00 : f32
    %775 = vector.broadcast %cst_259 : f32 to vector<1x128xf32>
    %776 = arith.select %757, %774, %775 : vector<1x128xi1>, vector<1x128xf32>
    %cst_260 = arith.constant 0.000000e+00 : f32
    %777 = vector.broadcast %cst_260 : f32 to vector<1x128xf32>
    %778 = arith.select %762, %740, %777 : vector<1x128xi1>, vector<1x128xf32>
    %779 = vector.broadcast %2 : vector<24x1xi32> to vector<24x128xi32>
    %780 = vector.broadcast %741 : vector<1x128xi32> to vector<24x128xi32>
    %781 = arith.subi %779, %780 : vector<24x128xi32>
    %c0_i32_261 = arith.constant 0 : i32
    %782 = vector.broadcast %c0_i32_261 : i32 to vector<24x128xi32>
    %783 = arith.cmpi eq, %781, %782 : vector<24x128xi32>
    %cst_262 = arith.constant 0.000000e+00 : f32
    %784 = vector.shape_cast %768 : vector<1x128xf32> to vector<1x128xf32>
    %785 = vector.broadcast %784 : vector<1x128xf32> to vector<24x128xf32>
    %786 = vector.broadcast %cst_262 : f32 to vector<24x128xf32>
    %787 = arith.select %783, %785, %786 : vector<24x128xi1>, vector<24x128xf32>
    %c1_i32_263 = arith.constant 1 : i32
    %788 = vector.broadcast %c1_i32_263 : i32 to vector<24x128xi32>
    %789 = arith.cmpi eq, %781, %788 : vector<24x128xi32>
    %cst_264 = arith.constant 0.000000e+00 : f32
    %790 = vector.shape_cast %772 : vector<1x128xf32> to vector<1x128xf32>
    %791 = vector.broadcast %790 : vector<1x128xf32> to vector<24x128xf32>
    %792 = vector.broadcast %cst_264 : f32 to vector<24x128xf32>
    %793 = arith.select %789, %791, %792 : vector<24x128xi1>, vector<24x128xf32>
    %794 = arith.addf %787, %793 : vector<24x128xf32>
    %cst_265 = arith.constant dense<0.000000e+00> : vector<96x128xf32>
    %795 = tpu.matmul %1, %794, %cst_265 {dimension_numbers = #tpu.dot_dimension_numbers<[1], [0], [0], [1], [0, 0, 1, 1], [], []>} : vector<96x24xf32>, vector<24x128xf32>, vector<96x128xf32> -> vector<96x128xf32>
    %796 = vector.shape_cast %795 : vector<96x128xf32> to vector<4x24x128xf32>
    %797 = vector.broadcast %3 : vector<24x1xi32> to vector<24x128xi32>
    %798 = vector.broadcast %742 : vector<1x128xi32> to vector<24x128xi32>
    %799 = arith.subi %797, %798 : vector<24x128xi32>
    %c0_i32_266 = arith.constant 0 : i32
    %800 = vector.broadcast %c0_i32_266 : i32 to vector<24x128xi32>
    %801 = arith.cmpi eq, %799, %800 : vector<24x128xi32>
    %cst_267 = arith.constant 0.000000e+00 : f32
    %802 = vector.shape_cast %776 : vector<1x128xf32> to vector<1x128xf32>
    %803 = vector.broadcast %802 : vector<1x128xf32> to vector<24x128xf32>
    %804 = vector.broadcast %cst_267 : f32 to vector<24x128xf32>
    %805 = arith.select %801, %803, %804 : vector<24x128xi1>, vector<24x128xf32>
    %c1_i32_268 = arith.constant 1 : i32
    %806 = vector.broadcast %c1_i32_268 : i32 to vector<24x128xi32>
    %807 = arith.cmpi eq, %799, %806 : vector<24x128xi32>
    %cst_269 = arith.constant 0.000000e+00 : f32
    %808 = vector.shape_cast %778 : vector<1x128xf32> to vector<1x128xf32>
    %809 = vector.broadcast %808 : vector<1x128xf32> to vector<24x128xf32>
    %810 = vector.broadcast %cst_269 : f32 to vector<24x128xf32>
    %811 = arith.select %807, %809, %810 : vector<24x128xi1>, vector<24x128xf32>
    %812 = arith.addf %805, %811 : vector<24x128xf32>
    %813 = vector.shape_cast %812 : vector<24x128xf32> to vector<1x24x128xf32>
    %814 = vector.broadcast %813 : vector<1x24x128xf32> to vector<4x24x128xf32>
    %815 = arith.mulf %796, %814 : vector<4x24x128xf32>
    %cst_270 = arith.constant dense<0.000000e+00> : vector<4x128xf32>
    %816 = vector.multi_reduction <add>, %815, %cst_270 [1] : vector<4x24x128xf32> to vector<4x128xf32>
    %817 = arith.addf %727, %816 : vector<4x128xf32>
    %c9_i32_271 = arith.constant 9 : i32
    %c0_272 = arith.constant 0 : index
    %c0_273 = arith.constant 0 : index
    %c0_274 = arith.constant 0 : index
    %c0_275 = arith.constant 0 : index
    %818 = vector.load %arg7[%c0_272, %c0_273, %c0_274, %c0_275] : memref<1x1x4x128xf32, #tpu.memory_space<vmem>>, vector<1x1x4x128xf32>
    %819 = vector.shape_cast %818 : vector<1x1x4x128xf32> to vector<4x128xf32>
    %820 = vector.shape_cast %817 : vector<4x128xf32> to vector<1x1x4x128xf32>
    tpu.vector_store %arg7[%c0_272, %c0_273, %c0_274, %c0_275], %820 {strides = array<i32>} : memref<1x1x4x128xf32, #tpu.memory_space<vmem>>, vector<1x1x4x128xf32>,
    return
  }
  func.func @transform_0(%arg0: i32, %arg1: i32, %arg2: i32, %arg3: memref<72xf32, #tpu.memory_space<smem>>) -> (i32, i32, i32, i32) {
    %c0_i32 = arith.constant 0 : i32
    %c0_i32_0 = arith.constant 0 : i32
    return %arg0, %arg1, %c0_i32, %arg2 : i32, i32, i32, i32
  }
  func.func @transform_1(%arg0: i32, %arg1: i32, %arg2: i32, %arg3: memref<72xf32, #tpu.memory_space<smem>>) -> (i32, i32, i32, i32) {
    %c0_i32 = arith.constant 0 : i32
    %c0_i32_0 = arith.constant 0 : i32
    return %arg0, %arg1, %c0_i32, %arg2 : i32, i32, i32, i32
  }
  func.func @transform_2(%arg0: i32, %arg1: i32, %arg2: i32, %arg3: memref<72xf32, #tpu.memory_space<smem>>) -> (i32, i32, i32, i32) {
    %c0_i32 = arith.constant 0 : i32
    %c0_i32_0 = arith.constant 0 : i32
    %c0_i32_1 = arith.constant 0 : i32
    return %arg0, %arg1, %c0_i32, %c0_i32_0 : i32, i32, i32, i32
  }
  func.func @transform_3(%arg0: i32, %arg1: i32, %arg2: i32, %arg3: memref<72xf32, #tpu.memory_space<smem>>) -> (i32, i32, i32, i32) {
    %c0_i32 = arith.constant 0 : i32
    %c0_i32_0 = arith.constant 0 : i32
    return %arg0, %arg1, %c0_i32, %arg2 : i32, i32, i32, i32
  }
}

</mosaic_0001>

<llo_original>
// kernel: tpu_custom_call.1
$region0: #{tpu_custom_call.1}
  #allocation0 [shape = 'u32[]', space=smem, size = 0x4, offset = 0x4, fixed_abs, tag = 'smem constant byte address 0x4 - core index']
  #allocation1 [shape = 'u32[72,128]{1,0:T(1,128)}', space=vmem, size = 0x9000, scoped, tag = 'internal scratch']
  #allocation2 [shape = 's32[1]{0}', space=sflag, size = 0x4, scoped, tag = 'scoped memory for tpu_custom_call.1']
  #allocation3 [shape = 'u8[512]{0}', space=smem, size = 0x200, scoped, tag = 'prefetched SMEM operand 0']
  %s0 = inlined_call_operand.vmem [shape: f32[72], index: 0, kind: input, shape index: {}]
  %s1 = inlined_call_operand.vmem [shape: f32[2,4,9,256], index: 1, kind: input, shape index: {}]
  %s2 = inlined_call_operand.vmem [shape: f32[2,4,9,256], index: 2, kind: input, shape index: {}]
  %s3 = inlined_call_operand.vmem [shape: f32[2,4,96,24], index: 3, kind: input, shape index: {}]
  %s4 = inlined_call_operand.hbm [shape: f32[2,4,4,256], index: 4, kind: output, shape index: {}]
  %s5 = sld [smem:[#allocation0]]
  $region121: #{tpu_custom_call.1} parent=0
    _
  %s7 = ssub.s32 1, %s5
  %s8 = scalar_select 0, %s7, %s5
  %s10 = sshll.u32 %s0, 4
  %s11 = int_to_ptr.vmem [resolvable:$true] %s10
  %13 = dma.vmem_to_smem %s11, 16, [#allocation3], [#allocation2]
  %15 = dma.done [#allocation2], 16
  %16 = sfence
  $region1: #{tpu_custom_call.1} parent=0
    #allocation4 [shape = 'u8[16384]{0}', space=vmem, size = 0x4000, scoped, tag = 'input window, operand 1']
    #allocation5 [shape = 'u8[16384]{0}', space=vmem, size = 0x4000, scoped, tag = 'input window, operand 2']
    #allocation6 [shape = 'u8[4096]{0}', space=vmem, size = 0x1000, scoped, tag = 'output window, operand 0']
    #allocation7 [shape = 's32[2]{0}', space=sflag, size = 0x8, scoped, tag = 'scoped memory for tpu_custom_call.1']
    %17 = vsyncpa [#allocation7], 0
    %s18 = scalar_lea.sflag [#allocation7], 1
    %19 = vsyncpa %s18, 0
    loop: start=0, step=1, limit=18
    $region2: #{tpu_custom_call.1} parent=1 // loop_pre_header
      _
    $region3: #{tpu_custom_call.1} parent=1 // loop_header
      %s21 = sphi 0, %s25
      %p22 = scmp.ge.s32.totalorder %s21, 18
      %s28 = sphi 0, %s47
      %s29 = sphi 0, %s43
      %s30 = sphi 0, %s39
      %s31 = sphi 0, %s28
      %s32 = sphi 0, %s29
      %s33 = sphi 0, %s30
      %s34 = sphi 0, %s31
      %s35 = sphi 0, %s32
      %s36 = sphi 0, %s33
      %s54 = sphi 0, %s56
      %s57 = sphi 0, %s54
      %s58 = sphi 0, %s57
      %s74 = sphi 0, %s58
      %s84 = sphi 0, %s86
      %s87 = sphi 0, %s84
      %s88 = sphi 0, %s87
      %s104 = sphi 0, %s88
      %s112 = sphi 0, %s114
      %s115 = sphi 0, %s112
      %s116 = sphi 0, %s115
      %s132 = sphi 0, %s116
      %s142 = sphi 0, %s144
      %s145 = sphi 0, %s142
      %s146 = sphi 0, %s145
      %s162 = sphi 0, %s146
    $region4: #{tpu_custom_call.1} parent=1 // loop_header_branch
      %24 = sbr.rel (%p22) target = $region8
    $region5: #{tpu_custom_call.1} parent=1 // loop_body
      %s26 = ssub.s32 %s21, 1
      %s27 = ssub.s32 %s21, 2
      %s37 = sadd.s32 1, %s30
      %p38 = scmp.ge.s32.totalorder %s37, 2
      %s39 = scalar_select %p38, 0, %s37
      %s40 = sadd.s32 1, %s29
      %s41 = scalar_select %p38, %s40, %s29
      %p42 = scmp.ge.s32.totalorder %s41, 4
      %s43 = scalar_select %p42, 0, %s41
      %s44 = sadd.s32 1, %s28
      %s45 = scalar_select %p42, %s44, %s28
      %p46 = scmp.ge.s32.totalorder %s45, 2
      %s47 = scalar_select %p46, 0, %s45
      %s48 = ssub.s32 %s28, %s47
      %s49 = ssub.s32 %s29, %s43
      %s50 = sor.u32 %s48, %s49
      %s51 = ssub.s32 %s30, %s39
      %s52 = sor.u32 %s50, %s51
      %p53 = scmp.eq.s32.totalorder %s52, 0
      %s55 = sadd.s32 %s54, 1
      %s56 = scalar_select %p53, %s54, %s55
      %p59 = pneg %p53
      %p60 = scmp.eq.s32.totalorder %s21, 15
      %p61 = por %p59, %p60
      %p62 = scmp.ne.s32.totalorder %s54, %s57
      %p63 = scmp.eq.s32.totalorder %s21, 0
      %p64 = por %p62, %p63
      %p65 = scmp.ne.s32.totalorder %s54, %s57
      %p66 = scmp.eq.s32.totalorder %s26, 15
      %p67 = por %p65, %p66
      %p68 = scmp.ne.s32.totalorder %s57, %s58
      %p69 = scmp.eq.s32.totalorder %s26, 0
      %p70 = por %p68, %p69
      %p71 = scmp.ne.s32.totalorder %s57, %s58
      %p72 = scmp.eq.s32.totalorder %s27, 15
      %p73 = por %p71, %p72
      %p75 = scmp.ne.s32.totalorder %s58, %s74
      %p76 = scmp.eq.s32.totalorder %s27, 0
      %p77 = por %p75, %p76
      %s78 = ssub.s32 %s28, %s47
      %s79 = ssub.s32 %s29, %s43
      %s80 = sor.u32 %s78, %s79
      %s81 = ssub.s32 %s30, %s39
      %s82 = sor.u32 %s80, %s81
      %p83 = scmp.eq.s32.totalorder %s82, 0
      %s85 = sadd.s32 %s84, 1
      %s86 = scalar_select %p83, %s84, %s85
      %p89 = pneg %p83
      %p90 = scmp.eq.s32.totalorder %s21, 15
      %p91 = por %p89, %p90
      %p92 = scmp.ne.s32.totalorder %s84, %s87
      %p93 = scmp.eq.s32.totalorder %s21, 0
      %p94 = por %p92, %p93
      %p95 = scmp.ne.s32.totalorder %s84, %s87
      %p96 = scmp.eq.s32.totalorder %s26, 15
      %p97 = por %p95, %p96
      %p98 = scmp.ne.s32.totalorder %s87, %s88
      %p99 = scmp.eq.s32.totalorder %s26, 0
      %p100 = por %p98, %p99
      %p101 = scmp.ne.s32.totalorder %s87, %s88
      %p102 = scmp.eq.s32.totalorder %s27, 15
      %p103 = por %p101, %p102
      %p105 = scmp.ne.s32.totalorder %s88, %s104
      %p106 = scmp.eq.s32.totalorder %s27, 0
      %p107 = por %p105, %p106
      %s108 = ssub.s32 %s28, %s47
      %s109 = ssub.s32 %s29, %s43
      %s110 = sor.u32 %s108, %s109
      %p111 = scmp.eq.s32.totalorder %s110, 0
      %s113 = sadd.s32 %s112, 1
      %s114 = scalar_select %p111, %s112, %s113
      %p117 = pneg %p111
      %p118 = scmp.eq.s32.totalorder %s21, 15
      %p119 = por %p117, %p118
      %p120 = scmp.ne.s32.totalorder %s112, %s115
      %p121 = scmp.eq.s32.totalorder %s21, 0
      %p122 = por %p120, %p121
      %p123 = scmp.ne.s32.totalorder %s112, %s115
      %p124 = scmp.eq.s32.totalorder %s26, 15
      %p125 = por %p123, %p124
      %p126 = scmp.ne.s32.totalorder %s115, %s116
      %p127 = scmp.eq.s32.totalorder %s26, 0
      %p128 = por %p126, %p127
      %p129 = scmp.ne.s32.totalorder %s115, %s116
      %p130 = scmp.eq.s32.totalorder %s27, 15
      %p131 = por %p129, %p130
      %p133 = scmp.ne.s32.totalorder %s116, %s132
      %p134 = scmp.eq.s32.totalorder %s27, 0
      %p135 = por %p133, %p134
      %s136 = ssub.s32 %s28, %s47
      %s137 = ssub.s32 %s29, %s43
      %s138 = sor.u32 %s136, %s137
      %s139 = ssub.s32 %s30, %s39
      %s140 = sor.u32 %s138, %s139
      %p141 = scmp.eq.s32.totalorder %s140, 0
      %s143 = sadd.s32 %s142, 1
      %s144 = scalar_select %p141, %s142, %s143
      %p147 = pneg %p141
      %p148 = scmp.eq.s32.totalorder %s21, 15
      %p149 = por %p147, %p148
      %p150 = scmp.ne.s32.totalorder %s142, %s145
      %p151 = scmp.eq.s32.totalorder %s21, 0
      %p152 = por %p150, %p151
      %p153 = scmp.ne.s32.totalorder %s142, %s145
      %p154 = scmp.eq.s32.totalorder %s26, 15
      %p155 = por %p153, %p154
      %p156 = scmp.ne.s32.totalorder %s145, %s146
      %p157 = scmp.eq.s32.totalorder %s26, 0
      %p158 = por %p156, %p157
      %p159 = scmp.ne.s32.totalorder %s145, %s146
      %p160 = scmp.eq.s32.totalorder %s27, 15
      %p161 = por %p159, %p160
      %p163 = scmp.ne.s32.totalorder %s146, %s162
      %p164 = scmp.eq.s32.totalorder %s27, 0
      %p165 = por %p163, %p164
      %p166 = scmp.le.s32.totalorder 1, %s21
      %p167 = scmp.lt.s32.totalorder %s21, 17
      %p168 = pnand %p166, %p167
      %p169 = pneg %p168
      // Predicated region
      $region9: #{tpu_custom_call.1} parent=5 // pred_check
        _
      $region10: #{tpu_custom_call.1} parent=5 // pred_check_branch
        %171 = sbr.rel (%p168) target = $region12
      $region11: #{tpu_custom_call.1} parent=5 // pred_region
        %s172 = ssub.s32 %s21, 1
      $region12: #{tpu_custom_call.1} parent=5 // pred_fallthru
        _
      %p173 = scmp.lt.s32.totalorder %s21, 16
      // Predicated region
      $region13: #{tpu_custom_call.1} parent=5 // pred_check
        %p174 = pneg %p173
      $region14: #{tpu_custom_call.1} parent=5 // pred_check_branch
        %176 = sbr.rel (%p174) target = $region16
      $region15: #{tpu_custom_call.1} parent=5 // pred_region
        // Predicated region
        $region17: #{tpu_custom_call.1} parent=15 // pred_check
          %p177 = pneg %p64
        $region18: #{tpu_custom_call.1} parent=15 // pred_check_branch
          %179 = sbr.rel (%p177) target = $region20
        $region19: #{tpu_custom_call.1} parent=15 // pred_region
          %s180 = sand.u32 %s54, 1
          %s181 = sand.u32 %s54, 1
          %s182 = smul.addr %s181, 16
          %s183 = scalar_lea.vmem [#allocation4], %s182
          %s184 = smul.addr %s29, 4
          %s185 = sadd.s32 %s30, %s184
          %s186 = smul.addr %s28, 16
          %s187 = sadd.s32 %s185, %s186
          %s188 = smul.addr %s187, 8
          %s189 = scalar_lea.vmem %s1, %s188
          // Predicated region
          $region21: #{tpu_custom_call.1} parent=19 // pred_check
            _
          $region22: #{tpu_custom_call.1} parent=19 // pred_check_branch
            %191 = sbr.rel (0) target = $region24
          $region23: #{tpu_custom_call.1} parent=19 // pred_region
            // Predicated region
            $region25: #{tpu_custom_call.1} parent=23 // pred_check
              _
            $region26: #{tpu_custom_call.1} parent=23 // pred_check_branch
              %193 = sbr.rel (0) target = $region28
            $region27: #{tpu_custom_call.1} parent=23 // pred_region
              // Predicated region
              $region40: #{tpu_custom_call.1} parent=27 // pred_check
                _
              $region41: #{tpu_custom_call.1} parent=27 // pred_check_branch
                %211 = sbr.rel (0) target = $region43
              $region42: #{tpu_custom_call.1} parent=27 // pred_region
                loop: start=0, step=1, limit=1
                $region44: #{tpu_custom_call.1} parent=42 // loop_pre_header
                  _
                $region45: #{tpu_custom_call.1} parent=42 // loop_header
                  %s213 = sphi 0, %s217
                  %p214 = scmp.ge.s32.totalorder %s213, 1
                  %s218 = sphi %s189, %s189
                  %s219 = sphi %s183, %s183
                $region46: #{tpu_custom_call.1} parent=42 // loop_header_branch
                  %216 = sbr.rel (%p214) target = $region50
                $region47: #{tpu_custom_call.1} parent=42 // loop_body
                  %v220 = vld [vmem:[%s218] sm:$0xff]
                  %221 = vst [vmem:[%s219] sm:$0xff] %v220
                  %v222 = vld [vmem:[%s218 + $0x10] sm:$0xff]
                  %223 = vst [vmem:[%s219 + $0x8] sm:$0xff] %v222
                $region48: #{tpu_custom_call.1} parent=42 // loop_footer
                  %s217 = sadd.s32 1, %s213
                $region49: #{tpu_custom_call.1} parent=42 // loop_footer_branch
                  %212 = sbr.rel target = $region45
                $region50: #{tpu_custom_call.1} parent=42 // loop_exit
                  _
              $region43: #{tpu_custom_call.1} parent=27 // pred_fallthru
                _
              // Predicated region
              $region51: #{tpu_custom_call.1} parent=27 // pred_check
                _
              $region52: #{tpu_custom_call.1} parent=27 // pred_check_branch
                %225 = sbr.rel target = $region54
              $region53: #{tpu_custom_call.1} parent=27 // pred_region
                _
              $region54: #{tpu_custom_call.1} parent=27 // pred_fallthru
                _
            $region28: #{tpu_custom_call.1} parent=23 // pred_fallthru
              _
            // Predicated region
            $region29: #{tpu_custom_call.1} parent=23 // pred_check
              _
            $region30: #{tpu_custom_call.1} parent=23 // pred_check_branch
              %195 = sbr.rel target = $region32
            $region31: #{tpu_custom_call.1} parent=23 // pred_region
              %s197 = ssub.s32 256, 1
              loop: start=0, step=1, limit=1
              $region33: #{tpu_custom_call.1} parent=31 // loop_pre_header
                _
              $region34: #{tpu_custom_call.1} parent=31 // loop_header
                %s199 = sphi 0, %s203
                %p200 = scmp.ge.s32.totalorder %s199, 1
                %s204 = sphi %s189, %s189
                %s205 = sphi %s183, %s183
              $region35: #{tpu_custom_call.1} parent=31 // loop_header_branch
                %202 = sbr.rel (%p200) target = $region39
              $region36: #{tpu_custom_call.1} parent=31 // loop_body
                %v206 = vld [vmem:[%s204] sm:%s197]
                %207 = vst [vmem:[%s205] sm:%s197] %v206
                %v208 = vld [vmem:[%s204 + $0x10] sm:%s197]
                %209 = vst [vmem:[%s205 + $0x8] sm:%s197] %v208
              $region37: #{tpu_custom_call.1} parent=31 // loop_footer
                %s203 = sadd.s32 1, %s199
              $region38: #{tpu_custom_call.1} parent=31 // loop_footer_branch
                %198 = sbr.rel target = $region34
              $region39: #{tpu_custom_call.1} parent=31 // loop_exit
                _
            $region32: #{tpu_custom_call.1} parent=23 // pred_fallthru
              _
          $region24: #{tpu_custom_call.1} parent=19 // pred_fallthru
            _
          %226 = vnop
        $region20: #{tpu_custom_call.1} parent=15 // pred_fallthru
          _
        // Predicated region
        $region55: #{tpu_custom_call.1} parent=15 // pred_check
          %p227 = pneg %p94
        $region56: #{tpu_custom_call.1} parent=15 // pred_check_branch
          %229 = sbr.rel (%p227) target = $region58
        $region57: #{tpu_custom_call.1} parent=15 // pred_region
          %s230 = sand.u32 %s84, 1
          %s231 = sand.u32 %s84, 1
          %s232 = smul.addr %s231, 16
          %s233 = scalar_lea.vmem [#allocation5], %s232
          %s234 = smul.addr %s29, 4
          %s235 = sadd.s32 %s30, %s234
          %s236 = smul.addr %s28, 16
          %s237 = sadd.s32 %s235, %s236
          %s238 = smul.addr %s237, 8
          %s239 = scalar_lea.vmem %s2, %s238
          // Predicated region
          $region59: #{tpu_custom_call.1} parent=57 // pred_check
            _
          $region60: #{tpu_custom_call.1} parent=57 // pred_check_branch
            %241 = sbr.rel (0) target = $region62
          $region61: #{tpu_custom_call.1} parent=57 // pred_region
            // Predicated region
            $region63: #{tpu_custom_call.1} parent=61 // pred_check
              _
            $region64: #{tpu_custom_call.1} parent=61 // pred_check_branch
              %243 = sbr.rel (0) target = $region66
            $region65: #{tpu_custom_call.1} parent=61 // pred_region
              // Predicated region
              $region78: #{tpu_custom_call.1} parent=65 // pred_check
                _
              $region79: #{tpu_custom_call.1} parent=65 // pred_check_branch
                %261 = sbr.rel (0) target = $region81
              $region80: #{tpu_custom_call.1} parent=65 // pred_region
                loop: start=0, step=1, limit=1
                $region82: #{tpu_custom_call.1} parent=80 // loop_pre_header
                  _
                $region83: #{tpu_custom_call.1} parent=80 // loop_header
                  %s263 = sphi 0, %s267
                  %p264 = scmp.ge.s32.totalorder %s263, 1
                  %s268 = sphi %s239, %s239
                  %s269 = sphi %s233, %s233
                $region84: #{tpu_custom_call.1} parent=80 // loop_header_branch
                  %266 = sbr.rel (%p264) target = $region88
                $region85: #{tpu_custom_call.1} parent=80 // loop_body
                  %v270 = vld [vmem:[%s268] sm:$0xff]
                  %271 = vst [vmem:[%s269] sm:$0xff] %v270
                  %v272 = vld [vmem:[%s268 + $0x10] sm:$0xff]
                  %273 = vst [vmem:[%s269 + $0x8] sm:$0xff] %v272
                $region86: #{tpu_custom_call.1} parent=80 // loop_footer
                  %s267 = sadd.s32 1, %s263
                $region87: #{tpu_custom_call.1} parent=80 // loop_footer_branch
                  %262 = sbr.rel target = $region83
                $region88: #{tpu_custom_call.1} parent=80 // loop_exit
                  _
              $region81: #{tpu_custom_call.1} parent=65 // pred_fallthru
                _
              // Predicated region
              $region89: #{tpu_custom_call.1} parent=65 // pred_check
                _
              $region90: #{tpu_custom_call.1} parent=65 // pred_check_branch
                %275 = sbr.rel target = $region92
              $region91: #{tpu_custom_call.1} parent=65 // pred_region
                _
              $region92: #{tpu_custom_call.1} parent=65 // pred_fallthru
                _
            $region66: #{tpu_custom_call.1} parent=61 // pred_fallthru
              _
            // Predicated region
            $region67: #{tpu_custom_call.1} parent=61 // pred_check
              _
            $region68: #{tpu_custom_call.1} parent=61 // pred_check_branch
              %245 = sbr.rel target = $region70
            $region69: #{tpu_custom_call.1} parent=61 // pred_region
              %s247 = ssub.s32 256, 1
              loop: start=0, step=1, limit=1
              $region71: #{tpu_custom_call.1} parent=69 // loop_pre_header
                _
              $region72: #{tpu_custom_call.1} parent=69 // loop_header
                %s249 = sphi 0, %s253
                %p250 = scmp.ge.s32.totalorder %s249, 1
                %s254 = sphi %s239, %s239
                %s255 = sphi %s233, %s233
              $region73: #{tpu_custom_call.1} parent=69 // loop_header_branch
                %252 = sbr.rel (%p250) target = $region77
              $region74: #{tpu_custom_call.1} parent=69 // loop_body
                %v256 = vld [vmem:[%s254] sm:%s247]
                %257 = vst [vmem:[%s255] sm:%s247] %v256
                %v258 = vld [vmem:[%s254 + $0x10] sm:%s247]
                %259 = vst [vmem:[%s255 + $0x8] sm:%s247] %v258
              $region75: #{tpu_custom_call.1} parent=69 // loop_footer
                %s253 = sadd.s32 1, %s249
              $region76: #{tpu_custom_call.1} parent=69 // loop_footer_branch
                %248 = sbr.rel target = $region72
              $region77: #{tpu_custom_call.1} parent=69 // loop_exit
                _
            $region70: #{tpu_custom_call.1} parent=61 // pred_fallthru
              _
          $region62: #{tpu_custom_call.1} parent=57 // pred_fallthru
            _
          %276 = vnop
        $region58: #{tpu_custom_call.1} parent=15 // pred_fallthru
          _
        // Predicated region
        $region93: #{tpu_custom_call.1} parent=15 // pred_check
          %p277 = pneg %p122
        $region94: #{tpu_custom_call.1} parent=15 // pred_check_branch
          %279 = sbr.rel (%p277) target = $region96
        $region95: #{tpu_custom_call.1} parent=15 // pred_region
          %p280 = scmp.lt.s32.totalorder %s28, 1
          %s281 = scalar_select %p280, %s28, 1
          %p282 = scmp.lt.s32.totalorder %s29, 3
          %s283 = scalar_select %p282, %s29, 3
          %s284 = smul.addr %s283, 12
          %s285 = smul.addr %s281, 48
          %s286 = sadd.s32 %s284, %s285
          %s287 = smul.addr %s286, 8
          %s288 = scalar_lea.vmem %s3, %s287
        $region96: #{tpu_custom_call.1} parent=15 // pred_fallthru
          _
      $region16: #{tpu_custom_call.1} parent=5 // pred_fallthru
        _
      %p289 = scmp.le.s32.totalorder 1, %s21
      %p290 = scmp.lt.s32.totalorder %s21, 17
      %p291 = pnand %p289, %p290
      %p292 = pneg %p291
      // Predicated region
      $region97: #{tpu_custom_call.1} parent=5 // pred_check
        _
      $region98: #{tpu_custom_call.1} parent=5 // pred_check_branch
        %294 = sbr.rel (%p291) target = $region100
      $region99: #{tpu_custom_call.1} parent=5 // pred_region
        %s295 = ssub.s32 %s21, 1
        %s296 = sand.u32 %s57, 1
        %s297 = sand.u32 %s57, 1
        %s298 = smul.addr %s297, 16
        %s299 = scalar_lea.vmem [#allocation4], %s298
        // Predicated region
        $region101: #{tpu_custom_call.1} parent=99 // pred_check
          %p300 = pneg %p70
        $region102: #{tpu_custom_call.1} parent=99 // pred_check_branch
          %302 = sbr.rel (%p300) target = $region104
        $region103: #{tpu_custom_call.1} parent=99 // pred_region
          _
        $region104: #{tpu_custom_call.1} parent=99 // pred_fallthru
          _
        %s303 = sand.u32 %s87, 1
        %s304 = sand.u32 %s87, 1
        %s305 = smul.addr %s304, 16
        %s306 = scalar_lea.vmem [#allocation5], %s305
        // Predicated region
        $region105: #{tpu_custom_call.1} parent=99 // pred_check
          %p307 = pneg %p100
        $region106: #{tpu_custom_call.1} parent=99 // pred_check_branch
          %309 = sbr.rel (%p307) target = $region108
        $region107: #{tpu_custom_call.1} parent=99 // pred_region
          _
        $region108: #{tpu_custom_call.1} parent=99 // pred_fallthru
          _
        %s310 = sand.u32 %s57, 1
        %s311 = sand.u32 %s57, 1
        %s312 = smul.addr %s311, 16
        %s313 = scalar_lea.vmem [#allocation4], %s312
        %p314 = pneg %p70
        %p315 = pneg %p67
        %s316 = sand.u32 %s87, 1
        %s317 = sand.u32 %s87, 1
        %s318 = smul.addr %s317, 16
        %s319 = scalar_lea.vmem [#allocation5], %s318
        %p320 = pneg %p100
        %p321 = pneg %p97
        %p322 = scmp.lt.s32.totalorder %s31, 1
        %s323 = scalar_select %p322, %s31, 1
        %p324 = scmp.lt.s32.totalorder %s32, 3
        %s325 = scalar_select %p324, %s32, 3
        %s326 = smul.addr %s325, 12
        %s327 = smul.addr %s323, 48
        %s328 = sadd.s32 %s326, %s327
        %s329 = smul.addr %s328, 8
        %s330 = scalar_lea.vmem %s3, %s329
        %p331 = pneg %p128
        %p332 = pneg %p125
        %p333 = pneg %p158
        %p334 = pneg %p155
        %s335 = sand.u32 %s145, 1
        %s336 = scalar_lea.sflag [#allocation7], %s335
        %s337 = sand.u32 %s145, 1
        %s338 = smul.addr %s337, 4
        %s339 = scalar_lea.vmem [#allocation6], %s338
        %p340 = scmp.lt.s32.totalorder %s31, 1
        %s341 = scalar_select %p340, %s31, 1
        %p342 = scmp.lt.s32.totalorder %s32, 3
        %s343 = scalar_select %p342, %s32, 3
        %s344 = smul.addr %s343, 12
        %s345 = smul.addr %s341, 48
        %s346 = sadd.s32 %s344, %s345
        %s347 = smul.addr %s346, 8
        %s348 = scalar_lea.vmem %s3, %s347
        %v349 = vld [vmem:[%s348] sm:$0xff]
        %v350 = vld [vmem:[%s348 + $0x8] sm:$0xff]
        %v351 = vld [vmem:[%s348 + $0x10] sm:$0xff]
        %v352 = vld [vmem:[%s348 + $0x18] sm:$0xff]
        %v353 = vld [vmem:[%s348 + $0x20] sm:$0xff]
        %v354 = vld [vmem:[%s348 + $0x28] sm:$0xff]
        %v355 = vld [vmem:[%s348 + $0x30] sm:$0xff]
        %v356 = vld [vmem:[%s348 + $0x38] sm:$0xff]
        %v357 = vld [vmem:[%s348 + $0x40] sm:$0xff]
        %v358 = vld [vmem:[%s348 + $0x48] sm:$0xff]
        %v359 = vld [vmem:[%s348 + $0x50] sm:$0xff]
        %v360 = vld [vmem:[%s348 + $0x58] sm:$0xff]
        %v361 = vlaneseq
        %v362 = vshrl.u32 %v361, 7
        %v363 = vadd.s32 %v362, 8
        %v364 = vadd.s32 %v362, 16
        %s365 = smul.u32 %s31, 4
        %s366 = sadd.s32 %s365, %s32
        %s367 = smul.u32 %s366, 9
        %v368 = vld [vmem:[%s299] sm:$0x1]
        %v369 = vld [vmem:[%s306] sm:$0x1]
        %s370 = sld [smem:[#allocation3 + %s367]]
        %v371 = vfloor.f32 %v368
        %v372 = vfloor.f32 %v369
        %v373 = vsub.f32 %v368, %v371
        %v374 = vsub.f32 %v369, %v372
        %v375 = vcvt.f32.s32.to.zero.pseudo %v371
        %v376 = vcvt.f32.s32.to.zero.pseudo %v372
        %vm377 = vcmp.ge.s32.totalorder %v375, 0
        %vm378 = vcmp.lt.s32.totalorder %v375, 18
        %vm379 = vmand %vm377, %vm378
        %vm380 = vcmp.ge.s32.totalorder %v375, 4294967295
        %vm381 = vcmp.lt.s32.totalorder %v375, 17
        %vm382 = vmand %vm380, %vm381
        %vm383 = vcmp.ge.s32.totalorder %v376, 0
        %vm384 = vcmp.lt.s32.totalorder %v376, 18
        %vm385 = vmand %vm383, %vm384
        %vm386 = vcmp.ge.s32.totalorder %v376, 4294967295
        %vm387 = vcmp.lt.s32.totalorder %v376, 17
        %vm388 = vmand %vm386, %vm387
        %v389 = vsub.f32 1.0, %v373
        %v390 = vstv %s370
        %v391 = vmul.f32 %v389, %v390
        %v392 = vsel %vm379, %v391, 0.0
        %v393 = vmul.f32 %v373, %v390
        %v394 = vsel %vm382, %v393, 0.0
        %v395 = vsub.f32 1.0, %v374
        %v396 = vsel %vm385, %v395, 0.0
        %v397 = vsel %vm388, %v374, 0.0
        %v398 = vperm.slane %v375, 0
        %v399 = vsub.s32 %v362, %v398
        %v400 = vsub.s32 %v363, %v398
        %v401 = vsub.s32 %v364, %v398
        %vm402 = vcmp.eq.s32.totalorder %v399, 0
        %vm403 = vcmp.eq.s32.totalorder %v400, 0
        %vm404 = vcmp.eq.s32.totalorder %v401, 0
        %v405 = vperm.slane %v392, 0
        %v406 = vsel %vm402, %v405, 0.0
        %v407 = vsel %vm403, %v405, 0.0
        %v408 = vsel %vm404, %v405, 0.0
        %vm409 = vcmp.eq.s32.totalorder %v399, 1
        %vm410 = vcmp.eq.s32.totalorder %v400, 1
        %vm411 = vcmp.eq.s32.totalorder %v401, 1
        %v412 = vperm.slane %v394, 0
        %v413 = vsel %vm409, %v412, 0.0
        %v414 = vsel %vm410, %v412, 0.0
        %v415 = vsel %vm411, %v412, 0.0
        %v416 = vadd.f32 %v406, %v413
        %v417 = vadd.f32 %v407, %v414
        %v418 = vadd.f32 %v408, %v415
        %vm419 = vcmask 195584
        %v421 = vsel %vm419, %v349, 0
        %v424 = vsel %vm419, %v350, 0
        %v427 = vsel %vm419, %v351, 0
        %v430 = vsel %vm419, %v352, 0
        %v433 = vsel %vm419, %v353, 0
        %v436 = vsel %vm419, %v354, 0
        %v439 = vsel %vm419, %v355, 0
        %v442 = vsel %vm419, %v356, 0
        %v445 = vsel %vm419, %v357, 0
        %v448 = vsel %vm419, %v358, 0
        %v451 = vsel %vm419, %v359, 0
        %v454 = vsel %vm419, %v360, 0
        %456 = vmatpush.msra.mxu0 0.0
        %457 = vmatpush.msra.mxu0 0.0
        %458 = vmatpush.msra.mxu0 0.0
        %459 = vmatpush.msra.mxu0 0.0
        %460 = vmatpush.msra.mxu0 0.0
        %461 = vmatpush.msra.mxu0 0.0
        %462 = vmatpush.msra.mxu0 0.0
        %463 = vmatpush.msra.mxu0 0.0
        %464 = vmatpush.msra.mxu0 0.0
        %465 = vmatpush.msra.mxu0 0.0
        %466 = vmatpush.msra.mxu0 0.0
        %467 = vmatpush.msra.mxu0 0.0
        %468 = vmatpush.msra.mxu0 0.0
        %469 = vmatpush.msra.mxu0 %v418
        %470 = vmatpush.msra.mxu0 %v417
        %471 = vmatpush.msra.mxu0 %v416
        %472 = vmatmul.f32.gmra.mxu0 %v421
        %v473 = vpop.f32.mrf.mxu0
        %v474 = vadd.f32 0.0, %v473
        %475 = vmatmul.f32.gmra.mxu0 %v424
        %v476 = vpop.f32.mrf.mxu0
        %v477 = vadd.f32 0.0, %v476
        %478 = vmatmul.f32.gmra.mxu0 %v427
        %v479 = vpop.f32.mrf.mxu0
        %v480 = vadd.f32 0.0, %v479
        %481 = vmatmul.f32.gmra.mxu0 %v430
        %v482 = vpop.f32.mrf.mxu0
        %v483 = vadd.f32 0.0, %v482
        %484 = vmatmul.f32.gmra.mxu0 %v433
        %v485 = vpop.f32.mrf.mxu0
        %v486 = vadd.f32 0.0, %v485
        %487 = vmatmul.f32.gmra.mxu0 %v436
        %v488 = vpop.f32.mrf.mxu0
        %v489 = vadd.f32 0.0, %v488
        %490 = vmatmul.f32.gmra.mxu0 %v439
        %v491 = vpop.f32.mrf.mxu0
        %v492 = vadd.f32 0.0, %v491
        %493 = vmatmul.f32.gmra.mxu0 %v442
        %v494 = vpop.f32.mrf.mxu0
        %v495 = vadd.f32 0.0, %v494
        %496 = vmatmul.f32.gmra.mxu0 %v445
        %v497 = vpop.f32.mrf.mxu0
        %v498 = vadd.f32 0.0, %v497
        %499 = vmatmul.f32.gmra.mxu0 %v448
        %v500 = vpop.f32.mrf.mxu0
        %v501 = vadd.f32 0.0, %v500
        %502 = vmatmul.f32.gmra.mxu0 %v451
        %v503 = vpop.f32.mrf.mxu0
        %v504 = vadd.f32 0.0, %v503
        %505 = vmatmul.f32.gmra.mxu0 %v454
        %v506 = vpop.f32.mrf.mxu0
        %v507 = vadd.f32 0.0, %v506
        %508 = vdwg.mxu0
        %v509 = vperm.slane %v376, 0
        %v510 = vsub.s32 %v362, %v509
        %v511 = vsub.s32 %v363, %v509
        %v512 = vsub.s32 %v364, %v509
        %vm513 = vcmp.eq.s32.totalorder %v510, 0
        %vm514 = vcmp.eq.s32.totalorder %v511, 0
        %vm515 = vcmp.eq.s32.totalorder %v512, 0
        %v516 = vperm.slane %v396, 0
        %v517 = vsel %vm513, %v516, 0.0
        %v518 = vsel %vm514, %v516, 0.0
        %v519 = vsel %vm515, %v516, 0.0
        %vm520 = vcmp.eq.s32.totalorder %v510, 1
        %vm521 = vcmp.eq.s32.totalorder %v511, 1
        %vm522 = vcmp.eq.s32.totalorder %v512, 1
        %v523 = vperm.slane %v397, 0
        %v524 = vsel %vm520, %v523, 0.0
        %v525 = vsel %vm521, %v523, 0.0
        %v526 = vsel %vm522, %v523, 0.0
        %v527 = vadd.f32 %v517, %v524
        %v528 = vadd.f32 %v518, %v525
        %v529 = vadd.f32 %v519, %v526
        %v530 = vmul.f32 %v474, %v527
        %v531 = vmul.f32 %v477, %v528
        %v532 = vmul.f32 %v480, %v529
        %v533 = vmul.f32 %v483, %v527
        %v534 = vmul.f32 %v486, %v528
        %v535 = vmul.f32 %v489, %v529
        %v536 = vmul.f32 %v492, %v527
        %v537 = vmul.f32 %v495, %v528
        %v538 = vmul.f32 %v498, %v529
        %v539 = vmul.f32 %v501, %v527
        %v540 = vmul.f32 %v504, %v528
        %v541 = vmul.f32 %v507, %v529
        %v542 = vadd.f32 %v530, %v531
        %v543 = vadd.f32 %v542, %v532
        %v544 = vrot.slane %v543, 4
        %v545 = vadd.f32 %v543, %v544
        %v546 = vrot.slane %v545, 2
        %v547 = vadd.f32 %v545, %v546
        %v548 = vrot.slane %v547, 1
        %v549 = vadd.f32 %v547, %v548
        %v550 = vadd.f32 %v533, %v534
        %v551 = vadd.f32 %v550, %v535
        %v552 = vrot.slane %v551, 4
        %v553 = vadd.f32 %v551, %v552
        %v554 = vrot.slane %v553, 2
        %v555 = vadd.f32 %v553, %v554
        %v556 = vrot.slane %v555, 1
        %v557 = vadd.f32 %v555, %v556
        %v558 = vadd.f32 %v536, %v537
        %v559 = vadd.f32 %v558, %v538
        %v560 = vrot.slane %v559, 4
        %v561 = vadd.f32 %v559, %v560
        %v562 = vrot.slane %v561, 2
        %v563 = vadd.f32 %v561, %v562
        %v564 = vrot.slane %v563, 1
        %v565 = vadd.f32 %v563, %v564
        %v566 = vadd.f32 %v539, %v540
        %v567 = vadd.f32 %v566, %v541
        %v568 = vrot.slane %v567, 4
        %v569 = vadd.f32 %v567, %v568
        %v570 = vrot.slane %v569, 2
        %v571 = vadd.f32 %v569, %v570
        %v572 = vrot.slane %v571, 1
        %v573 = vadd.f32 %v571, %v572
        %v574 = vadd.f32 %v549, 0.0
        %v575 = vadd.f32 %v557, 0.0
        %v576 = vadd.f32 %v565, 0.0
        %v577 = vadd.f32 %v573, 0.0
        %v578 = vld [vmem:[%s299 + $0x1] sm:$0x1]
        %v579 = vld [vmem:[%s306 + $0x1] sm:$0x1]
        %s580 = sadd.s32 %s367, 1
        %s581 = sld [smem:[#allocation3 + %s580]]
        %v582 = vfloor.f32 %v578
        %v583 = vfloor.f32 %v579
        %v584 = vsub.f32 %v578, %v582
        %v585 = vsub.f32 %v579, %v583
        %v586 = vcvt.f32.s32.to.zero.pseudo %v582
        %v587 = vcvt.f32.s32.to.zero.pseudo %v583
        %vm588 = vcmp.ge.s32.totalorder %v586, 0
        %vm589 = vcmp.lt.s32.totalorder %v586, 18
        %vm590 = vmand %vm588, %vm589
        %vm591 = vcmp.ge.s32.totalorder %v586, 4294967295
        %vm592 = vcmp.lt.s32.totalorder %v586, 17
        %vm593 = vmand %vm591, %vm592
        %vm594 = vcmp.ge.s32.totalorder %v587, 0
        %vm595 = vcmp.lt.s32.totalorder %v587, 18
        %vm596 = vmand %vm594, %vm595
        %vm597 = vcmp.ge.s32.totalorder %v587, 4294967295
        %vm598 = vcmp.lt.s32.totalorder %v587, 17
        %vm599 = vmand %vm597, %vm598
        %v600 = vsub.f32 1.0, %v584
        %v601 = vstv %s581
        %v602 = vmul.f32 %v600, %v601
        %v603 = vsel %vm590, %v602, 0.0
        %v604 = vmul.f32 %v584, %v601
        %v605 = vsel %vm593, %v604, 0.0
        %v606 = vsub.f32 1.0, %v585
        %v607 = vsel %vm596, %v606, 0.0
        %v608 = vsel %vm599, %v585, 0.0
        %v609 = vperm.slane %v586, 0
        %v610 = vsub.s32 %v362, %v609
        %v611 = vsub.s32 %v363, %v609
        %v612 = vsub.s32 %v364, %v609
        %vm613 = vcmp.eq.s32.totalorder %v610, 0
        %vm614 = vcmp.eq.s32.totalorder %v611, 0
        %vm615 = vcmp.eq.s32.totalorder %v612, 0
        %v616 = vperm.slane %v603, 0
        %v617 = vsel %vm613, %v616, 0.0
        %v618 = vsel %vm614, %v616, 0.0
        %v619 = vsel %vm615, %v616, 0.0
        %vm620 = vcmp.eq.s32.totalorder %v610, 1
        %vm621 = vcmp.eq.s32.totalorder %v611, 1
        %vm622 = vcmp.eq.s32.totalorder %v612, 1
        %v623 = vperm.slane %v605, 0
        %v624 = vsel %vm620, %v623, 0.0
        %v625 = vsel %vm621, %v623, 0.0
        %v626 = vsel %vm622, %v623, 0.0
        %v627 = vadd.f32 %v617, %v624
        %v628 = vadd.f32 %v618, %v625
        %v629 = vadd.f32 %v619, %v626
        %630 = vmatpush.msra.mxu0 0.0
        %631 = vmatpush.msra.mxu0 0.0
        %632 = vmatpush.msra.mxu0 0.0
        %633 = vmatpush.msra.mxu0 0.0
        %634 = vmatpush.msra.mxu0 0.0
        %635 = vmatpush.msra.mxu0 0.0
        %636 = vmatpush.msra.mxu0 0.0
        %637 = vmatpush.msra.mxu0 0.0
        %638 = vmatpush.msra.mxu0 0.0
        %639 = vmatpush.msra.mxu0 0.0
        %640 = vmatpush.msra.mxu0 0.0
        %641 = vmatpush.msra.mxu0 0.0
        %642 = vmatpush.msra.mxu0 0.0
        %643 = vmatpush.msra.mxu0 %v629
        %644 = vmatpush.msra.mxu0 %v628
        %645 = vmatpush.msra.mxu0 %v627
        %646 = vmatmul.f32.gmra.mxu0 %v421
        %v647 = vpop.f32.mrf.mxu0
        %v648 = vadd.f32 0.0, %v647
        %649 = vmatmul.f32.gmra.mxu0 %v424
        %v650 = vpop.f32.mrf.mxu0
        %v651 = vadd.f32 0.0, %v650
        %652 = vmatmul.f32.gmra.mxu0 %v427
        %v653 = vpop.f32.mrf.mxu0
        %v654 = vadd.f32 0.0, %v653
        %655 = vmatmul.f32.gmra.mxu0 %v430
        %v656 = vpop.f32.mrf.mxu0
        %v657 = vadd.f32 0.0, %v656
        %658 = vmatmul.f32.gmra.mxu0 %v433
        %v659 = vpop.f32.mrf.mxu0
        %v660 = vadd.f32 0.0, %v659
        %661 = vmatmul.f32.gmra.mxu0 %v436
        %v662 = vpop.f32.mrf.mxu0
        %v663 = vadd.f32 0.0, %v662
        %664 = vmatmul.f32.gmra.mxu0 %v439
        %v665 = vpop.f32.mrf.mxu0
        %v666 = vadd.f32 0.0, %v665
        %667 = vmatmul.f32.gmra.mxu0 %v442
        %v668 = vpop.f32.mrf.mxu0
        %v669 = vadd.f32 0.0, %v668
        %670 = vmatmul.f32.gmra.mxu0 %v445
        %v671 = vpop.f32.mrf.mxu0
        %v672 = vadd.f32 0.0, %v671
        %673 = vmatmul.f32.gmra.mxu0 %v448
        %v674 = vpop.f32.mrf.mxu0
        %v675 = vadd.f32 0.0, %v674
        %676 = vmatmul.f32.gmra.mxu0 %v451
        %v677 = vpop.f32.mrf.mxu0
        %v678 = vadd.f32 0.0, %v677
        %679 = vmatmul.f32.gmra.mxu0 %v454
        %v680 = vpop.f32.mrf.mxu0
        %v681 = vadd.f32 0.0, %v680
        %682 = vdwg.mxu0
        %v683 = vperm.slane %v587, 0
        %v684 = vsub.s32 %v362, %v683
        %v685 = vsub.s32 %v363, %v683
        %v686 = vsub.s32 %v364, %v683
        %vm687 = vcmp.eq.s32.totalorder %v684, 0
        %vm688 = vcmp.eq.s32.totalorder %v685, 0
        %vm689 = vcmp.eq.s32.totalorder %v686, 0
        %v690 = vperm.slane %v607, 0
        %v691 = vsel %vm687, %v690, 0.0
        %v692 = vsel %vm688, %v690, 0.0
        %v693 = vsel %vm689, %v690, 0.0
        %vm694 = vcmp.eq.s32.totalorder %v684, 1
        %vm695 = vcmp.eq.s32.totalorder %v685, 1
        %vm696 = vcmp.eq.s32.totalorder %v686, 1
        %v697 = vperm.slane %v608, 0
        %v698 = vsel %vm694, %v697, 0.0
        %v699 = vsel %vm695, %v697, 0.0
        %v700 = vsel %vm696, %v697, 0.0
        %v701 = vadd.f32 %v691, %v698
        %v702 = vadd.f32 %v692, %v699
        %v703 = vadd.f32 %v693, %v700
        %v704 = vmul.f32 %v648, %v701
        %v705 = vmul.f32 %v651, %v702
        %v706 = vmul.f32 %v654, %v703
        %v707 = vmul.f32 %v657, %v701
        %v708 = vmul.f32 %v660, %v702
        %v709 = vmul.f32 %v663, %v703
        %v710 = vmul.f32 %v666, %v701
        %v711 = vmul.f32 %v669, %v702
        %v712 = vmul.f32 %v672, %v703
        %v713 = vmul.f32 %v675, %v701
        %v714 = vmul.f32 %v678, %v702
        %v715 = vmul.f32 %v681, %v703
        %v716 = vadd.f32 %v704, %v705
        %v717 = vadd.f32 %v716, %v706
        %v718 = vrot.slane %v717, 4
        %v719 = vadd.f32 %v717, %v718
        %v720 = vrot.slane %v719, 2
        %v721 = vadd.f32 %v719, %v720
        %v722 = vrot.slane %v721, 1
        %v723 = vadd.f32 %v721, %v722
        %v724 = vadd.f32 %v707, %v708
        %v725 = vadd.f32 %v724, %v709
        %v726 = vrot.slane %v725, 4
        %v727 = vadd.f32 %v725, %v726
        %v728 = vrot.slane %v727, 2
        %v729 = vadd.f32 %v727, %v728
        %v730 = vrot.slane %v729, 1
        %v731 = vadd.f32 %v729, %v730
        %v732 = vadd.f32 %v710, %v711
        %v733 = vadd.f32 %v732, %v712
        %v734 = vrot.slane %v733, 4
        %v735 = vadd.f32 %v733, %v734
        %v736 = vrot.slane %v735, 2
        %v737 = vadd.f32 %v735, %v736
        %v738 = vrot.slane %v737, 1
        %v739 = vadd.f32 %v737, %v738
        %v740 = vadd.f32 %v713, %v714
        %v741 = vadd.f32 %v740, %v715
        %v742 = vrot.slane %v741, 4
        %v743 = vadd.f32 %v741, %v742
        %v744 = vrot.slane %v743, 2
        %v745 = vadd.f32 %v743, %v744
        %v746 = vrot.slane %v745, 1
        %v747 = vadd.f32 %v745, %v746
        %v748 = vadd.f32 %v574, %v723
        %v749 = vadd.f32 %v575, %v731
        %v750 = vadd.f32 %v576, %v739
        %v751 = vadd.f32 %v577, %v747
        %v752 = vld [vmem:[%s299 + $0x2] sm:$0x1]
        %v753 = vld [vmem:[%s306 + $0x2] sm:$0x1]
        %s754 = sadd.s32 %s367, 2
        %s755 = sld [smem:[#allocation3 + %s754]]
        %v756 = vfloor.f32 %v752
        %v757 = vfloor.f32 %v753
        %v758 = vsub.f32 %v752, %v756
        %v759 = vsub.f32 %v753, %v757
        %v760 = vcvt.f32.s32.to.zero.pseudo %v756
        %v761 = vcvt.f32.s32.to.zero.pseudo %v757
        %vm762 = vcmp.ge.s32.totalorder %v760, 0
        %vm763 = vcmp.lt.s32.totalorder %v760, 18
        %vm764 = vmand %vm762, %vm763
        %vm765 = vcmp.ge.s32.totalorder %v760, 4294967295
        %vm766 = vcmp.lt.s32.totalorder %v760, 17
        %vm767 = vmand %vm765, %vm766
        %vm768 = vcmp.ge.s32.totalorder %v761, 0
        %vm769 = vcmp.lt.s32.totalorder %v761, 18
        %vm770 = vmand %vm768, %vm769
        %vm771 = vcmp.ge.s32.totalorder %v761, 4294967295
        %vm772 = vcmp.lt.s32.totalorder %v761, 17
        %vm773 = vmand %vm771, %vm772
        %v774 = vsub.f32 1.0, %v758
        %v775 = vstv %s755
        %v776 = vmul.f32 %v774, %v775
        %v777 = vsel %vm764, %v776, 0.0
        %v778 = vmul.f32 %v758, %v775
        %v779 = vsel %vm767, %v778, 0.0
        %v780 = vsub.f32 1.0, %v759
        %v781 = vsel %vm770, %v780, 0.0
        %v782 = vsel %vm773, %v759, 0.0
        %v783 = vperm.slane %v760, 0
        %v784 = vsub.s32 %v362, %v783
        %v785 = vsub.s32 %v363, %v783
        %v786 = vsub.s32 %v364, %v783
        %vm787 = vcmp.eq.s32.totalorder %v784, 0
        %vm788 = vcmp.eq.s32.totalorder %v785, 0
        %vm789 = vcmp.eq.s32.totalorder %v786, 0
        %v790 = vperm.slane %v777, 0
        %v791 = vsel %vm787, %v790, 0.0
        %v792 = vsel %vm788, %v790, 0.0
        %v793 = vsel %vm789, %v790, 0.0
        %vm794 = vcmp.eq.s32.totalorder %v784, 1
        %vm795 = vcmp.eq.s32.totalorder %v785, 1
        %vm796 = vcmp.eq.s32.totalorder %v786, 1
        %v797 = vperm.slane %v779, 0
        %v798 = vsel %vm794, %v797, 0.0
        %v799 = vsel %vm795, %v797, 0.0
        %v800 = vsel %vm796, %v797, 0.0
        %v801 = vadd.f32 %v791, %v798
        %v802 = vadd.f32 %v792, %v799
        %v803 = vadd.f32 %v793, %v800
        %804 = vmatpush.msra.mxu0 0.0
        %805 = vmatpush.msra.mxu0 0.0
        %806 = vmatpush.msra.mxu0 0.0
        %807 = vmatpush.msra.mxu0 0.0
        %808 = vmatpush.msra.mxu0 0.0
        %809 = vmatpush.msra.mxu0 0.0
        %810 = vmatpush.msra.mxu0 0.0
        %811 = vmatpush.msra.mxu0 0.0
        %812 = vmatpush.msra.mxu0 0.0
        %813 = vmatpush.msra.mxu0 0.0
        %814 = vmatpush.msra.mxu0 0.0
        %815 = vmatpush.msra.mxu0 0.0
        %816 = vmatpush.msra.mxu0 0.0
        %817 = vmatpush.msra.mxu0 %v803
        %818 = vmatpush.msra.mxu0 %v802
        %819 = vmatpush.msra.mxu0 %v801
        %820 = vmatmul.f32.gmra.mxu0 %v421
        %v821 = vpop.f32.mrf.mxu0
        %v822 = vadd.f32 0.0, %v821
        %823 = vmatmul.f32.gmra.mxu0 %v424
        %v824 = vpop.f32.mrf.mxu0
        %v825 = vadd.f32 0.0, %v824
        %826 = vmatmul.f32.gmra.mxu0 %v427
        %v827 = vpop.f32.mrf.mxu0
        %v828 = vadd.f32 0.0, %v827
        %829 = vmatmul.f32.gmra.mxu0 %v430
        %v830 = vpop.f32.mrf.mxu0
        %v831 = vadd.f32 0.0, %v830
        %832 = vmatmul.f32.gmra.mxu0 %v433
        %v833 = vpop.f32.mrf.mxu0
        %v834 = vadd.f32 0.0, %v833
        %835 = vmatmul.f32.gmra.mxu0 %v436
        %v836 = vpop.f32.mrf.mxu0
        %v837 = vadd.f32 0.0, %v836
        %838 = vmatmul.f32.gmra.mxu0 %v439
        %v839 = vpop.f32.mrf.mxu0
        %v840 = vadd.f32 0.0, %v839
        %841 = vmatmul.f32.gmra.mxu0 %v442
        %v842 = vpop.f32.mrf.mxu0
        %v843 = vadd.f32 0.0, %v842
        %844 = vmatmul.f32.gmra.mxu0 %v445
        %v845 = vpop.f32.mrf.mxu0
        %v846 = vadd.f32 0.0, %v845
        %847 = vmatmul.f32.gmra.mxu0 %v448
        %v848 = vpop.f32.mrf.mxu0
        %v849 = vadd.f32 0.0, %v848
        %850 = vmatmul.f32.gmra.mxu0 %v451
        %v851 = vpop.f32.mrf.mxu0
        %v852 = vadd.f32 0.0, %v851
        %853 = vmatmul.f32.gmra.mxu0 %v454
        %v854 = vpop.f32.mrf.mxu0
        %v855 = vadd.f32 0.0, %v854
        %856 = vdwg.mxu0
        %v857 = vperm.slane %v761, 0
        %v858 = vsub.s32 %v362, %v857
        %v859 = vsub.s32 %v363, %v857
        %v860 = vsub.s32 %v364, %v857
        %vm861 = vcmp.eq.s32.totalorder %v858, 0
        %vm862 = vcmp.eq.s32.totalorder %v859, 0
        %vm863 = vcmp.eq.s32.totalorder %v860, 0
        %v864 = vperm.slane %v781, 0
        %v865 = vsel %vm861, %v864, 0.0
        %v866 = vsel %vm862, %v864, 0.0
        %v867 = vsel %vm863, %v864, 0.0
        %vm868 = vcmp.eq.s32.totalorder %v858, 1
        %vm869 = vcmp.eq.s32.totalorder %v859, 1
        %vm870 = vcmp.eq.s32.totalorder %v860, 1
        %v871 = vperm.slane %v782, 0
        %v872 = vsel %vm868, %v871, 0.0
        %v873 = vsel %vm869, %v871, 0.0
        %v874 = vsel %vm870, %v871, 0.0
        %v875 = vadd.f32 %v865, %v872
        %v876 = vadd.f32 %v866, %v873
        %v877 = vadd.f32 %v867, %v874
        %v878 = vmul.f32 %v822, %v875
        %v879 = vmul.f32 %v825, %v876
        %v880 = vmul.f32 %v828, %v877
        %v881 = vmul.f32 %v831, %v875
        %v882 = vmul.f32 %v834, %v876
        %v883 = vmul.f32 %v837, %v877
        %v884 = vmul.f32 %v840, %v875
        %v885 = vmul.f32 %v843, %v876
        %v886 = vmul.f32 %v846, %v877
        %v887 = vmul.f32 %v849, %v875
        %v888 = vmul.f32 %v852, %v876
        %v889 = vmul.f32 %v855, %v877
        %v890 = vadd.f32 %v878, %v879
        %v891 = vadd.f32 %v890, %v880
        %v892 = vrot.slane %v891, 4
        %v893 = vadd.f32 %v891, %v892
        %v894 = vrot.slane %v893, 2
        %v895 = vadd.f32 %v893, %v894
        %v896 = vrot.slane %v895, 1
        %v897 = vadd.f32 %v895, %v896
        %v898 = vadd.f32 %v881, %v882
        %v899 = vadd.f32 %v898, %v883
        %v900 = vrot.slane %v899, 4
        %v901 = vadd.f32 %v899, %v900
        %v902 = vrot.slane %v901, 2
        %v903 = vadd.f32 %v901, %v902
        %v904 = vrot.slane %v903, 1
        %v905 = vadd.f32 %v903, %v904
        %v906 = vadd.f32 %v884, %v885
        %v907 = vadd.f32 %v906, %v886
        %v908 = vrot.slane %v907, 4
        %v909 = vadd.f32 %v907, %v908
        %v910 = vrot.slane %v909, 2
        %v911 = vadd.f32 %v909, %v910
        %v912 = vrot.slane %v911, 1
        %v913 = vadd.f32 %v911, %v912
        %v914 = vadd.f32 %v887, %v888
        %v915 = vadd.f32 %v914, %v889
        %v916 = vrot.slane %v915, 4
        %v917 = vadd.f32 %v915, %v916
        %v918 = vrot.slane %v917, 2
        %v919 = vadd.f32 %v917, %v918
        %v920 = vrot.slane %v919, 1
        %v921 = vadd.f32 %v919, %v920
        %v922 = vadd.f32 %v748, %v897
        %v923 = vadd.f32 %v749, %v905
        %v924 = vadd.f32 %v750, %v913
        %v925 = vadd.f32 %v751, %v921
        %v926 = vld [vmem:[%s299 + $0x3] sm:$0x1]
        %v927 = vld [vmem:[%s306 + $0x3] sm:$0x1]
        %s928 = sadd.s32 %s367, 3
        %s929 = sld [smem:[#allocation3 + %s928]]
        %v930 = vfloor.f32 %v926
        %v931 = vfloor.f32 %v927
        %v932 = vsub.f32 %v926, %v930
        %v933 = vsub.f32 %v927, %v931
        %v934 = vcvt.f32.s32.to.zero.pseudo %v930
        %v935 = vcvt.f32.s32.to.zero.pseudo %v931
        %vm936 = vcmp.ge.s32.totalorder %v934, 0
        %vm937 = vcmp.lt.s32.totalorder %v934, 18
        %vm938 = vmand %vm936, %vm937
        %vm939 = vcmp.ge.s32.totalorder %v934, 4294967295
        %vm940 = vcmp.lt.s32.totalorder %v934, 17
        %vm941 = vmand %vm939, %vm940
        %vm942 = vcmp.ge.s32.totalorder %v935, 0
        %vm943 = vcmp.lt.s32.totalorder %v935, 18
        %vm944 = vmand %vm942, %vm943
        %vm945 = vcmp.ge.s32.totalorder %v935, 4294967295
        %vm946 = vcmp.lt.s32.totalorder %v935, 17
        %vm947 = vmand %vm945, %vm946
        %v948 = vsub.f32 1.0, %v932
        %v949 = vstv %s929
        %v950 = vmul.f32 %v948, %v949
        %v951 = vsel %vm938, %v950, 0.0
        %v952 = vmul.f32 %v932, %v949
        %v953 = vsel %vm941, %v952, 0.0
        %v954 = vsub.f32 1.0, %v933
        %v955 = vsel %vm944, %v954, 0.0
        %v956 = vsel %vm947, %v933, 0.0
        %v957 = vperm.slane %v934, 0
        %v958 = vsub.s32 %v362, %v957
        %v959 = vsub.s32 %v363, %v957
        %v960 = vsub.s32 %v364, %v957
        %vm961 = vcmp.eq.s32.totalorder %v958, 0
        %vm962 = vcmp.eq.s32.totalorder %v959, 0
        %vm963 = vcmp.eq.s32.totalorder %v960, 0
        %v964 = vperm.slane %v951, 0
        %v965 = vsel %vm961, %v964, 0.0
        %v966 = vsel %vm962, %v964, 0.0
        %v967 = vsel %vm963, %v964, 0.0
        %vm968 = vcmp.eq.s32.totalorder %v958, 1
        %vm969 = vcmp.eq.s32.totalorder %v959, 1
        %vm970 = vcmp.eq.s32.totalorder %v960, 1
        %v971 = vperm.slane %v953, 0
        %v972 = vsel %vm968, %v971, 0.0
        %v973 = vsel %vm969, %v971, 0.0
        %v974 = vsel %vm970, %v971, 0.0
        %v975 = vadd.f32 %v965, %v972
        %v976 = vadd.f32 %v966, %v973
        %v977 = vadd.f32 %v967, %v974
        %978 = vmatpush.msra.mxu0 0.0
        %979 = vmatpush.msra.mxu0 0.0
        %980 = vmatpush.msra.mxu0 0.0
        %981 = vmatpush.msra.mxu0 0.0
        %982 = vmatpush.msra.mxu0 0.0
        %983 = vmatpush.msra.mxu0 0.0
        %984 = vmatpush.msra.mxu0 0.0
        %985 = vmatpush.msra.mxu0 0.0
        %986 = vmatpush.msra.mxu0 0.0
        %987 = vmatpush.msra.mxu0 0.0
        %988 = vmatpush.msra.mxu0 0.0
        %989 = vmatpush.msra.mxu0 0.0
        %990 = vmatpush.msra.mxu0 0.0
        %991 = vmatpush.msra.mxu0 %v977
        %992 = vmatpush.msra.mxu0 %v976
        %993 = vmatpush.msra.mxu0 %v975
        %994 = vmatmul.f32.gmra.mxu0 %v421
        %v995 = vpop.f32.mrf.mxu0
        %v996 = vadd.f32 0.0, %v995
        %997 = vmatmul.f32.gmra.mxu0 %v424
        %v998 = vpop.f32.mrf.mxu0
        %v999 = vadd.f32 0.0, %v998
        %1000 = vmatmul.f32.gmra.mxu0 %v427
        %v1001 = vpop.f32.mrf.mxu0
        %v1002 = vadd.f32 0.0, %v1001
        %1003 = vmatmul.f32.gmra.mxu0 %v430
        %v1004 = vpop.f32.mrf.mxu0
        %v1005 = vadd.f32 0.0, %v1004
        %1006 = vmatmul.f32.gmra.mxu0 %v433
        %v1007 = vpop.f32.mrf.mxu0
        %v1008 = vadd.f32 0.0, %v1007
        %1009 = vmatmul.f32.gmra.mxu0 %v436
        %v1010 = vpop.f32.mrf.mxu0
        %v1011 = vadd.f32 0.0, %v1010
        %1012 = vmatmul.f32.gmra.mxu0 %v439
        %v1013 = vpop.f32.mrf.mxu0
        %v1014 = vadd.f32 0.0, %v1013
        %1015 = vmatmul.f32.gmra.mxu0 %v442
        %v1016 = vpop.f32.mrf.mxu0
        %v1017 = vadd.f32 0.0, %v1016
        %1018 = vmatmul.f32.gmra.mxu0 %v445
        %v1019 = vpop.f32.mrf.mxu0
        %v1020 = vadd.f32 0.0, %v1019
        %1021 = vmatmul.f32.gmra.mxu0 %v448
        %v1022 = vpop.f32.mrf.mxu0
        %v1023 = vadd.f32 0.0, %v1022
        %1024 = vmatmul.f32.gmra.mxu0 %v451
        %v1025 = vpop.f32.mrf.mxu0
        %v1026 = vadd.f32 0.0, %v1025
        %1027 = vmatmul.f32.gmra.mxu0 %v454
        %v1028 = vpop.f32.mrf.mxu0
        %v1029 = vadd.f32 0.0, %v1028
        %1030 = vdwg.mxu0
        %v1031 = vperm.slane %v935, 0
        %v1032 = vsub.s32 %v362, %v1031
        %v1033 = vsub.s32 %v363, %v1031
        %v1034 = vsub.s32 %v364, %v1031
        %vm1035 = vcmp.eq.s32.totalorder %v1032, 0
        %vm1036 = vcmp.eq.s32.totalorder %v1033, 0
        %vm1037 = vcmp.eq.s32.totalorder %v1034, 0
        %v1038 = vperm.slane %v955, 0
        %v1039 = vsel %vm1035, %v1038, 0.0
        %v1040 = vsel %vm1036, %v1038, 0.0
        %v1041 = vsel %vm1037, %v1038, 0.0
        %vm1042 = vcmp.eq.s32.totalorder %v1032, 1
        %vm1043 = vcmp.eq.s32.totalorder %v1033, 1
        %vm1044 = vcmp.eq.s32.totalorder %v1034, 1
        %v1045 = vperm.slane %v956, 0
        %v1046 = vsel %vm1042, %v1045, 0.0
        %v1047 = vsel %vm1043, %v1045, 0.0
        %v1048 = vsel %vm1044, %v1045, 0.0
        %v1049 = vadd.f32 %v1039, %v1046
        %v1050 = vadd.f32 %v1040, %v1047
        %v1051 = vadd.f32 %v1041, %v1048
        %v1052 = vmul.f32 %v996, %v1049
        %v1053 = vmul.f32 %v999, %v1050
        %v1054 = vmul.f32 %v1002, %v1051
        %v1055 = vmul.f32 %v1005, %v1049
        %v1056 = vmul.f32 %v1008, %v1050
        %v1057 = vmul.f32 %v1011, %v1051
        %v1058 = vmul.f32 %v1014, %v1049
        %v1059 = vmul.f32 %v1017, %v1050
        %v1060 = vmul.f32 %v1020, %v1051
        %v1061 = vmul.f32 %v1023, %v1049
        %v1062 = vmul.f32 %v1026, %v1050
        %v1063 = vmul.f32 %v1029, %v1051
        %v1064 = vadd.f32 %v1052, %v1053
        %v1065 = vadd.f32 %v1064, %v1054
        %v1066 = vrot.slane %v1065, 4
        %v1067 = vadd.f32 %v1065, %v1066
        %v1068 = vrot.slane %v1067, 2
        %v1069 = vadd.f32 %v1067, %v1068
        %v1070 = vrot.slane %v1069, 1
        %v1071 = vadd.f32 %v1069, %v1070
        %v1072 = vadd.f32 %v1055, %v1056
        %v1073 = vadd.f32 %v1072, %v1057
        %v1074 = vrot.slane %v1073, 4
        %v1075 = vadd.f32 %v1073, %v1074
        %v1076 = vrot.slane %v1075, 2
        %v1077 = vadd.f32 %v1075, %v1076
        %v1078 = vrot.slane %v1077, 1
        %v1079 = vadd.f32 %v1077, %v1078
        %v1080 = vadd.f32 %v1058, %v1059
        %v1081 = vadd.f32 %v1080, %v1060
        %v1082 = vrot.slane %v1081, 4
        %v1083 = vadd.f32 %v1081, %v1082
        %v1084 = vrot.slane %v1083, 2
        %v1085 = vadd.f32 %v1083, %v1084
        %v1086 = vrot.slane %v1085, 1
        %v1087 = vadd.f32 %v1085, %v1086
        %v1088 = vadd.f32 %v1061, %v1062
        %v1089 = vadd.f32 %v1088, %v1063
        %v1090 = vrot.slane %v1089, 4
        %v1091 = vadd.f32 %v1089, %v1090
        %v1092 = vrot.slane %v1091, 2
        %v1093 = vadd.f32 %v1091, %v1092
        %v1094 = vrot.slane %v1093, 1
        %v1095 = vadd.f32 %v1093, %v1094
        %v1096 = vadd.f32 %v922, %v1071
        %v1097 = vadd.f32 %v923, %v1079
        %v1098 = vadd.f32 %v924, %v1087
        %v1099 = vadd.f32 %v925, %v1095
        %v1100 = vld [vmem:[%s299 + $0x4] sm:$0x1]
        %v1101 = vld [vmem:[%s306 + $0x4] sm:$0x1]
        %s1102 = sadd.s32 %s367, 4
        %s1103 = sld [smem:[#allocation3 + %s1102]]
        %v1104 = vfloor.f32 %v1100
        %v1105 = vfloor.f32 %v1101
        %v1106 = vsub.f32 %v1100, %v1104
        %v1107 = vsub.f32 %v1101, %v1105
        %v1108 = vcvt.f32.s32.to.zero.pseudo %v1104
        %v1109 = vcvt.f32.s32.to.zero.pseudo %v1105
        %vm1110 = vcmp.ge.s32.totalorder %v1108, 0
        %vm1111 = vcmp.lt.s32.totalorder %v1108, 18
        %vm1112 = vmand %vm1110, %vm1111
        %vm1113 = vcmp.ge.s32.totalorder %v1108, 4294967295
        %vm1114 = vcmp.lt.s32.totalorder %v1108, 17
        %vm1115 = vmand %vm1113, %vm1114
        %vm1116 = vcmp.ge.s32.totalorder %v1109, 0
        %vm1117 = vcmp.lt.s32.totalorder %v1109, 18
        %vm1118 = vmand %vm1116, %vm1117
        %vm1119 = vcmp.ge.s32.totalorder %v1109, 4294967295
        %vm1120 = vcmp.lt.s32.totalorder %v1109, 17
        %vm1121 = vmand %vm1119, %vm1120
        %v1122 = vsub.f32 1.0, %v1106
        %v1123 = vstv %s1103
        %v1124 = vmul.f32 %v1122, %v1123
        %v1125 = vsel %vm1112, %v1124, 0.0
        %v1126 = vmul.f32 %v1106, %v1123
        %v1127 = vsel %vm1115, %v1126, 0.0
        %v1128 = vsub.f32 1.0, %v1107
        %v1129 = vsel %vm1118, %v1128, 0.0
        %v1130 = vsel %vm1121, %v1107, 0.0
        %v1131 = vperm.slane %v1108, 0
        %v1132 = vsub.s32 %v362, %v1131
        %v1133 = vsub.s32 %v363, %v1131
        %v1134 = vsub.s32 %v364, %v1131
        %vm1135 = vcmp.eq.s32.totalorder %v1132, 0
        %vm1136 = vcmp.eq.s32.totalorder %v1133, 0
        %vm1137 = vcmp.eq.s32.totalorder %v1134, 0
        %v1138 = vperm.slane %v1125, 0
        %v1139 = vsel %vm1135, %v1138, 0.0
        %v1140 = vsel %vm1136, %v1138, 0.0
        %v1141 = vsel %vm1137, %v1138, 0.0
        %vm1142 = vcmp.eq.s32.totalorder %v1132, 1
        %vm1143 = vcmp.eq.s32.totalorder %v1133, 1
        %vm1144 = vcmp.eq.s32.totalorder %v1134, 1
        %v1145 = vperm.slane %v1127, 0
        %v1146 = vsel %vm1142, %v1145, 0.0
        %v1147 = vsel %vm1143, %v1145, 0.0
        %v1148 = vsel %vm1144, %v1145, 0.0
        %v1149 = vadd.f32 %v1139, %v1146
        %v1150 = vadd.f32 %v1140, %v1147
        %v1151 = vadd.f32 %v1141, %v1148
        %1152 = vmatpush.msra.mxu0 0.0
        %1153 = vmatpush.msra.mxu0 0.0
        %1154 = vmatpush.msra.mxu0 0.0
        %1155 = vmatpush.msra.mxu0 0.0
        %1156 = vmatpush.msra.mxu0 0.0
        %1157 = vmatpush.msra.mxu0 0.0
        %1158 = vmatpush.msra.mxu0 0.0
        %1159 = vmatpush.msra.mxu0 0.0
        %1160 = vmatpush.msra.mxu0 0.0
        %1161 = vmatpush.msra.mxu0 0.0
        %1162 = vmatpush.msra.mxu0 0.0
        %1163 = vmatpush.msra.mxu0 0.0
        %1164 = vmatpush.msra.mxu0 0.0
        %1165 = vmatpush.msra.mxu0 %v1151
        %1166 = vmatpush.msra.mxu0 %v1150
        %1167 = vmatpush.msra.mxu0 %v1149
        %1168 = vmatmul.f32.gmra.mxu0 %v421
        %v1169 = vpop.f32.mrf.mxu0
        %v1170 = vadd.f32 0.0, %v1169
        %1171 = vmatmul.f32.gmra.mxu0 %v424
        %v1172 = vpop.f32.mrf.mxu0
        %v1173 = vadd.f32 0.0, %v1172
        %1174 = vmatmul.f32.gmra.mxu0 %v427
        %v1175 = vpop.f32.mrf.mxu0
        %v1176 = vadd.f32 0.0, %v1175
        %1177 = vmatmul.f32.gmra.mxu0 %v430
        %v1178 = vpop.f32.mrf.mxu0
        %v1179 = vadd.f32 0.0, %v1178
        %1180 = vmatmul.f32.gmra.mxu0 %v433
        %v1181 = vpop.f32.mrf.mxu0
        %v1182 = vadd.f32 0.0, %v1181
        %1183 = vmatmul.f32.gmra.mxu0 %v436
        %v1184 = vpop.f32.mrf.mxu0
        %v1185 = vadd.f32 0.0, %v1184
        %1186 = vmatmul.f32.gmra.mxu0 %v439
        %v1187 = vpop.f32.mrf.mxu0
        %v1188 = vadd.f32 0.0, %v1187
        %1189 = vmatmul.f32.gmra.mxu0 %v442
        %v1190 = vpop.f32.mrf.mxu0
        %v1191 = vadd.f32 0.0, %v1190
        %1192 = vmatmul.f32.gmra.mxu0 %v445
        %v1193 = vpop.f32.mrf.mxu0
        %v1194 = vadd.f32 0.0, %v1193
        %1195 = vmatmul.f32.gmra.mxu0 %v448
        %v1196 = vpop.f32.mrf.mxu0
        %v1197 = vadd.f32 0.0, %v1196
        %1198 = vmatmul.f32.gmra.mxu0 %v451
        %v1199 = vpop.f32.mrf.mxu0
        %v1200 = vadd.f32 0.0, %v1199
        %1201 = vmatmul.f32.gmra.mxu0 %v454
        %v1202 = vpop.f32.mrf.mxu0
        %v1203 = vadd.f32 0.0, %v1202
        %1204 = vdwg.mxu0
        %v1205 = vperm.slane %v1109, 0
        %v1206 = vsub.s32 %v362, %v1205
        %v1207 = vsub.s32 %v363, %v1205
        %v1208 = vsub.s32 %v364, %v1205
        %vm1209 = vcmp.eq.s32.totalorder %v1206, 0
        %vm1210 = vcmp.eq.s32.totalorder %v1207, 0
        %vm1211 = vcmp.eq.s32.totalorder %v1208, 0
        %v1212 = vperm.slane %v1129, 0
        %v1213 = vsel %vm1209, %v1212, 0.0
        %v1214 = vsel %vm1210, %v1212, 0.0
        %v1215 = vsel %vm1211, %v1212, 0.0
        %vm1216 = vcmp.eq.s32.totalorder %v1206, 1
        %vm1217 = vcmp.eq.s32.totalorder %v1207, 1
        %vm1218 = vcmp.eq.s32.totalorder %v1208, 1
        %v1219 = vperm.slane %v1130, 0
        %v1220 = vsel %vm1216, %v1219, 0.0
        %v1221 = vsel %vm1217, %v1219, 0.0
        %v1222 = vsel %vm1218, %v1219, 0.0
        %v1223 = vadd.f32 %v1213, %v1220
        %v1224 = vadd.f32 %v1214, %v1221
        %v1225 = vadd.f32 %v1215, %v1222
        %v1226 = vmul.f32 %v1170, %v1223
        %v1227 = vmul.f32 %v1173, %v1224
        %v1228 = vmul.f32 %v1176, %v1225
        %v1229 = vmul.f32 %v1179, %v1223
        %v1230 = vmul.f32 %v1182, %v1224
        %v1231 = vmul.f32 %v1185, %v1225
        %v1232 = vmul.f32 %v1188, %v1223
        %v1233 = vmul.f32 %v1191, %v1224
        %v1234 = vmul.f32 %v1194, %v1225
        %v1235 = vmul.f32 %v1197, %v1223
        %v1236 = vmul.f32 %v1200, %v1224
        %v1237 = vmul.f32 %v1203, %v1225
        %v1238 = vadd.f32 %v1226, %v1227
        %v1239 = vadd.f32 %v1238, %v1228
        %v1240 = vrot.slane %v1239, 4
        %v1241 = vadd.f32 %v1239, %v1240
        %v1242 = vrot.slane %v1241, 2
        %v1243 = vadd.f32 %v1241, %v1242
        %v1244 = vrot.slane %v1243, 1
        %v1245 = vadd.f32 %v1243, %v1244
        %v1246 = vadd.f32 %v1229, %v1230
        %v1247 = vadd.f32 %v1246, %v1231
        %v1248 = vrot.slane %v1247, 4
        %v1249 = vadd.f32 %v1247, %v1248
        %v1250 = vrot.slane %v1249, 2
        %v1251 = vadd.f32 %v1249, %v1250
        %v1252 = vrot.slane %v1251, 1
        %v1253 = vadd.f32 %v1251, %v1252
        %v1254 = vadd.f32 %v1232, %v1233
        %v1255 = vadd.f32 %v1254, %v1234
        %v1256 = vrot.slane %v1255, 4
        %v1257 = vadd.f32 %v1255, %v1256
        %v1258 = vrot.slane %v1257, 2
        %v1259 = vadd.f32 %v1257, %v1258
        %v1260 = vrot.slane %v1259, 1
        %v1261 = vadd.f32 %v1259, %v1260
        %v1262 = vadd.f32 %v1235, %v1236
        %v1263 = vadd.f32 %v1262, %v1237
        %v1264 = vrot.slane %v1263, 4
        %v1265 = vadd.f32 %v1263, %v1264
        %v1266 = vrot.slane %v1265, 2
        %v1267 = vadd.f32 %v1265, %v1266
        %v1268 = vrot.slane %v1267, 1
        %v1269 = vadd.f32 %v1267, %v1268
        %v1270 = vadd.f32 %v1096, %v1245
        %v1271 = vadd.f32 %v1097, %v1253
        %v1272 = vadd.f32 %v1098, %v1261
        %v1273 = vadd.f32 %v1099, %v1269
        %v1274 = vld [vmem:[%s299 + $0x5] sm:$0x1]
        %v1275 = vld [vmem:[%s306 + $0x5] sm:$0x1]
        %s1276 = sadd.s32 %s367, 5
        %s1277 = sld [smem:[#allocation3 + %s1276]]
        %v1278 = vfloor.f32 %v1274
        %v1279 = vfloor.f32 %v1275
        %v1280 = vsub.f32 %v1274, %v1278
        %v1281 = vsub.f32 %v1275, %v1279
        %v1282 = vcvt.f32.s32.to.zero.pseudo %v1278
        %v1283 = vcvt.f32.s32.to.zero.pseudo %v1279
        %vm1284 = vcmp.ge.s32.totalorder %v1282, 0
        %vm1285 = vcmp.lt.s32.totalorder %v1282, 18
        %vm1286 = vmand %vm1284, %vm1285
        %vm1287 = vcmp.ge.s32.totalorder %v1282, 4294967295
        %vm1288 = vcmp.lt.s32.totalorder %v1282, 17
        %vm1289 = vmand %vm1287, %vm1288
        %vm1290 = vcmp.ge.s32.totalorder %v1283, 0
        %vm1291 = vcmp.lt.s32.totalorder %v1283, 18
        %vm1292 = vmand %vm1290, %vm1291
        %vm1293 = vcmp.ge.s32.totalorder %v1283, 4294967295
        %vm1294 = vcmp.lt.s32.totalorder %v1283, 17
        %vm1295 = vmand %vm1293, %vm1294
        %v1296 = vsub.f32 1.0, %v1280
        %v1297 = vstv %s1277
        %v1298 = vmul.f32 %v1296, %v1297
        %v1299 = vsel %vm1286, %v1298, 0.0
        %v1300 = vmul.f32 %v1280, %v1297
        %v1301 = vsel %vm1289, %v1300, 0.0
        %v1302 = vsub.f32 1.0, %v1281
        %v1303 = vsel %vm1292, %v1302, 0.0
        %v1304 = vsel %vm1295, %v1281, 0.0
        %v1305 = vperm.slane %v1282, 0
        %v1306 = vsub.s32 %v362, %v1305
        %v1307 = vsub.s32 %v363, %v1305
        %v1308 = vsub.s32 %v364, %v1305
        %vm1309 = vcmp.eq.s32.totalorder %v1306, 0
        %vm1310 = vcmp.eq.s32.totalorder %v1307, 0
        %vm1311 = vcmp.eq.s32.totalorder %v1308, 0
        %v1312 = vperm.slane %v1299, 0
        %v1313 = vsel %vm1309, %v1312, 0.0
        %v1314 = vsel %vm1310, %v1312, 0.0
        %v1315 = vsel %vm1311, %v1312, 0.0
        %vm1316 = vcmp.eq.s32.totalorder %v1306, 1
        %vm1317 = vcmp.eq.s32.totalorder %v1307, 1
        %vm1318 = vcmp.eq.s32.totalorder %v1308, 1
        %v1319 = vperm.slane %v1301, 0
        %v1320 = vsel %vm1316, %v1319, 0.0
        %v1321 = vsel %vm1317, %v1319, 0.0
        %v1322 = vsel %vm1318, %v1319, 0.0
        %v1323 = vadd.f32 %v1313, %v1320
        %v1324 = vadd.f32 %v1314, %v1321
        %v1325 = vadd.f32 %v1315, %v1322
        %1326 = vmatpush.msra.mxu0 0.0
        %1327 = vmatpush.msra.mxu0 0.0
        %1328 = vmatpush.msra.mxu0 0.0
        %1329 = vmatpush.msra.mxu0 0.0
        %1330 = vmatpush.msra.mxu0 0.0
        %1331 = vmatpush.msra.mxu0 0.0
        %1332 = vmatpush.msra.mxu0 0.0
        %1333 = vmatpush.msra.mxu0 0.0
        %1334 = vmatpush.msra.mxu0 0.0
        %1335 = vmatpush.msra.mxu0 0.0
        %1336 = vmatpush.msra.mxu0 0.0
        %1337 = vmatpush.msra.mxu0 0.0
        %1338 = vmatpush.msra.mxu0 0.0
        %1339 = vmatpush.msra.mxu0 %v1325
        %1340 = vmatpush.msra.mxu0 %v1324
        %1341 = vmatpush.msra.mxu0 %v1323
        %1342 = vmatmul.f32.gmra.mxu0 %v421
        %v1343 = vpop.f32.mrf.mxu0
        %v1344 = vadd.f32 0.0, %v1343
        %1345 = vmatmul.f32.gmra.mxu0 %v424
        %v1346 = vpop.f32.mrf.mxu0
        %v1347 = vadd.f32 0.0, %v1346
        %1348 = vmatmul.f32.gmra.mxu0 %v427
        %v1349 = vpop.f32.mrf.mxu0
        %v1350 = vadd.f32 0.0, %v1349
        %1351 = vmatmul.f32.gmra.mxu0 %v430
        %v1352 = vpop.f32.mrf.mxu0
        %v1353 = vadd.f32 0.0, %v1352
        %1354 = vmatmul.f32.gmra.mxu0 %v433
        %v1355 = vpop.f32.mrf.mxu0
        %v1356 = vadd.f32 0.0, %v1355
        %1357 = vmatmul.f32.gmra.mxu0 %v436
        %v1358 = vpop.f32.mrf.mxu0
        %v1359 = vadd.f32 0.0, %v1358
        %1360 = vmatmul.f32.gmra.mxu0 %v439
        %v1361 = vpop.f32.mrf.mxu0
        %v1362 = vadd.f32 0.0, %v1361
        %1363 = vmatmul.f32.gmra.mxu0 %v442
        %v1364 = vpop.f32.mrf.mxu0
        %v1365 = vadd.f32 0.0, %v1364
        %1366 = vmatmul.f32.gmra.mxu0 %v445
        %v1367 = vpop.f32.mrf.mxu0
        %v1368 = vadd.f32 0.0, %v1367
        %1369 = vmatmul.f32.gmra.mxu0 %v448
        %v1370 = vpop.f32.mrf.mxu0
        %v1371 = vadd.f32 0.0, %v1370
        %1372 = vmatmul.f32.gmra.mxu0 %v451
        %v1373 = vpop.f32.mrf.mxu0
        %v1374 = vadd.f32 0.0, %v1373
        %1375 = vmatmul.f32.gmra.mxu0 %v454
        %v1376 = vpop.f32.mrf.mxu0
        %v1377 = vadd.f32 0.0, %v1376
        %1378 = vdwg.mxu0
        %v1379 = vperm.slane %v1283, 0
        %v1380 = vsub.s32 %v362, %v1379
        %v1381 = vsub.s32 %v363, %v1379
        %v1382 = vsub.s32 %v364, %v1379
        %vm1383 = vcmp.eq.s32.totalorder %v1380, 0
        %vm1384 = vcmp.eq.s32.totalorder %v1381, 0
        %vm1385 = vcmp.eq.s32.totalorder %v1382, 0
        %v1386 = vperm.slane %v1303, 0
        %v1387 = vsel %vm1383, %v1386, 0.0
        %v1388 = vsel %vm1384, %v1386, 0.0
        %v1389 = vsel %vm1385, %v1386, 0.0
        %vm1390 = vcmp.eq.s32.totalorder %v1380, 1
        %vm1391 = vcmp.eq.s32.totalorder %v1381, 1
        %vm1392 = vcmp.eq.s32.totalorder %v1382, 1
        %v1393 = vperm.slane %v1304, 0
        %v1394 = vsel %vm1390, %v1393, 0.0
        %v1395 = vsel %vm1391, %v1393, 0.0
        %v1396 = vsel %vm1392, %v1393, 0.0
        %v1397 = vadd.f32 %v1387, %v1394
        %v1398 = vadd.f32 %v1388, %v1395
        %v1399 = vadd.f32 %v1389, %v1396
        %v1400 = vmul.f32 %v1344, %v1397
        %v1401 = vmul.f32 %v1347, %v1398
        %v1402 = vmul.f32 %v1350, %v1399
        %v1403 = vmul.f32 %v1353, %v1397
        %v1404 = vmul.f32 %v1356, %v1398
        %v1405 = vmul.f32 %v1359, %v1399
        %v1406 = vmul.f32 %v1362, %v1397
        %v1407 = vmul.f32 %v1365, %v1398
        %v1408 = vmul.f32 %v1368, %v1399
        %v1409 = vmul.f32 %v1371, %v1397
        %v1410 = vmul.f32 %v1374, %v1398
        %v1411 = vmul.f32 %v1377, %v1399
        %v1412 = vadd.f32 %v1400, %v1401
        %v1413 = vadd.f32 %v1412, %v1402
        %v1414 = vrot.slane %v1413, 4
        %v1415 = vadd.f32 %v1413, %v1414
        %v1416 = vrot.slane %v1415, 2
        %v1417 = vadd.f32 %v1415, %v1416
        %v1418 = vrot.slane %v1417, 1
        %v1419 = vadd.f32 %v1417, %v1418
        %v1420 = vadd.f32 %v1403, %v1404
        %v1421 = vadd.f32 %v1420, %v1405
        %v1422 = vrot.slane %v1421, 4
        %v1423 = vadd.f32 %v1421, %v1422
        %v1424 = vrot.slane %v1423, 2
        %v1425 = vadd.f32 %v1423, %v1424
        %v1426 = vrot.slane %v1425, 1
        %v1427 = vadd.f32 %v1425, %v1426
        %v1428 = vadd.f32 %v1406, %v1407
        %v1429 = vadd.f32 %v1428, %v1408
        %v1430 = vrot.slane %v1429, 4
        %v1431 = vadd.f32 %v1429, %v1430
        %v1432 = vrot.slane %v1431, 2
        %v1433 = vadd.f32 %v1431, %v1432
        %v1434 = vrot.slane %v1433, 1
        %v1435 = vadd.f32 %v1433, %v1434
        %v1436 = vadd.f32 %v1409, %v1410
        %v1437 = vadd.f32 %v1436, %v1411
        %v1438 = vrot.slane %v1437, 4
        %v1439 = vadd.f32 %v1437, %v1438
        %v1440 = vrot.slane %v1439, 2
        %v1441 = vadd.f32 %v1439, %v1440
        %v1442 = vrot.slane %v1441, 1
        %v1443 = vadd.f32 %v1441, %v1442
        %v1444 = vadd.f32 %v1270, %v1419
        %v1445 = vadd.f32 %v1271, %v1427
        %v1446 = vadd.f32 %v1272, %v1435
        %v1447 = vadd.f32 %v1273, %v1443
        %v1448 = vld [vmem:[%s299 + $0x6] sm:$0x1]
        %v1449 = vld [vmem:[%s306 + $0x6] sm:$0x1]
        %s1450 = sadd.s32 %s367, 6
        %s1451 = sld [smem:[#allocation3 + %s1450]]
        %v1452 = vfloor.f32 %v1448
        %v1453 = vfloor.f32 %v1449
        %v1454 = vsub.f32 %v1448, %v1452
        %v1455 = vsub.f32 %v1449, %v1453
        %v1456 = vcvt.f32.s32.to.zero.pseudo %v1452
        %v1457 = vcvt.f32.s32.to.zero.pseudo %v1453
        %vm1458 = vcmp.ge.s32.totalorder %v1456, 0
        %vm1459 = vcmp.lt.s32.totalorder %v1456, 18
        %vm1460 = vmand %vm1458, %vm1459
        %vm1461 = vcmp.ge.s32.totalorder %v1456, 4294967295
        %vm1462 = vcmp.lt.s32.totalorder %v1456, 17
        %vm1463 = vmand %vm1461, %vm1462
        %vm1464 = vcmp.ge.s32.totalorder %v1457, 0
        %vm1465 = vcmp.lt.s32.totalorder %v1457, 18
        %vm1466 = vmand %vm1464, %vm1465
        %vm1467 = vcmp.ge.s32.totalorder %v1457, 4294967295
        %vm1468 = vcmp.lt.s32.totalorder %v1457, 17
        %vm1469 = vmand %vm1467, %vm1468
        %v1470 = vsub.f32 1.0, %v1454
        %v1471 = vstv %s1451
        %v1472 = vmul.f32 %v1470, %v1471
        %v1473 = vsel %vm1460, %v1472, 0.0
        %v1474 = vmul.f32 %v1454, %v1471
        %v1475 = vsel %vm1463, %v1474, 0.0
        %v1476 = vsub.f32 1.0, %v1455
        %v1477 = vsel %vm1466, %v1476, 0.0
        %v1478 = vsel %vm1469, %v1455, 0.0
        %v1479 = vperm.slane %v1456, 0
        %v1480 = vsub.s32 %v362, %v1479
        %v1481 = vsub.s32 %v363, %v1479
        %v1482 = vsub.s32 %v364, %v1479
        %vm1483 = vcmp.eq.s32.totalorder %v1480, 0
        %vm1484 = vcmp.eq.s32.totalorder %v1481, 0
        %vm1485 = vcmp.eq.s32.totalorder %v1482, 0
        %v1486 = vperm.slane %v1473, 0
        %v1487 = vsel %vm1483, %v1486, 0.0
        %v1488 = vsel %vm1484, %v1486, 0.0
        %v1489 = vsel %vm1485, %v1486, 0.0
        %vm1490 = vcmp.eq.s32.totalorder %v1480, 1
        %vm1491 = vcmp.eq.s32.totalorder %v1481, 1
        %vm1492 = vcmp.eq.s32.totalorder %v1482, 1
        %v1493 = vperm.slane %v1475, 0
        %v1494 = vsel %vm1490, %v1493, 0.0
        %v1495 = vsel %vm1491, %v1493, 0.0
        %v1496 = vsel %vm1492, %v1493, 0.0
        %v1497 = vadd.f32 %v1487, %v1494
        %v1498 = vadd.f32 %v1488, %v1495
        %v1499 = vadd.f32 %v1489, %v1496
        %1500 = vmatpush.msra.mxu0 0.0
        %1501 = vmatpush.msra.mxu0 0.0
        %1502 = vmatpush.msra.mxu0 0.0
        %1503 = vmatpush.msra.mxu0 0.0
        %1504 = vmatpush.msra.mxu0 0.0
        %1505 = vmatpush.msra.mxu0 0.0
        %1506 = vmatpush.msra.mxu0 0.0
        %1507 = vmatpush.msra.mxu0 0.0
        %1508 = vmatpush.msra.mxu0 0.0
        %1509 = vmatpush.msra.mxu0 0.0
        %1510 = vmatpush.msra.mxu0 0.0
        %1511 = vmatpush.msra.mxu0 0.0
        %1512 = vmatpush.msra.mxu0 0.0
        %1513 = vmatpush.msra.mxu0 %v1499
        %1514 = vmatpush.msra.mxu0 %v1498
        %1515 = vmatpush.msra.mxu0 %v1497
        %1516 = vmatmul.f32.gmra.mxu0 %v421
        %v1517 = vpop.f32.mrf.mxu0
        %v1518 = vadd.f32 0.0, %v1517
        %1519 = vmatmul.f32.gmra.mxu0 %v424
        %v1520 = vpop.f32.mrf.mxu0
        %v1521 = vadd.f32 0.0, %v1520
        %1522 = vmatmul.f32.gmra.mxu0 %v427
        %v1523 = vpop.f32.mrf.mxu0
        %v1524 = vadd.f32 0.0, %v1523
        %1525 = vmatmul.f32.gmra.mxu0 %v430
        %v1526 = vpop.f32.mrf.mxu0
        %v1527 = vadd.f32 0.0, %v1526
        %1528 = vmatmul.f32.gmra.mxu0 %v433
        %v1529 = vpop.f32.mrf.mxu0
        %v1530 = vadd.f32 0.0, %v1529
        %1531 = vmatmul.f32.gmra.mxu0 %v436
        %v1532 = vpop.f32.mrf.mxu0
        %v1533 = vadd.f32 0.0, %v1532
        %1534 = vmatmul.f32.gmra.mxu0 %v439
        %v1535 = vpop.f32.mrf.mxu0
        %v1536 = vadd.f32 0.0, %v1535
        %1537 = vmatmul.f32.gmra.mxu0 %v442
        %v1538 = vpop.f32.mrf.mxu0
        %v1539 = vadd.f32 0.0, %v1538
        %1540 = vmatmul.f32.gmra.mxu0 %v445
        %v1541 = vpop.f32.mrf.mxu0
        %v1542 = vadd.f32 0.0, %v1541
        %1543 = vmatmul.f32.gmra.mxu0 %v448
        %v1544 = vpop.f32.mrf.mxu0
        %v1545 = vadd.f32 0.0, %v1544
        %1546 = vmatmul.f32.gmra.mxu0 %v451
        %v1547 = vpop.f32.mrf.mxu0
        %v1548 = vadd.f32 0.0, %v1547
        %1549 = vmatmul.f32.gmra.mxu0 %v454
        %v1550 = vpop.f32.mrf.mxu0
        %v1551 = vadd.f32 0.0, %v1550
        %1552 = vdwg.mxu0
        %v1553 = vperm.slane %v1457, 0
        %v1554 = vsub.s32 %v362, %v1553
        %v1555 = vsub.s32 %v363, %v1553
        %v1556 = vsub.s32 %v364, %v1553
        %vm1557 = vcmp.eq.s32.totalorder %v1554, 0
        %vm1558 = vcmp.eq.s32.totalorder %v1555, 0
        %vm1559 = vcmp.eq.s32.totalorder %v1556, 0
        %v1560 = vperm.slane %v1477, 0
        %v1561 = vsel %vm1557, %v1560, 0.0
        %v1562 = vsel %vm1558, %v1560, 0.0
        %v1563 = vsel %vm1559, %v1560, 0.0
        %vm1564 = vcmp.eq.s32.totalorder %v1554, 1
        %vm1565 = vcmp.eq.s32.totalorder %v1555, 1
        %vm1566 = vcmp.eq.s32.totalorder %v1556, 1
        %v1567 = vperm.slane %v1478, 0
        %v1568 = vsel %vm1564, %v1567, 0.0
        %v1569 = vsel %vm1565, %v1567, 0.0
        %v1570 = vsel %vm1566, %v1567, 0.0
        %v1571 = vadd.f32 %v1561, %v1568
        %v1572 = vadd.f32 %v1562, %v1569
        %v1573 = vadd.f32 %v1563, %v1570
        %v1574 = vmul.f32 %v1518, %v1571
        %v1575 = vmul.f32 %v1521, %v1572
        %v1576 = vmul.f32 %v1524, %v1573
        %v1577 = vmul.f32 %v1527, %v1571
        %v1578 = vmul.f32 %v1530, %v1572
        %v1579 = vmul.f32 %v1533, %v1573
        %v1580 = vmul.f32 %v1536, %v1571
        %v1581 = vmul.f32 %v1539, %v1572
        %v1582 = vmul.f32 %v1542, %v1573
        %v1583 = vmul.f32 %v1545, %v1571
        %v1584 = vmul.f32 %v1548, %v1572
        %v1585 = vmul.f32 %v1551, %v1573
        %v1586 = vadd.f32 %v1574, %v1575
        %v1587 = vadd.f32 %v1586, %v1576
        %v1588 = vrot.slane %v1587, 4
        %v1589 = vadd.f32 %v1587, %v1588
        %v1590 = vrot.slane %v1589, 2
        %v1591 = vadd.f32 %v1589, %v1590
        %v1592 = vrot.slane %v1591, 1
        %v1593 = vadd.f32 %v1591, %v1592
        %v1594 = vadd.f32 %v1577, %v1578
        %v1595 = vadd.f32 %v1594, %v1579
        %v1596 = vrot.slane %v1595, 4
        %v1597 = vadd.f32 %v1595, %v1596
        %v1598 = vrot.slane %v1597, 2
        %v1599 = vadd.f32 %v1597, %v1598
        %v1600 = vrot.slane %v1599, 1
        %v1601 = vadd.f32 %v1599, %v1600
        %v1602 = vadd.f32 %v1580, %v1581
        %v1603 = vadd.f32 %v1602, %v1582
        %v1604 = vrot.slane %v1603, 4
        %v1605 = vadd.f32 %v1603, %v1604
        %v1606 = vrot.slane %v1605, 2
        %v1607 = vadd.f32 %v1605, %v1606
        %v1608 = vrot.slane %v1607, 1
        %v1609 = vadd.f32 %v1607, %v1608
        %v1610 = vadd.f32 %v1583, %v1584
        %v1611 = vadd.f32 %v1610, %v1585
        %v1612 = vrot.slane %v1611, 4
        %v1613 = vadd.f32 %v1611, %v1612
        %v1614 = vrot.slane %v1613, 2
        %v1615 = vadd.f32 %v1613, %v1614
        %v1616 = vrot.slane %v1615, 1
        %v1617 = vadd.f32 %v1615, %v1616
        %v1618 = vadd.f32 %v1444, %v1593
        %v1619 = vadd.f32 %v1445, %v1601
        %v1620 = vadd.f32 %v1446, %v1609
        %v1621 = vadd.f32 %v1447, %v1617
        %v1622 = vld [vmem:[%s299 + $0x7] sm:$0x1]
        %v1623 = vld [vmem:[%s306 + $0x7] sm:$0x1]
        %s1624 = sadd.s32 %s367, 7
        %s1625 = sld [smem:[#allocation3 + %s1624]]
        %v1626 = vfloor.f32 %v1622
        %v1627 = vfloor.f32 %v1623
        %v1628 = vsub.f32 %v1622, %v1626
        %v1629 = vsub.f32 %v1623, %v1627
        %v1630 = vcvt.f32.s32.to.zero.pseudo %v1626
        %v1631 = vcvt.f32.s32.to.zero.pseudo %v1627
        %vm1632 = vcmp.ge.s32.totalorder %v1630, 0
        %vm1633 = vcmp.lt.s32.totalorder %v1630, 18
        %vm1634 = vmand %vm1632, %vm1633
        %vm1635 = vcmp.ge.s32.totalorder %v1630, 4294967295
        %vm1636 = vcmp.lt.s32.totalorder %v1630, 17
        %vm1637 = vmand %vm1635, %vm1636
        %vm1638 = vcmp.ge.s32.totalorder %v1631, 0
        %vm1639 = vcmp.lt.s32.totalorder %v1631, 18
        %vm1640 = vmand %vm1638, %vm1639
        %vm1641 = vcmp.ge.s32.totalorder %v1631, 4294967295
        %vm1642 = vcmp.lt.s32.totalorder %v1631, 17
        %vm1643 = vmand %vm1641, %vm1642
        %v1644 = vsub.f32 1.0, %v1628
        %v1645 = vstv %s1625
        %v1646 = vmul.f32 %v1644, %v1645
        %v1647 = vsel %vm1634, %v1646, 0.0
        %v1648 = vmul.f32 %v1628, %v1645
        %v1649 = vsel %vm1637, %v1648, 0.0
        %v1650 = vsub.f32 1.0, %v1629
        %v1651 = vsel %vm1640, %v1650, 0.0
        %v1652 = vsel %vm1643, %v1629, 0.0
        %v1653 = vperm.slane %v1630, 0
        %v1654 = vsub.s32 %v362, %v1653
        %v1655 = vsub.s32 %v363, %v1653
        %v1656 = vsub.s32 %v364, %v1653
        %vm1657 = vcmp.eq.s32.totalorder %v1654, 0
        %vm1658 = vcmp.eq.s32.totalorder %v1655, 0
        %vm1659 = vcmp.eq.s32.totalorder %v1656, 0
        %v1660 = vperm.slane %v1647, 0
        %v1661 = vsel %vm1657, %v1660, 0.0
        %v1662 = vsel %vm1658, %v1660, 0.0
        %v1663 = vsel %vm1659, %v1660, 0.0
        %vm1664 = vcmp.eq.s32.totalorder %v1654, 1
        %vm1665 = vcmp.eq.s32.totalorder %v1655, 1
        %vm1666 = vcmp.eq.s32.totalorder %v1656, 1
        %v1667 = vperm.slane %v1649, 0
        %v1668 = vsel %vm1664, %v1667, 0.0
        %v1669 = vsel %vm1665, %v1667, 0.0
        %v1670 = vsel %vm1666, %v1667, 0.0
        %v1671 = vadd.f32 %v1661, %v1668
        %v1672 = vadd.f32 %v1662, %v1669
        %v1673 = vadd.f32 %v1663, %v1670
        %1674 = vmatpush.msra.mxu0 0.0
        %1675 = vmatpush.msra.mxu0 0.0
        %1676 = vmatpush.msra.mxu0 0.0
        %1677 = vmatpush.msra.mxu0 0.0
        %1678 = vmatpush.msra.mxu0 0.0
        %1679 = vmatpush.msra.mxu0 0.0
        %1680 = vmatpush.msra.mxu0 0.0
        %1681 = vmatpush.msra.mxu0 0.0
        %1682 = vmatpush.msra.mxu0 0.0
        %1683 = vmatpush.msra.mxu0 0.0
        %1684 = vmatpush.msra.mxu0 0.0
        %1685 = vmatpush.msra.mxu0 0.0
        %1686 = vmatpush.msra.mxu0 0.0
        %1687 = vmatpush.msra.mxu0 %v1673
        %1688 = vmatpush.msra.mxu0 %v1672
        %1689 = vmatpush.msra.mxu0 %v1671
        %1690 = vmatmul.f32.gmra.mxu0 %v421
        %v1691 = vpop.f32.mrf.mxu0
        %v1692 = vadd.f32 0.0, %v1691
        %1693 = vmatmul.f32.gmra.mxu0 %v424
        %v1694 = vpop.f32.mrf.mxu0
        %v1695 = vadd.f32 0.0, %v1694
        %1696 = vmatmul.f32.gmra.mxu0 %v427
        %v1697 = vpop.f32.mrf.mxu0
        %v1698 = vadd.f32 0.0, %v1697
        %1699 = vmatmul.f32.gmra.mxu0 %v430
        %v1700 = vpop.f32.mrf.mxu0
        %v1701 = vadd.f32 0.0, %v1700
        %1702 = vmatmul.f32.gmra.mxu0 %v433
        %v1703 = vpop.f32.mrf.mxu0
        %v1704 = vadd.f32 0.0, %v1703
        %1705 = vmatmul.f32.gmra.mxu0 %v436
        %v1706 = vpop.f32.mrf.mxu0
        %v1707 = vadd.f32 0.0, %v1706
        %1708 = vmatmul.f32.gmra.mxu0 %v439
        %v1709 = vpop.f32.mrf.mxu0
        %v1710 = vadd.f32 0.0, %v1709
        %1711 = vmatmul.f32.gmra.mxu0 %v442
        %v1712 = vpop.f32.mrf.mxu0
        %v1713 = vadd.f32 0.0, %v1712
        %1714 = vmatmul.f32.gmra.mxu0 %v445
        %v1715 = vpop.f32.mrf.mxu0
        %v1716 = vadd.f32 0.0, %v1715
        %1717 = vmatmul.f32.gmra.mxu0 %v448
        %v1718 = vpop.f32.mrf.mxu0
        %v1719 = vadd.f32 0.0, %v1718
        %1720 = vmatmul.f32.gmra.mxu0 %v451
        %v1721 = vpop.f32.mrf.mxu0
        %v1722 = vadd.f32 0.0, %v1721
        %1723 = vmatmul.f32.gmra.mxu0 %v454
        %v1724 = vpop.f32.mrf.mxu0
        %v1725 = vadd.f32 0.0, %v1724
        %1726 = vdwg.mxu0
        %v1727 = vperm.slane %v1631, 0
        %v1728 = vsub.s32 %v362, %v1727
        %v1729 = vsub.s32 %v363, %v1727
        %v1730 = vsub.s32 %v364, %v1727
        %vm1731 = vcmp.eq.s32.totalorder %v1728, 0
        %vm1732 = vcmp.eq.s32.totalorder %v1729, 0
        %vm1733 = vcmp.eq.s32.totalorder %v1730, 0
        %v1734 = vperm.slane %v1651, 0
        %v1735 = vsel %vm1731, %v1734, 0.0
        %v1736 = vsel %vm1732, %v1734, 0.0
        %v1737 = vsel %vm1733, %v1734, 0.0
        %vm1738 = vcmp.eq.s32.totalorder %v1728, 1
        %vm1739 = vcmp.eq.s32.totalorder %v1729, 1
        %vm1740 = vcmp.eq.s32.totalorder %v1730, 1
        %v1741 = vperm.slane %v1652, 0
        %v1742 = vsel %vm1738, %v1741, 0.0
        %v1743 = vsel %vm1739, %v1741, 0.0
        %v1744 = vsel %vm1740, %v1741, 0.0
        %v1745 = vadd.f32 %v1735, %v1742
        %v1746 = vadd.f32 %v1736, %v1743
        %v1747 = vadd.f32 %v1737, %v1744
        %v1748 = vmul.f32 %v1692, %v1745
        %v1749 = vmul.f32 %v1695, %v1746
        %v1750 = vmul.f32 %v1698, %v1747
        %v1751 = vmul.f32 %v1701, %v1745
        %v1752 = vmul.f32 %v1704, %v1746
        %v1753 = vmul.f32 %v1707, %v1747
        %v1754 = vmul.f32 %v1710, %v1745
        %v1755 = vmul.f32 %v1713, %v1746
        %v1756 = vmul.f32 %v1716, %v1747
        %v1757 = vmul.f32 %v1719, %v1745
        %v1758 = vmul.f32 %v1722, %v1746
        %v1759 = vmul.f32 %v1725, %v1747
        %v1760 = vadd.f32 %v1748, %v1749
        %v1761 = vadd.f32 %v1760, %v1750
        %v1762 = vrot.slane %v1761, 4
        %v1763 = vadd.f32 %v1761, %v1762
        %v1764 = vrot.slane %v1763, 2
        %v1765 = vadd.f32 %v1763, %v1764
        %v1766 = vrot.slane %v1765, 1
        %v1767 = vadd.f32 %v1765, %v1766
        %v1768 = vadd.f32 %v1751, %v1752
        %v1769 = vadd.f32 %v1768, %v1753
        %v1770 = vrot.slane %v1769, 4
        %v1771 = vadd.f32 %v1769, %v1770
        %v1772 = vrot.slane %v1771, 2
        %v1773 = vadd.f32 %v1771, %v1772
        %v1774 = vrot.slane %v1773, 1
        %v1775 = vadd.f32 %v1773, %v1774
        %v1776 = vadd.f32 %v1754, %v1755
        %v1777 = vadd.f32 %v1776, %v1756
        %v1778 = vrot.slane %v1777, 4
        %v1779 = vadd.f32 %v1777, %v1778
        %v1780 = vrot.slane %v1779, 2
        %v1781 = vadd.f32 %v1779, %v1780
        %v1782 = vrot.slane %v1781, 1
        %v1783 = vadd.f32 %v1781, %v1782
        %v1784 = vadd.f32 %v1757, %v1758
        %v1785 = vadd.f32 %v1784, %v1759
        %v1786 = vrot.slane %v1785, 4
        %v1787 = vadd.f32 %v1785, %v1786
        %v1788 = vrot.slane %v1787, 2
        %v1789 = vadd.f32 %v1787, %v1788
        %v1790 = vrot.slane %v1789, 1
        %v1791 = vadd.f32 %v1789, %v1790
        %v1792 = vadd.f32 %v1618, %v1767
        %v1793 = vadd.f32 %v1619, %v1775
        %v1794 = vadd.f32 %v1620, %v1783
        %v1795 = vadd.f32 %v1621, %v1791
        %v1796 = vld [vmem:[%s299 + $0x8] sm:$0x1]
        %v1797 = vld [vmem:[%s306 + $0x8] sm:$0x1]
        %s1798 = sadd.s32 %s367, 8
        %s1799 = sld [smem:[#allocation3 + %s1798]]
        %v1800 = vfloor.f32 %v1796
        %v1801 = vfloor.f32 %v1797
        %v1802 = vsub.f32 %v1796, %v1800
        %v1803 = vsub.f32 %v1797, %v1801
        %v1804 = vcvt.f32.s32.to.zero.pseudo %v1800
        %v1805 = vcvt.f32.s32.to.zero.pseudo %v1801
        %vm1806 = vcmp.ge.s32.totalorder %v1804, 0
        %vm1807 = vcmp.lt.s32.totalorder %v1804, 18
        %vm1808 = vmand %vm1806, %vm1807
        %vm1809 = vcmp.ge.s32.totalorder %v1804, 4294967295
        %vm1810 = vcmp.lt.s32.totalorder %v1804, 17
        %vm1811 = vmand %vm1809, %vm1810
        %vm1812 = vcmp.ge.s32.totalorder %v1805, 0
        %vm1813 = vcmp.lt.s32.totalorder %v1805, 18
        %vm1814 = vmand %vm1812, %vm1813
        %vm1815 = vcmp.ge.s32.totalorder %v1805, 4294967295
        %vm1816 = vcmp.lt.s32.totalorder %v1805, 17
        %vm1817 = vmand %vm1815, %vm1816
        %v1818 = vsub.f32 1.0, %v1802
        %v1819 = vstv %s1799
        %v1820 = vmul.f32 %v1818, %v1819
        %v1821 = vsel %vm1808, %v1820, 0.0
        %v1822 = vmul.f32 %v1802, %v1819
        %v1823 = vsel %vm1811, %v1822, 0.0
        %v1824 = vsub.f32 1.0, %v1803
        %v1825 = vsel %vm1814, %v1824, 0.0
        %v1826 = vsel %vm1817, %v1803, 0.0
        %v1827 = vperm.slane %v1804, 0
        %v1828 = vsub.s32 %v362, %v1827
        %v1829 = vsub.s32 %v363, %v1827
        %v1830 = vsub.s32 %v364, %v1827
        %vm1831 = vcmp.eq.s32.totalorder %v1828, 0
        %vm1832 = vcmp.eq.s32.totalorder %v1829, 0
        %vm1833 = vcmp.eq.s32.totalorder %v1830, 0
        %v1834 = vperm.slane %v1821, 0
        %v1835 = vsel %vm1831, %v1834, 0.0
        %v1836 = vsel %vm1832, %v1834, 0.0
        %v1837 = vsel %vm1833, %v1834, 0.0
        %vm1838 = vcmp.eq.s32.totalorder %v1828, 1
        %vm1839 = vcmp.eq.s32.totalorder %v1829, 1
        %vm1840 = vcmp.eq.s32.totalorder %v1830, 1
        %v1841 = vperm.slane %v1823, 0
        %v1842 = vsel %vm1838, %v1841, 0.0
        %v1843 = vsel %vm1839, %v1841, 0.0
        %v1844 = vsel %vm1840, %v1841, 0.0
        %v1845 = vadd.f32 %v1835, %v1842
        %v1846 = vadd.f32 %v1836, %v1843
        %v1847 = vadd.f32 %v1837, %v1844
        %1848 = vmatpush.msra.mxu0 0.0
        %1849 = vmatpush.msra.mxu0 0.0
        %1850 = vmatpush.msra.mxu0 0.0
        %1851 = vmatpush.msra.mxu0 0.0
        %1852 = vmatpush.msra.mxu0 0.0
        %1853 = vmatpush.msra.mxu0 0.0
        %1854 = vmatpush.msra.mxu0 0.0
        %1855 = vmatpush.msra.mxu0 0.0
        %1856 = vmatpush.msra.mxu0 0.0
        %1857 = vmatpush.msra.mxu0 0.0
        %1858 = vmatpush.msra.mxu0 0.0
        %1859 = vmatpush.msra.mxu0 0.0
        %1860 = vmatpush.msra.mxu0 0.0
        %1861 = vmatpush.msra.mxu0 %v1847
        %1862 = vmatpush.msra.mxu0 %v1846
        %1863 = vmatpush.msra.mxu0 %v1845
        %1864 = vmatmul.f32.gmra.mxu0 %v421
        %v1865 = vpop.f32.mrf.mxu0
        %v1866 = vadd.f32 0.0, %v1865
        %1867 = vmatmul.f32.gmra.mxu0 %v424
        %v1868 = vpop.f32.mrf.mxu0
        %v1869 = vadd.f32 0.0, %v1868
        %1870 = vmatmul.f32.gmra.mxu0 %v427
        %v1871 = vpop.f32.mrf.mxu0
        %v1872 = vadd.f32 0.0, %v1871
        %1873 = vmatmul.f32.gmra.mxu0 %v430
        %v1874 = vpop.f32.mrf.mxu0
        %v1875 = vadd.f32 0.0, %v1874
        %1876 = vmatmul.f32.gmra.mxu0 %v433
        %v1877 = vpop.f32.mrf.mxu0
        %v1878 = vadd.f32 0.0, %v1877
        %1879 = vmatmul.f32.gmra.mxu0 %v436
        %v1880 = vpop.f32.mrf.mxu0
        %v1881 = vadd.f32 0.0, %v1880
        %1882 = vmatmul.f32.gmra.mxu0 %v439
        %v1883 = vpop.f32.mrf.mxu0
        %v1884 = vadd.f32 0.0, %v1883
        %1885 = vmatmul.f32.gmra.mxu0 %v442
        %v1886 = vpop.f32.mrf.mxu0
        %v1887 = vadd.f32 0.0, %v1886
        %1888 = vmatmul.f32.gmra.mxu0 %v445
        %v1889 = vpop.f32.mrf.mxu0
        %v1890 = vadd.f32 0.0, %v1889
        %1891 = vmatmul.f32.gmra.mxu0 %v448
        %v1892 = vpop.f32.mrf.mxu0
        %v1893 = vadd.f32 0.0, %v1892
        %1894 = vmatmul.f32.gmra.mxu0 %v451
        %v1895 = vpop.f32.mrf.mxu0
        %v1896 = vadd.f32 0.0, %v1895
        %1897 = vmatmul.f32.gmra.mxu0 %v454
        %v1898 = vpop.f32.mrf.mxu0
        %v1899 = vadd.f32 0.0, %v1898
        %1900 = vdwg.mxu0
        %v1901 = vperm.slane %v1805, 0
        %v1902 = vsub.s32 %v362, %v1901
        %v1903 = vsub.s32 %v363, %v1901
        %v1904 = vsub.s32 %v364, %v1901
        %vm1905 = vcmp.eq.s32.totalorder %v1902, 0
        %vm1906 = vcmp.eq.s32.totalorder %v1903, 0
        %vm1907 = vcmp.eq.s32.totalorder %v1904, 0
        %v1908 = vperm.slane %v1825, 0
        %v1909 = vsel %vm1905, %v1908, 0.0
        %v1910 = vsel %vm1906, %v1908, 0.0
        %v1911 = vsel %vm1907, %v1908, 0.0
        %vm1912 = vcmp.eq.s32.totalorder %v1902, 1
        %vm1913 = vcmp.eq.s32.totalorder %v1903, 1
        %vm1914 = vcmp.eq.s32.totalorder %v1904, 1
        %v1915 = vperm.slane %v1826, 0
        %v1916 = vsel %vm1912, %v1915, 0.0
        %v1917 = vsel %vm1913, %v1915, 0.0
        %v1918 = vsel %vm1914, %v1915, 0.0
        %v1919 = vadd.f32 %v1909, %v1916
        %v1920 = vadd.f32 %v1910, %v1917
        %v1921 = vadd.f32 %v1911, %v1918
        %v1922 = vmul.f32 %v1866, %v1919
        %v1923 = vmul.f32 %v1869, %v1920
        %v1924 = vmul.f32 %v1872, %v1921
        %v1925 = vmul.f32 %v1875, %v1919
        %v1926 = vmul.f32 %v1878, %v1920
        %v1927 = vmul.f32 %v1881, %v1921
        %v1928 = vmul.f32 %v1884, %v1919
        %v1929 = vmul.f32 %v1887, %v1920
        %v1930 = vmul.f32 %v1890, %v1921
        %v1931 = vmul.f32 %v1893, %v1919
        %v1932 = vmul.f32 %v1896, %v1920
        %v1933 = vmul.f32 %v1899, %v1921
        %v1934 = vadd.f32 %v1922, %v1923
        %v1935 = vadd.f32 %v1934, %v1924
        %v1936 = vrot.slane %v1935, 4
        %v1937 = vadd.f32 %v1935, %v1936
        %v1938 = vrot.slane %v1937, 2
        %v1939 = vadd.f32 %v1937, %v1938
        %v1940 = vrot.slane %v1939, 1
        %v1941 = vadd.f32 %v1939, %v1940
        %v1942 = vadd.f32 %v1925, %v1926
        %v1943 = vadd.f32 %v1942, %v1927
        %v1944 = vrot.slane %v1943, 4
        %v1945 = vadd.f32 %v1943, %v1944
        %v1946 = vrot.slane %v1945, 2
        %v1947 = vadd.f32 %v1945, %v1946
        %v1948 = vrot.slane %v1947, 1
        %v1949 = vadd.f32 %v1947, %v1948
        %v1950 = vadd.f32 %v1928, %v1929
        %v1951 = vadd.f32 %v1950, %v1930
        %v1952 = vrot.slane %v1951, 4
        %v1953 = vadd.f32 %v1951, %v1952
        %v1954 = vrot.slane %v1953, 2
        %v1955 = vadd.f32 %v1953, %v1954
        %v1956 = vrot.slane %v1955, 1
        %v1957 = vadd.f32 %v1955, %v1956
        %v1958 = vadd.f32 %v1931, %v1932
        %v1959 = vadd.f32 %v1958, %v1933
        %v1960 = vrot.slane %v1959, 4
        %v1961 = vadd.f32 %v1959, %v1960
        %v1962 = vrot.slane %v1961, 2
        %v1963 = vadd.f32 %v1961, %v1962
        %v1964 = vrot.slane %v1963, 1
        %v1965 = vadd.f32 %v1963, %v1964
        %v1966 = vadd.f32 %v1792, %v1941
        %v1967 = vadd.f32 %v1793, %v1949
        %v1968 = vadd.f32 %v1794, %v1957
        %v1969 = vadd.f32 %v1795, %v1965
        %vm1974 = vcmask 1041409
        %v1975 = vsel %vm1974, %v1967, %v1966
        %vm1976 = vcmask 1042434
        %v1977 = vsel %vm1976, %v1968, %v1975
        %vm1978 = vcmask 1043459
        %v1979 = vsel %vm1978, %v1969, %v1977
        %1981 = vst [vmem:[%s339] sm:$0xf] %v1979
        %s1982 = sand.u32 %s145, 1
        %s1983 = scalar_lea.sflag [#allocation7], %s1982
        %s1984 = sand.u32 %s145, 1
        %s1985 = smul.addr %s1984, 4
        %s1986 = scalar_lea.vmem [#allocation6], %s1985
        // Predicated region
        $region109: #{tpu_custom_call.1} parent=99 // pred_check
          %p1987 = pneg %p155
        $region110: #{tpu_custom_call.1} parent=99 // pred_check_branch
          %1989 = sbr.rel (%p1987) target = $region112
        $region111: #{tpu_custom_call.1} parent=99 // pred_region
          %1991 = vsyncadd %s1983, 0
          %s1992 = smul.addr %s32, 2
          %s1993 = sadd.s32 %s33, %s1992
          %s1994 = smul.addr %s31, 8
          %s1995 = sadd.s32 %s1993, %s1994
          %s1996 = smul.addr %s1995, 4
          %s1997 = scalar_lea.hbm %s4, %s1996
          %s1999 = sshll.u32 %s1986, 4
          %s2000 = int_to_ptr.vmem [resolvable:$true] %s1999
          %s2001 = sshll.u32 %s1997, 4
          %s2002 = int_to_ptr.hbm [resolvable:$true] %s2001
          %2004 = dma.vmem_to_hbm [thread:$0]  %s2000, 64, %s2002, %s1983
        $region112: #{tpu_custom_call.1} parent=99 // pred_fallthru
          _
      $region100: #{tpu_custom_call.1} parent=5 // pred_fallthru
        _
      %p2005 = scmp.le.s32.totalorder 2, %s21
      // Predicated region
      $region113: #{tpu_custom_call.1} parent=5 // pred_check
        %p2006 = pneg %p2005
      $region114: #{tpu_custom_call.1} parent=5 // pred_check_branch
        %2008 = sbr.rel (%p2006) target = $region116
      $region115: #{tpu_custom_call.1} parent=5 // pred_region
        %s2009 = ssub.s32 %s21, 2
        // Predicated region
        $region117: #{tpu_custom_call.1} parent=115 // pred_check
          %p2010 = pneg %p161
        $region118: #{tpu_custom_call.1} parent=115 // pred_check_branch
          %2012 = sbr.rel (%p2010) target = $region120
        $region119: #{tpu_custom_call.1} parent=115 // pred_region
          %s2013 = sand.u32 %s146, 1
          %s2014 = scalar_lea.sflag [#allocation7], %s2013
          %s2015 = sand.u32 %s146, 1
          %s2016 = smul.addr %s2015, 4
          %s2017 = scalar_lea.vmem [#allocation6], %s2016
          %2019 = dma.done %s2014, 64
        $region120: #{tpu_custom_call.1} parent=115 // pred_fallthru
          _
      $region116: #{tpu_custom_call.1} parent=5 // pred_fallthru
        _
    $region6: #{tpu_custom_call.1} parent=1 // loop_footer
      %s25 = sadd.s32 1, %s21
    $region7: #{tpu_custom_call.1} parent=1 // loop_footer_branch
      %20 = sbr.rel target = $region3
    $region8: #{tpu_custom_call.1} parent=1 // loop_exit
      _
    %2020 = vsyncpa [#allocation7], 1
    %s2021 = scalar_lea.sflag [#allocation7], 1
    %2022 = vsyncpa %s2021, 1

</llo_original>
